<compile_context>
chip_gen: v6e
topology: v6e:2x2x1
jax: 0.10.0
libtpu: 0.0.40
codegen_flags: <defaults>
</compile_context>

<pallas_src>
import functools

import jax
import jax.numpy as jnp
from jax.experimental import pallas as pl
from jax.experimental.pallas import tpu as pltpu

N_HEADS = 4
LN_EPS = 1e-5


# ---------------------------------------------------------------------------
# In-kernel math helpers (operate on arrays already loaded from refs)
# ---------------------------------------------------------------------------
def _layernorm(z, gamma, beta):
    """LayerNorm over the last dim; two-pass (centered) variance for safety."""
    mu = jnp.mean(z, axis=-1, keepdims=True)
    d = z - mu
    var = jnp.mean(d * d, axis=-1, keepdims=True)
    return d * jax.lax.rsqrt(var + LN_EPS) * gamma + beta


def _attention_core(q, k, v, nb, lq, lk, n_heads, dd, approx_recip):
    """Softmax attention batched over (head, batch).

    q: (nb*lq, D), k/v: (nb*lk, D), all already in the MXU dtype `dd`.
    The 1/sqrt(E) scale is folded into the Q projection by the wrapper.
    Returns the per-head contexts re-concatenated on the feature dim,
    (nb*lq, D), in f32.
    """
    d_model = q.shape[-1]
    e = d_model // n_heads

    def split_heads(t, l):
        # (nb*l, H*E) -> (H, nb*l, E) via lane slices + leading-axis stack,
        # then (H*nb, l, E) by a tile-aligned leading-dim regroup.
        th = jnp.stack([t[:, h * e:(h + 1) * e] for h in range(n_heads)], axis=0)
        return th.reshape(n_heads * nb, l, e)

    qh = split_heads(q, lq)
    kh = split_heads(k, lk)
    vh = split_heads(v, lk)

    # Scores: contract the last dim of both operands (q.k^T without an explicit
    # transposed copy), one batched MXU contraction over g = head*batch.
    s = jnp.einsum("gqe,gke->gqk", qh, kh, preferred_element_type=jnp.float32)
    s = s - jnp.max(s, axis=-1, keepdims=True)
    p = jnp.exp(s)
    denom = jnp.sum(p, axis=-1, keepdims=True)
    if approx_recip:
        p = p * pl.reciprocal(denom, approx=True)   # EUP slot, VALU stays free
    else:
        p = p / denom

    o = jnp.einsum("gqk,gke->gqe", p.astype(dd), vh,
                   preferred_element_type=jnp.float32)

    # (H*nb, lq, E) -> (H, nb*lq, E) -> lane-dim concat -> (nb*lq, H*E).
    o = o.reshape(n_heads, nb * lq, e)
    return jnp.concatenate([o[h] for h in range(n_heads)], axis=-1)


# ---------------------------------------------------------------------------
# Fused decoder-layer kernel: one grid step == a block of batch elements.
# ---------------------------------------------------------------------------
def decoder_layer_kernel(
    x_ref, cross_ref,
    # self-attention params (QKV fused)
    w_qkv_s, b_qkv_s, wo_s, bo_s,
    # cross-attention params (KV fused)
    wq_c, bq_c, w_kv_c, b_kv_c, wo_c, bo_c,
    # layer norms
    g1, be1, g2, be2, g3, be3,
    # FFN (conv1d kernel_size=1 -> pointwise linear)
    w_ff1, b_ff1, w_ff2, b_ff2,
    out_ref,
    *, nb, seq_l, seq_s, n_heads, mxu_dtype, approx_recip,
):
    dd = mxu_dtype
    d_model = x_ref.shape[-1]

    x = x_ref[...].astype(jnp.float32)        # (nb*L, D), f32 residual stream
    cr_dd = cross_ref[...].astype(dd)         # (nb*S, D), cast once, matmul-only use

    # ---- x = norm1(x + self_attention(x, x, x)) ----  (dropout == identity)
    x_dd = x.astype(dd)                                           # single hoisted cast
    qkv = jnp.dot(x_dd, w_qkv_s[...],
                  preferred_element_type=jnp.float32) + b_qkv_s[...]
    qkv = qkv.astype(dd)                                          # one cast for Q,K,V
    q = qkv[:, :d_model]
    k = qkv[:, d_model:2 * d_model]
    v = qkv[:, 2 * d_model:]
    ctx = _attention_core(q, k, v, nb, seq_l, seq_l, n_heads, dd, approx_recip)
    sa = jnp.dot(ctx.astype(dd), wo_s[...],
                 preferred_element_type=jnp.float32) + bo_s[...]
    x = _layernorm(x + sa, g1[...], be1[...])

    # ---- x = norm2(x + cross_attention(x, cross, cross)) ----
    x_dd = x.astype(dd)
    q = (jnp.dot(x_dd, wq_c[...],
                 preferred_element_type=jnp.float32) + bq_c[...]).astype(dd)
    kv = (jnp.dot(cr_dd, w_kv_c[...],
                  preferred_element_type=jnp.float32) + b_kv_c[...]).astype(dd)
    k = kv[:, :d_model]
    v = kv[:, d_model:]
    ctx = _attention_core(q, k, v, nb, seq_l, seq_s, n_heads, dd, approx_recip)
    ca = jnp.dot(ctx.astype(dd), wo_c[...],
                 preferred_element_type=jnp.float32) + bo_c[...]
    x = _layernorm(x + ca, g2[...], be2[...])

    # ---- y = conv2(relu(conv1(x^T)))^T  == pointwise FFN on feature dim ----
    x_dd = x.astype(dd)
    y = jnp.dot(x_dd, w_ff1[...],
                preferred_element_type=jnp.float32) + b_ff1[...]
    y = jnp.maximum(y, 0.0)
    y = jnp.dot(y.astype(dd), w_ff2[...],
                preferred_element_type=jnp.float32) + b_ff2[...]

    out_ref[...] = _layernorm(x + y, g3[...], be3[...]).astype(out_ref.dtype)


# ---------------------------------------------------------------------------
# Wrapper
# ---------------------------------------------------------------------------
def _vmem_capacity_bytes():
    try:
        return int(pltpu.get_tpu_info().vmem_capacity_bytes)
    except Exception:
        return 64 * 1024 * 1024   # conservative (v7x per-TC VMEM)


def _pick_batch_block(B, L, S, D, d_ff, H, vmem_budget_bytes):
    """VMEM-budgeted batch block, capped at B//2 so grid >= 2 (v7x megacore)."""
    # Crude per-batch-element f32 working-set estimate (dominant terms):
    #   score + prob slabs: 2 * H * L * max(L, S)
    #   activation slabs:   ~8 * L * D   (x, residuals, qkv, ctx, attn out, ...)
    #   FFN hidden:         L * d_ff
    per_b = 4 * (2 * H * L * max(L, S) + 8 * L * D + L * d_ff)
    nb = max(1, min(B, int(vmem_budget_bytes // max(per_b, 1))))
    nb = min(nb, max(1, B // 2))        # keep >= 2 grid steps when B > 1
    while B % nb:
        nb -= 1
    return nb


def decoder_layer(x, cross, params, *, batch_block=None,
                  mxu_dtype=jnp.bfloat16, approx_recip=True):
    B, L, D = x.shape
    _, S, _ = cross.shape
    H = N_HEADS
    assert D % H == 0, "d_model must be divisible by n_heads"
    E = D // H
    # Sublane-aligned sequence lengths keep the in-kernel (H, nb*l, E) ->
    # (H*nb, l, E) regroup a free, tile-aligned reshape.
    assert L % 8 == 0 and S % 8 == 0, "L and S should be multiples of 8"
    d_ff = params["w_ff1"].shape[1]

    scale = 1.0 / (E ** 0.5)
    wdt = mxu_dtype   # matmul weights at MXU precision; biases / LN stay f32

    # Fused projections; 1/sqrt(E) folded into the Q weight + bias.
    kp = {
        "w_qkv_s": jnp.concatenate(
            [params["wq_s"] * scale, params["wk_s"], params["wv_s"]],
            axis=1).astype(wdt),
        "b_qkv_s": jnp.concatenate(
            [params["bq_s"] * scale, params["bk_s"], params["bv_s"]], axis=1),
        "wo_s": params["wo_s"].astype(wdt), "bo_s": params["bo_s"],
        "wq_c": (params["wq_c"] * scale).astype(wdt),
        "bq_c": params["bq_c"] * scale,
        "w_kv_c": jnp.concatenate(
            [params["wk_c"], params["wv_c"]], axis=1).astype(wdt),
        "b_kv_c": jnp.concatenate([params["bk_c"], params["bv_c"]], axis=1),
        "wo_c": params["wo_c"].astype(wdt), "bo_c": params["bo_c"],
        "g1": params["g1"], "be1": params["be1"],
        "g2": params["g2"], "be2": params["be2"],
        "g3": params["g3"], "be3": params["be3"],
        "w_ff1": params["w_ff1"].astype(wdt), "b_ff1": params["b_ff1"],
        "w_ff2": params["w_ff2"].astype(wdt), "b_ff2": params["b_ff2"],
    }
    param_order = [
        "w_qkv_s", "b_qkv_s", "wo_s", "bo_s",
        "wq_c", "bq_c", "w_kv_c", "b_kv_c", "wo_c", "bo_c",
        "g1", "be1", "g2", "be2", "g3", "be3",
        "w_ff1", "b_ff1", "w_ff2", "b_ff2",
    ]
    param_arrays = [kp[name] for name in param_order]

    vmem_cap = _vmem_capacity_bytes()
    param_bytes = sum(int(a.size) * a.dtype.itemsize for a in param_arrays)

    if batch_block is None:
        # Leave room for in/out pipelining, compiler scratch and the (double-
        # buffered) parameter blocks.
        budget = max(8 << 20, int(0.45 * vmem_cap) - 2 * param_bytes)
        nb = _pick_batch_block(B, L, S, D, d_ff, H, budget)
    else:
        nb = batch_block
    assert B % nb == 0, "batch_block must divide the batch size"

    # Flatten (B, L, D) -> (B*L, D) outside the kernel (free reshape) so the
    # kernel sees one lane-contiguous slab per grid step.
    xf = x.reshape(B * L, D)
    cf = cross.reshape(B * S, D)

    def full_spec(a):
        # Whole (small) parameter array resident in VMEM every grid step.
        return pl.BlockSpec(a.shape, lambda i: (0, 0))

    in_specs = [
        pl.BlockSpec((nb * L, D), lambda i: (i, 0)),   # x   (flattened batch)
        pl.BlockSpec((nb * S, D), lambda i: (i, 0)),   # cross
    ] + [full_spec(a) for a in param_arrays]
    out_spec = pl.BlockSpec((nb * L, D), lambda i: (i, 0))

    kernel = functools.partial(
        decoder_layer_kernel, nb=nb, seq_l=L, seq_s=S, n_heads=H,
        mxu_dtype=mxu_dtype, approx_recip=approx_recip)

    out = pl.pallas_call(
        kernel,
        out_shape=jax.ShapeDtypeStruct((B * L, D), x.dtype),
        grid_spec=pltpu.PrefetchScalarGridSpec(
            num_scalar_prefetch=0,
            grid=(B // nb,),
            in_specs=in_specs,
            out_specs=out_spec,
        ),
        compiler_params=pltpu.CompilerParams(
            dimension_semantics=("parallel",),
            vmem_limit_bytes=max(32 << 20, int(0.75 * vmem_cap)),
        ),
    )(xf, cf, *param_arrays)

    return out.reshape(B, L, D)


# ---------------------------------------------------------------------------
# Pure-JAX reference (standard weight layout, exact softmax, f32)
# ---------------------------------------------------------------------------
def decoder_layer_ref(x, cross, p):
    def ln(z, g, b):
        mu = z.mean(-1, keepdims=True)
        var = ((z - mu) ** 2).mean(-1, keepdims=True)
        return (z - mu) / jnp.sqrt(var + LN_EPS) * g + b

    def mha(q_in, kv_in, wq, bq, wk, bk, wv, bv, wo, bo):
        B, Lq, Dm = q_in.shape
        Lk = kv_in.shape[1]
        H = N_HEADS
        E = Dm // H
        q = (jnp.einsum("bld,de->ble", q_in, wq) + bq).reshape(B, Lq, H, E)
        k = (jnp.einsum("bld,de->ble", kv_in, wk) + bk).reshape(B, Lk, H, E)
        v = (jnp.einsum("bld,de->ble", kv_in, wv) + bv).reshape(B, Lk, H, E)
        s = jnp.einsum("blhe,bmhe->bhlm", q, k) / jnp.sqrt(E)
        a = jax.nn.softmax(s, axis=-1)
        o = jnp.einsum("bhlm,bmhe->blhe", a, v).reshape(B, Lq, Dm)
        return jnp.einsum("bld,de->ble", o, wo) + bo

    sa = mha(x, x, p["wq_s"], p["bq_s"], p["wk_s"], p["bk_s"],
             p["wv_s"], p["bv_s"], p["wo_s"], p["bo_s"])
    x1 = ln(x + sa, p["g1"], p["be1"])
    ca = mha(x1, cross, p["wq_c"], p["bq_c"], p["wk_c"], p["bk_c"],
             p["wv_c"], p["bv_c"], p["wo_c"], p["bo_c"])
    x2 = ln(x1 + ca, p["g2"], p["be2"])
    y = jnp.maximum(jnp.einsum("bld,df->blf", x2, p["w_ff1"]) + p["b_ff1"], 0.0)
    y = jnp.einsum("blf,fd->bld", y, p["w_ff2"]) + p["b_ff2"]
    return ln(x2 + y, p["g3"], p["be3"])


# ---------------------------------------------------------------------------
def make_params(key, d_model, d_ff):
    names_shapes = [
        ("wq_s", (d_model, d_model)), ("bq_s", (1, d_model)),
        ("wk_s", (d_model, d_model)), ("bk_s", (1, d_model)),
        ("wv_s", (d_model, d_model)), ("bv_s", (1, d_model)),
        ("wo_s", (d_model, d_model)), ("bo_s", (1, d_model)),
        ("wq_c", (d_model, d_model)), ("bq_c", (1, d_model)),
        ("wk_c", (d_model, d_model)), ("bk_c", (1, d_model)),
        ("wv_c", (d_model, d_model)), ("bv_c", (1, d_model)),
        ("wo_c", (d_model, d_model)), ("bo_c", (1, d_model)),
        ("w_ff1", (d_model, d_ff)),   ("b_ff1", (1, d_ff)),
        ("w_ff2", (d_ff, d_model)),   ("b_ff2", (1, d_model)),
    ]
    params = {}
    keys = jax.random.split(key, len(names_shapes))
    for (name, shape), k in zip(names_shapes, keys):
        params[name] = (0.05 * jax.random.normal(k, shape)).astype(jnp.float32)
    # LayerNorm affine params (PyTorch init: gamma=1, beta=0)
    for i in (1, 2, 3):
        params[f"g{i}"] = jnp.ones((1, d_model), jnp.float32)
        params[f"be{i}"] = jnp.zeros((1, d_model), jnp.float32)
    return params


if __name__ == "__main__":
    B, L, S, D_MODEL = 2, 8, 8, 32
    D_FF = 4 * D_MODEL  # module default d_ff = 4 * d_model

    key = jax.random.PRNGKey(0)
    kx, kc, kp = jax.random.split(key, 3)
    x = jax.random.normal(kx, (B, L, D_MODEL), dtype=jnp.float32)
    cross = jax.random.normal(kc, (B, S, D_MODEL), dtype=jnp.float32)
    params = make_params(kp, D_MODEL, D_FF)

    ref = jax.block_until_ready(decoder_layer_ref(x, cross, params))

    # 1) Exact f32 MXU + exact softmax normalization (auto batch_block -> grid>=2).
    out_exact = jax.block_until_ready(
        decoder_layer(x, cross, params, mxu_dtype=jnp.float32,
                      approx_recip=False))
    assert out_exact.shape == (B, L, D_MODEL)
    assert jnp.allclose(out_exact, ref, atol=1e-3, rtol=1e-3), (
        float(jnp.max(jnp.abs(out_exact - ref))))

    # 2) Collapsed single-step grid (f32 exact) must match the multi-step grid.
    out_collapsed = jax.block_until_ready(
        decoder_layer(x, cross, params, batch_block=B,
                      mxu_dtype=jnp.float32, approx_recip=False))
    assert jnp.allclose(out_collapsed, out_exact, atol=1e-5, rtol=1e-5), (
        float(jnp.max(jnp.abs(out_collapsed - out_exact))))

    # 3) Default fast path: bf16 MXU operands / f32 accumulation + EUP
    #    approximate reciprocal in the softmax. Loose bound.
    out_fast = jax.block_until_ready(decoder_layer(x, cross, params))
    assert bool(jnp.all(jnp.isfinite(out_fast)))
    assert float(jnp.max(jnp.abs(out_fast - ref))) < 1.5e-1

    print("KERNEL_OK")
</pallas_src>

<mosaic_0001>
module attributes {stable_mosaic.version = 11 : i64} {
  func.func @decoder_layer_kernel(%arg0: i32, %arg1: memref<8x32xf32, #tpu.memory_space<vmem>>, %arg2: memref<8x32xf32, #tpu.memory_space<vmem>>, %arg3: memref<32x96xf32, #tpu.memory_space<vmem>>, %arg4: memref<1x96xf32, #tpu.memory_space<vmem>>, %arg5: memref<32x32xf32, #tpu.memory_space<vmem>>, %arg6: memref<1x32xf32, #tpu.memory_space<vmem>>, %arg7: memref<32x32xf32, #tpu.memory_space<vmem>>, %arg8: memref<1x32xf32, #tpu.memory_space<vmem>>, %arg9: memref<32x64xf32, #tpu.memory_space<vmem>>, %arg10: memref<1x64xf32, #tpu.memory_space<vmem>>, %arg11: memref<32x32xf32, #tpu.memory_space<vmem>>, %arg12: memref<1x32xf32, #tpu.memory_space<vmem>>, %arg13: memref<1x32xf32, #tpu.memory_space<vmem>>, %arg14: memref<1x32xf32, #tpu.memory_space<vmem>>, %arg15: memref<1x32xf32, #tpu.memory_space<vmem>>, %arg16: memref<1x32xf32, #tpu.memory_space<vmem>>, %arg17: memref<1x32xf32, #tpu.memory_space<vmem>>, %arg18: memref<1x32xf32, #tpu.memory_space<vmem>>, %arg19: memref<32x128xf32, #tpu.memory_space<vmem>>, %arg20: memref<1x128xf32, #tpu.memory_space<vmem>>, %arg21: memref<128x32xf32, #tpu.memory_space<vmem>>, %arg22: memref<1x32xf32, #tpu.memory_space<vmem>>, %arg23: memref<8x32xf32, #tpu.memory_space<vmem>>) attributes {dimension_semantics = [#tpu.dimension_semantics<parallel>], iteration_bounds = array<i64: 2>, scalar_prefetch = 0 : i64, scratch_operands = 0 : i64, tpu.core_type = #tpu.core_type<tc>, window_params = [{transform_indices = @transform_0, window_bounds = array<i64: 8, 32>}, {transform_indices = @transform_1, window_bounds = array<i64: 8, 32>}, {pipeline_mode = #tpu.pipeline_mode<synchronous>, transform_indices = @transform_2, window_bounds = array<i64: 32, 96>}, {pipeline_mode = #tpu.pipeline_mode<synchronous>, transform_indices = @transform_3, window_bounds = array<i64: 1, 96>}, {pipeline_mode = #tpu.pipeline_mode<synchronous>, transform_indices = @transform_4, window_bounds = array<i64: 32, 32>}, {pipeline_mode = #tpu.pipeline_mode<synchronous>, transform_indices = @transform_5, window_bounds = array<i64: 1, 32>}, {pipeline_mode = #tpu.pipeline_mode<synchronous>, transform_indices = @transform_6, window_bounds = array<i64: 32, 32>}, {pipeline_mode = #tpu.pipeline_mode<synchronous>, transform_indices = @transform_7, window_bounds = array<i64: 1, 32>}, {pipeline_mode = #tpu.pipeline_mode<synchronous>, transform_indices = @transform_8, window_bounds = array<i64: 32, 64>}, {pipeline_mode = #tpu.pipeline_mode<synchronous>, transform_indices = @transform_9, window_bounds = array<i64: 1, 64>}, {pipeline_mode = #tpu.pipeline_mode<synchronous>, transform_indices = @transform_10, window_bounds = array<i64: 32, 32>}, {pipeline_mode = #tpu.pipeline_mode<synchronous>, transform_indices = @transform_11, window_bounds = array<i64: 1, 32>}, {pipeline_mode = #tpu.pipeline_mode<synchronous>, transform_indices = @transform_12, window_bounds = array<i64: 1, 32>}, {pipeline_mode = #tpu.pipeline_mode<synchronous>, transform_indices = @transform_13, window_bounds = array<i64: 1, 32>}, {pipeline_mode = #tpu.pipeline_mode<synchronous>, transform_indices = @transform_14, window_bounds = array<i64: 1, 32>}, {pipeline_mode = #tpu.pipeline_mode<synchronous>, transform_indices = @transform_15, window_bounds = array<i64: 1, 32>}, {pipeline_mode = #tpu.pipeline_mode<synchronous>, transform_indices = @transform_16, window_bounds = array<i64: 1, 32>}, {pipeline_mode = #tpu.pipeline_mode<synchronous>, transform_indices = @transform_17, window_bounds = array<i64: 1, 32>}, {pipeline_mode = #tpu.pipeline_mode<synchronous>, transform_indices = @transform_18, window_bounds = array<i64: 32, 128>}, {pipeline_mode = #tpu.pipeline_mode<synchronous>, transform_indices = @transform_19, window_bounds = array<i64: 1, 128>}, {pipeline_mode = #tpu.pipeline_mode<synchronous>, transform_indices = @transform_20, window_bounds = array<i64: 128, 32>}, {pipeline_mode = #tpu.pipeline_mode<synchronous>, transform_indices = @transform_21, window_bounds = array<i64: 1, 32>}, {transform_indices = @transform_22, window_bounds = array<i64: 8, 32>}]} {
    %c0 = arith.constant 0 : index
    %c0_0 = arith.constant 0 : index
    %0 = vector.load %arg1[%c0, %c0_0] : memref<8x32xf32, #tpu.memory_space<vmem>>, vector<8x32xf32>
    %c0_1 = arith.constant 0 : index
    %c0_2 = arith.constant 0 : index
    %1 = vector.load %arg2[%c0_1, %c0_2] : memref<8x32xf32, #tpu.memory_space<vmem>>, vector<8x32xf32>
    %c0_3 = arith.constant 0 : index
    %c0_4 = arith.constant 0 : index
    %2 = vector.load %arg3[%c0_3, %c0_4] : memref<32x96xf32, #tpu.memory_space<vmem>>, vector<32x96xf32>
    %cst = arith.constant dense<0.000000e+00> : vector<8x96xf32>
    %3 = tpu.matmul %0, %2, %cst {dimension_numbers = #tpu.dot_dimension_numbers<[1], [0], [0], [1], [0, 0, 1, 1], [], []>} : vector<8x32xf32>, vector<32x96xf32>, vector<8x96xf32> -> vector<8x96xf32>
    %c0_5 = arith.constant 0 : index
    %c0_6 = arith.constant 0 : index
    %4 = vector.load %arg4[%c0_5, %c0_6] : memref<1x96xf32, #tpu.memory_space<vmem>>, vector<1x96xf32>
    %5 = vector.broadcast %4 : vector<1x96xf32> to vector<8x96xf32>
    %6 = arith.addf %3, %5 : vector<8x96xf32>
    %7 = vector.extract_strided_slice %6 {offsets = [0, 0], sizes = [8, 32], strides = [1, 1]} : vector<8x96xf32> to vector<8x32xf32>
    %8 = vector.extract_strided_slice %6 {offsets = [0, 32], sizes = [8, 32], strides = [1, 1]} : vector<8x96xf32> to vector<8x32xf32>
    %9 = vector.extract_strided_slice %6 {offsets = [0, 64], sizes = [8, 32], strides = [1, 1]} : vector<8x96xf32> to vector<8x32xf32>
    %10 = vector.extract_strided_slice %7 {offsets = [0, 0], sizes = [8, 8], strides = [1, 1]} : vector<8x32xf32> to vector<8x8xf32>
    %11 = vector.extract_strided_slice %7 {offsets = [0, 8], sizes = [8, 8], strides = [1, 1]} : vector<8x32xf32> to vector<8x8xf32>
    %12 = vector.extract_strided_slice %7 {offsets = [0, 16], sizes = [8, 8], strides = [1, 1]} : vector<8x32xf32> to vector<8x8xf32>
    %13 = vector.extract_strided_slice %7 {offsets = [0, 24], sizes = [8, 8], strides = [1, 1]} : vector<8x32xf32> to vector<8x8xf32>
    %14 = vector.shape_cast %10 : vector<8x8xf32> to vector<1x8x8xf32>
    %15 = vector.shape_cast %11 : vector<8x8xf32> to vector<1x8x8xf32>
    %16 = vector.shape_cast %12 : vector<8x8xf32> to vector<1x8x8xf32>
    %17 = vector.shape_cast %13 : vector<8x8xf32> to vector<1x8x8xf32>
    %18 = tpu.concatenate %14, %15, %16, %17 in 0 : vector<1x8x8xf32>, vector<1x8x8xf32>, vector<1x8x8xf32>, vector<1x8x8xf32> -> vector<4x8x8xf32>
    %19 = vector.extract_strided_slice %8 {offsets = [0, 0], sizes = [8, 8], strides = [1, 1]} : vector<8x32xf32> to vector<8x8xf32>
    %20 = vector.extract_strided_slice %8 {offsets = [0, 8], sizes = [8, 8], strides = [1, 1]} : vector<8x32xf32> to vector<8x8xf32>
    %21 = vector.extract_strided_slice %8 {offsets = [0, 16], sizes = [8, 8], strides = [1, 1]} : vector<8x32xf32> to vector<8x8xf32>
    %22 = vector.extract_strided_slice %8 {offsets = [0, 24], sizes = [8, 8], strides = [1, 1]} : vector<8x32xf32> to vector<8x8xf32>
    %23 = vector.shape_cast %19 : vector<8x8xf32> to vector<1x8x8xf32>
    %24 = vector.shape_cast %20 : vector<8x8xf32> to vector<1x8x8xf32>
    %25 = vector.shape_cast %21 : vector<8x8xf32> to vector<1x8x8xf32>
    %26 = vector.shape_cast %22 : vector<8x8xf32> to vector<1x8x8xf32>
    %27 = tpu.concatenate %23, %24, %25, %26 in 0 : vector<1x8x8xf32>, vector<1x8x8xf32>, vector<1x8x8xf32>, vector<1x8x8xf32> -> vector<4x8x8xf32>
    %28 = vector.extract_strided_slice %9 {offsets = [0, 0], sizes = [8, 8], strides = [1, 1]} : vector<8x32xf32> to vector<8x8xf32>
    %29 = vector.extract_strided_slice %9 {offsets = [0, 8], sizes = [8, 8], strides = [1, 1]} : vector<8x32xf32> to vector<8x8xf32>
    %30 = vector.extract_strided_slice %9 {offsets = [0, 16], sizes = [8, 8], strides = [1, 1]} : vector<8x32xf32> to vector<8x8xf32>
    %31 = vector.extract_strided_slice %9 {offsets = [0, 24], sizes = [8, 8], strides = [1, 1]} : vector<8x32xf32> to vector<8x8xf32>
    %32 = vector.shape_cast %28 : vector<8x8xf32> to vector<1x8x8xf32>
    %33 = vector.shape_cast %29 : vector<8x8xf32> to vector<1x8x8xf32>
    %34 = vector.shape_cast %30 : vector<8x8xf32> to vector<1x8x8xf32>
    %35 = vector.shape_cast %31 : vector<8x8xf32> to vector<1x8x8xf32>
    %36 = tpu.concatenate %32, %33, %34, %35 in 0 : vector<1x8x8xf32>, vector<1x8x8xf32>, vector<1x8x8xf32>, vector<1x8x8xf32> -> vector<4x8x8xf32>
    "tpu.trace_start"() <{level = 10 : i32, message = "gqe,gke->gqk"}> : () -> ()
    %cst_7 = arith.constant dense<0.000000e+00> : vector<4x8x8xf32>
    %37 = tpu.matmul %18, %27, %cst_7 {dimension_numbers = #tpu.dot_dimension_numbers<[2], [2], [1], [1], [0, 0, 0, 1, 1, 1], [0], [0]>} : vector<4x8x8xf32>, vector<4x8x8xf32>, vector<4x8x8xf32> -> vector<4x8x8xf32>
    "tpu.trace_stop"() : () -> ()
    %cst_8 = arith.constant dense<0xFF800000> : vector<4x8xf32>
    %38 = vector.multi_reduction <maximumf>, %37, %cst_8 [2] : vector<4x8x8xf32> to vector<4x8xf32>
    %39 = vector.shape_cast %38 : vector<4x8xf32> to vector<4x8x1xf32>
    %40 = vector.broadcast %39 : vector<4x8x1xf32> to vector<4x8x8xf32>
    %41 = arith.subf %37, %40 : vector<4x8x8xf32>
    %42 = math.exp %41 : vector<4x8x8xf32>
    %cst_9 = arith.constant dense<0.000000e+00> : vector<4x8xf32>
    %43 = vector.multi_reduction <add>, %42, %cst_9 [2] : vector<4x8x8xf32> to vector<4x8xf32>
    %44 = vector.shape_cast %43 : vector<4x8xf32> to vector<4x8x1xf32>
    %45 = vector.broadcast %44 : vector<4x8x1xf32> to vector<4x8x8xf32>
    %46 = arith.divf %42, %45 : vector<4x8x8xf32>
    "tpu.trace_start"() <{level = 10 : i32, message = "gqk,gke->gqe"}> : () -> ()
    %cst_10 = arith.constant dense<0.000000e+00> : vector<4x8x8xf32>
    %47 = tpu.matmul %46, %36, %cst_10 {dimension_numbers = #tpu.dot_dimension_numbers<[2], [1], [1], [2], [0, 0, 0, 1, 1, 2], [0], [0]>} : vector<4x8x8xf32>, vector<4x8x8xf32>, vector<4x8x8xf32> -> vector<4x8x8xf32>
    "tpu.trace_stop"() : () -> ()
    %48 = vector.extract_strided_slice %47 {offsets = [0, 0, 0], sizes = [1, 8, 8], strides = [1, 1, 1]} : vector<4x8x8xf32> to vector<1x8x8xf32>
    %49 = vector.shape_cast %48 : vector<1x8x8xf32> to vector<8x8xf32>
    %50 = vector.extract_strided_slice %47 {offsets = [1, 0, 0], sizes = [1, 8, 8], strides = [1, 1, 1]} : vector<4x8x8xf32> to vector<1x8x8xf32>
    %51 = vector.shape_cast %50 : vector<1x8x8xf32> to vector<8x8xf32>
    %52 = vector.extract_strided_slice %47 {offsets = [2, 0, 0], sizes = [1, 8, 8], strides = [1, 1, 1]} : vector<4x8x8xf32> to vector<1x8x8xf32>
    %53 = vector.shape_cast %52 : vector<1x8x8xf32> to vector<8x8xf32>
    %54 = vector.extract_strided_slice %47 {offsets = [3, 0, 0], sizes = [1, 8, 8], strides = [1, 1, 1]} : vector<4x8x8xf32> to vector<1x8x8xf32>
    %55 = vector.shape_cast %54 : vector<1x8x8xf32> to vector<8x8xf32>
    %56 = tpu.concatenate %49, %51, %53, %55 in 1 : vector<8x8xf32>, vector<8x8xf32>, vector<8x8xf32>, vector<8x8xf32> -> vector<8x32xf32>
    %c0_11 = arith.constant 0 : index
    %c0_12 = arith.constant 0 : index
    %57 = vector.load %arg5[%c0_11, %c0_12] : memref<32x32xf32, #tpu.memory_space<vmem>>, vector<32x32xf32>
    %cst_13 = arith.constant dense<0.000000e+00> : vector<8x32xf32>
    %58 = tpu.matmul %56, %57, %cst_13 {dimension_numbers = #tpu.dot_dimension_numbers<[1], [0], [0], [1], [0, 0, 1, 1], [], []>} : vector<8x32xf32>, vector<32x32xf32>, vector<8x32xf32> -> vector<8x32xf32>
    %c0_14 = arith.constant 0 : index
    %c0_15 = arith.constant 0 : index
    %59 = vector.load %arg6[%c0_14, %c0_15] : memref<1x32xf32, #tpu.memory_space<vmem>>, vector<1x32xf32>
    %60 = vector.broadcast %59 : vector<1x32xf32> to vector<8x32xf32>
    %61 = arith.addf %58, %60 : vector<8x32xf32>
    %62 = arith.addf %0, %61 : vector<8x32xf32>
    %c0_16 = arith.constant 0 : index
    %c0_17 = arith.constant 0 : index
    %63 = vector.load %arg13[%c0_16, %c0_17] : memref<1x32xf32, #tpu.memory_space<vmem>>, vector<1x32xf32>
    %c0_18 = arith.constant 0 : index
    %c0_19 = arith.constant 0 : index
    %64 = vector.load %arg14[%c0_18, %c0_19] : memref<1x32xf32, #tpu.memory_space<vmem>>, vector<1x32xf32>
    %cst_20 = arith.constant dense<0.000000e+00> : vector<8xf32>
    %65 = vector.multi_reduction <add>, %62, %cst_20 [1] : vector<8x32xf32> to vector<8xf32>
    %66 = vector.shape_cast %65 : vector<8xf32> to vector<8x1xf32>
    %cst_21 = arith.constant 3.200000e+01 : f32
    %67 = vector.broadcast %cst_21 : f32 to vector<8x1xf32>
    %68 = arith.divf %66, %67 : vector<8x1xf32>
    %69 = vector.broadcast %68 : vector<8x1xf32> to vector<8x32xf32>
    %70 = arith.subf %62, %69 : vector<8x32xf32>
    %71 = arith.mulf %70, %70 : vector<8x32xf32>
    %cst_22 = arith.constant dense<0.000000e+00> : vector<8xf32>
    %72 = vector.multi_reduction <add>, %71, %cst_22 [1] : vector<8x32xf32> to vector<8xf32>
    %73 = vector.shape_cast %72 : vector<8xf32> to vector<8x1xf32>
    %cst_23 = arith.constant 3.200000e+01 : f32
    %74 = vector.broadcast %cst_23 : f32 to vector<8x1xf32>
    %75 = arith.divf %73, %74 : vector<8x1xf32>
    %cst_24 = arith.constant 9.99999974E-6 : f32
    %76 = vector.broadcast %cst_24 : f32 to vector<8x1xf32>
    %77 = arith.addf %75, %76 : vector<8x1xf32>
    %78 = math.rsqrt %77 : vector<8x1xf32>
    %79 = vector.broadcast %78 : vector<8x1xf32> to vector<8x32xf32>
    %80 = arith.mulf %70, %79 : vector<8x32xf32>
    %81 = vector.broadcast %63 : vector<1x32xf32> to vector<8x32xf32>
    %82 = arith.mulf %80, %81 : vector<8x32xf32>
    %83 = vector.broadcast %64 : vector<1x32xf32> to vector<8x32xf32>
    %84 = arith.addf %82, %83 : vector<8x32xf32>
    %c0_25 = arith.constant 0 : index
    %c0_26 = arith.constant 0 : index
    %85 = vector.load %arg7[%c0_25, %c0_26] : memref<32x32xf32, #tpu.memory_space<vmem>>, vector<32x32xf32>
    %cst_27 = arith.constant dense<0.000000e+00> : vector<8x32xf32>
    %86 = tpu.matmul %84, %85, %cst_27 {dimension_numbers = #tpu.dot_dimension_numbers<[1], [0], [0], [1], [0, 0, 1, 1], [], []>} : vector<8x32xf32>, vector<32x32xf32>, vector<8x32xf32> -> vector<8x32xf32>
    %c0_28 = arith.constant 0 : index
    %c0_29 = arith.constant 0 : index
    %87 = vector.load %arg8[%c0_28, %c0_29] : memref<1x32xf32, #tpu.memory_space<vmem>>, vector<1x32xf32>
    %88 = vector.broadcast %87 : vector<1x32xf32> to vector<8x32xf32>
    %89 = arith.addf %86, %88 : vector<8x32xf32>
    %c0_30 = arith.constant 0 : index
    %c0_31 = arith.constant 0 : index
    %90 = vector.load %arg9[%c0_30, %c0_31] : memref<32x64xf32, #tpu.memory_space<vmem>>, vector<32x64xf32>
    %cst_32 = arith.constant dense<0.000000e+00> : vector<8x64xf32>
    %91 = tpu.matmul %1, %90, %cst_32 {dimension_numbers = #tpu.dot_dimension_numbers<[1], [0], [0], [1], [0, 0, 1, 1], [], []>} : vector<8x32xf32>, vector<32x64xf32>, vector<8x64xf32> -> vector<8x64xf32>
    %c0_33 = arith.constant 0 : index
    %c0_34 = arith.constant 0 : index
    %92 = vector.load %arg10[%c0_33, %c0_34] : memref<1x64xf32, #tpu.memory_space<vmem>>, vector<1x64xf32>
    %93 = vector.broadcast %92 : vector<1x64xf32> to vector<8x64xf32>
    %94 = arith.addf %91, %93 : vector<8x64xf32>
    %95 = vector.extract_strided_slice %94 {offsets = [0, 0], sizes = [8, 32], strides = [1, 1]} : vector<8x64xf32> to vector<8x32xf32>
    %96 = vector.extract_strided_slice %94 {offsets = [0, 32], sizes = [8, 32], strides = [1, 1]} : vector<8x64xf32> to vector<8x32xf32>
    %97 = vector.extract_strided_slice %89 {offsets = [0, 0], sizes = [8, 8], strides = [1, 1]} : vector<8x32xf32> to vector<8x8xf32>
    %98 = vector.extract_strided_slice %89 {offsets = [0, 8], sizes = [8, 8], strides = [1, 1]} : vector<8x32xf32> to vector<8x8xf32>
    %99 = vector.extract_strided_slice %89 {offsets = [0, 16], sizes = [8, 8], strides = [1, 1]} : vector<8x32xf32> to vector<8x8xf32>
    %100 = vector.extract_strided_slice %89 {offsets = [0, 24], sizes = [8, 8], strides = [1, 1]} : vector<8x32xf32> to vector<8x8xf32>
    %101 = vector.shape_cast %97 : vector<8x8xf32> to vector<1x8x8xf32>
    %102 = vector.shape_cast %98 : vector<8x8xf32> to vector<1x8x8xf32>
    %103 = vector.shape_cast %99 : vector<8x8xf32> to vector<1x8x8xf32>
    %104 = vector.shape_cast %100 : vector<8x8xf32> to vector<1x8x8xf32>
    %105 = tpu.concatenate %101, %102, %103, %104 in 0 : vector<1x8x8xf32>, vector<1x8x8xf32>, vector<1x8x8xf32>, vector<1x8x8xf32> -> vector<4x8x8xf32>
    %106 = vector.extract_strided_slice %95 {offsets = [0, 0], sizes = [8, 8], strides = [1, 1]} : vector<8x32xf32> to vector<8x8xf32>
    %107 = vector.extract_strided_slice %95 {offsets = [0, 8], sizes = [8, 8], strides = [1, 1]} : vector<8x32xf32> to vector<8x8xf32>
    %108 = vector.extract_strided_slice %95 {offsets = [0, 16], sizes = [8, 8], strides = [1, 1]} : vector<8x32xf32> to vector<8x8xf32>
    %109 = vector.extract_strided_slice %95 {offsets = [0, 24], sizes = [8, 8], strides = [1, 1]} : vector<8x32xf32> to vector<8x8xf32>
    %110 = vector.shape_cast %106 : vector<8x8xf32> to vector<1x8x8xf32>
    %111 = vector.shape_cast %107 : vector<8x8xf32> to vector<1x8x8xf32>
    %112 = vector.shape_cast %108 : vector<8x8xf32> to vector<1x8x8xf32>
    %113 = vector.shape_cast %109 : vector<8x8xf32> to vector<1x8x8xf32>
    %114 = tpu.concatenate %110, %111, %112, %113 in 0 : vector<1x8x8xf32>, vector<1x8x8xf32>, vector<1x8x8xf32>, vector<1x8x8xf32> -> vector<4x8x8xf32>
    %115 = vector.extract_strided_slice %96 {offsets = [0, 0], sizes = [8, 8], strides = [1, 1]} : vector<8x32xf32> to vector<8x8xf32>
    %116 = vector.extract_strided_slice %96 {offsets = [0, 8], sizes = [8, 8], strides = [1, 1]} : vector<8x32xf32> to vector<8x8xf32>
    %117 = vector.extract_strided_slice %96 {offsets = [0, 16], sizes = [8, 8], strides = [1, 1]} : vector<8x32xf32> to vector<8x8xf32>
    %118 = vector.extract_strided_slice %96 {offsets = [0, 24], sizes = [8, 8], strides = [1, 1]} : vector<8x32xf32> to vector<8x8xf32>
    %119 = vector.shape_cast %115 : vector<8x8xf32> to vector<1x8x8xf32>
    %120 = vector.shape_cast %116 : vector<8x8xf32> to vector<1x8x8xf32>
    %121 = vector.shape_cast %117 : vector<8x8xf32> to vector<1x8x8xf32>
    %122 = vector.shape_cast %118 : vector<8x8xf32> to vector<1x8x8xf32>
    %123 = tpu.concatenate %119, %120, %121, %122 in 0 : vector<1x8x8xf32>, vector<1x8x8xf32>, vector<1x8x8xf32>, vector<1x8x8xf32> -> vector<4x8x8xf32>
    "tpu.trace_start"() <{level = 10 : i32, message = "gqe,gke->gqk"}> : () -> ()
    %cst_35 = arith.constant dense<0.000000e+00> : vector<4x8x8xf32>
    %124 = tpu.matmul %105, %114, %cst_35 {dimension_numbers = #tpu.dot_dimension_numbers<[2], [2], [1], [1], [0, 0, 0, 1, 1, 1], [0], [0]>} : vector<4x8x8xf32>, vector<4x8x8xf32>, vector<4x8x8xf32> -> vector<4x8x8xf32>
    "tpu.trace_stop"() : () -> ()
    %cst_36 = arith.constant dense<0xFF800000> : vector<4x8xf32>
    %125 = vector.multi_reduction <maximumf>, %124, %cst_36 [2] : vector<4x8x8xf32> to vector<4x8xf32>
    %126 = vector.shape_cast %125 : vector<4x8xf32> to vector<4x8x1xf32>
    %127 = vector.broadcast %126 : vector<4x8x1xf32> to vector<4x8x8xf32>
    %128 = arith.subf %124, %127 : vector<4x8x8xf32>
    %129 = math.exp %128 : vector<4x8x8xf32>
    %cst_37 = arith.constant dense<0.000000e+00> : vector<4x8xf32>
    %130 = vector.multi_reduction <add>, %129, %cst_37 [2] : vector<4x8x8xf32> to vector<4x8xf32>
    %131 = vector.shape_cast %130 : vector<4x8xf32> to vector<4x8x1xf32>
    %132 = vector.broadcast %131 : vector<4x8x1xf32> to vector<4x8x8xf32>
    %133 = arith.divf %129, %132 : vector<4x8x8xf32>
    "tpu.trace_start"() <{level = 10 : i32, message = "gqk,gke->gqe"}> : () -> ()
    %cst_38 = arith.constant dense<0.000000e+00> : vector<4x8x8xf32>
    %134 = tpu.matmul %133, %123, %cst_38 {dimension_numbers = #tpu.dot_dimension_numbers<[2], [1], [1], [2], [0, 0, 0, 1, 1, 2], [0], [0]>} : vector<4x8x8xf32>, vector<4x8x8xf32>, vector<4x8x8xf32> -> vector<4x8x8xf32>
    "tpu.trace_stop"() : () -> ()
    %135 = vector.extract_strided_slice %134 {offsets = [0, 0, 0], sizes = [1, 8, 8], strides = [1, 1, 1]} : vector<4x8x8xf32> to vector<1x8x8xf32>
    %136 = vector.shape_cast %135 : vector<1x8x8xf32> to vector<8x8xf32>
    %137 = vector.extract_strided_slice %134 {offsets = [1, 0, 0], sizes = [1, 8, 8], strides = [1, 1, 1]} : vector<4x8x8xf32> to vector<1x8x8xf32>
    %138 = vector.shape_cast %137 : vector<1x8x8xf32> to vector<8x8xf32>
    %139 = vector.extract_strided_slice %134 {offsets = [2, 0, 0], sizes = [1, 8, 8], strides = [1, 1, 1]} : vector<4x8x8xf32> to vector<1x8x8xf32>
    %140 = vector.shape_cast %139 : vector<1x8x8xf32> to vector<8x8xf32>
    %141 = vector.extract_strided_slice %134 {offsets = [3, 0, 0], sizes = [1, 8, 8], strides = [1, 1, 1]} : vector<4x8x8xf32> to vector<1x8x8xf32>
    %142 = vector.shape_cast %141 : vector<1x8x8xf32> to vector<8x8xf32>
    %143 = tpu.concatenate %136, %138, %140, %142 in 1 : vector<8x8xf32>, vector<8x8xf32>, vector<8x8xf32>, vector<8x8xf32> -> vector<8x32xf32>
    %c0_39 = arith.constant 0 : index
    %c0_40 = arith.constant 0 : index
    %144 = vector.load %arg11[%c0_39, %c0_40] : memref<32x32xf32, #tpu.memory_space<vmem>>, vector<32x32xf32>
    %cst_41 = arith.constant dense<0.000000e+00> : vector<8x32xf32>
    %145 = tpu.matmul %143, %144, %cst_41 {dimension_numbers = #tpu.dot_dimension_numbers<[1], [0], [0], [1], [0, 0, 1, 1], [], []>} : vector<8x32xf32>, vector<32x32xf32>, vector<8x32xf32> -> vector<8x32xf32>
    %c0_42 = arith.constant 0 : index
    %c0_43 = arith.constant 0 : index
    %146 = vector.load %arg12[%c0_42, %c0_43] : memref<1x32xf32, #tpu.memory_space<vmem>>, vector<1x32xf32>
    %147 = vector.broadcast %146 : vector<1x32xf32> to vector<8x32xf32>
    %148 = arith.addf %145, %147 : vector<8x32xf32>
    %149 = arith.addf %84, %148 : vector<8x32xf32>
    %c0_44 = arith.constant 0 : index
    %c0_45 = arith.constant 0 : index
    %150 = vector.load %arg15[%c0_44, %c0_45] : memref<1x32xf32, #tpu.memory_space<vmem>>, vector<1x32xf32>
    %c0_46 = arith.constant 0 : index
    %c0_47 = arith.constant 0 : index
    %151 = vector.load %arg16[%c0_46, %c0_47] : memref<1x32xf32, #tpu.memory_space<vmem>>, vector<1x32xf32>
    %cst_48 = arith.constant dense<0.000000e+00> : vector<8xf32>
    %152 = vector.multi_reduction <add>, %149, %cst_48 [1] : vector<8x32xf32> to vector<8xf32>
    %153 = vector.shape_cast %152 : vector<8xf32> to vector<8x1xf32>
    %cst_49 = arith.constant 3.200000e+01 : f32
    %154 = vector.broadcast %cst_49 : f32 to vector<8x1xf32>
    %155 = arith.divf %153, %154 : vector<8x1xf32>
    %156 = vector.broadcast %155 : vector<8x1xf32> to vector<8x32xf32>
    %157 = arith.subf %149, %156 : vector<8x32xf32>
    %158 = arith.mulf %157, %157 : vector<8x32xf32>
    %cst_50 = arith.constant dense<0.000000e+00> : vector<8xf32>
    %159 = vector.multi_reduction <add>, %158, %cst_50 [1] : vector<8x32xf32> to vector<8xf32>
    %160 = vector.shape_cast %159 : vector<8xf32> to vector<8x1xf32>
    %cst_51 = arith.constant 3.200000e+01 : f32
    %161 = vector.broadcast %cst_51 : f32 to vector<8x1xf32>
    %162 = arith.divf %160, %161 : vector<8x1xf32>
    %cst_52 = arith.constant 9.99999974E-6 : f32
    %163 = vector.broadcast %cst_52 : f32 to vector<8x1xf32>
    %164 = arith.addf %162, %163 : vector<8x1xf32>
    %165 = math.rsqrt %164 : vector<8x1xf32>
    %166 = vector.broadcast %165 : vector<8x1xf32> to vector<8x32xf32>
    %167 = arith.mulf %157, %166 : vector<8x32xf32>
    %168 = vector.broadcast %150 : vector<1x32xf32> to vector<8x32xf32>
    %169 = arith.mulf %167, %168 : vector<8x32xf32>
    %170 = vector.broadcast %151 : vector<1x32xf32> to vector<8x32xf32>
    %171 = arith.addf %169, %170 : vector<8x32xf32>
    %c0_53 = arith.constant 0 : index
    %c0_54 = arith.constant 0 : index
    %172 = vector.load %arg19[%c0_53, %c0_54] : memref<32x128xf32, #tpu.memory_space<vmem>>, vector<32x128xf32>
    %cst_55 = arith.constant dense<0.000000e+00> : vector<8x128xf32>
    %173 = tpu.matmul %171, %172, %cst_55 {dimension_numbers = #tpu.dot_dimension_numbers<[1], [0], [0], [1], [0, 0, 1, 1], [], []>} : vector<8x32xf32>, vector<32x128xf32>, vector<8x128xf32> -> vector<8x128xf32>
    %c0_56 = arith.constant 0 : index
    %c0_57 = arith.constant 0 : index
    %174 = vector.load %arg20[%c0_56, %c0_57] : memref<1x128xf32, #tpu.memory_space<vmem>>, vector<1x128xf32>
    %175 = vector.broadcast %174 : vector<1x128xf32> to vector<8x128xf32>
    %176 = arith.addf %173, %175 : vector<8x128xf32>
    %cst_58 = arith.constant 0.000000e+00 : f32
    %177 = vector.broadcast %cst_58 : f32 to vector<8x128xf32>
    %178 = arith.maximumf %176, %177 : vector<8x128xf32>
    %c0_59 = arith.constant 0 : index
    %c0_60 = arith.constant 0 : index
    %179 = vector.load %arg21[%c0_59, %c0_60] : memref<128x32xf32, #tpu.memory_space<vmem>>, vector<128x32xf32>
    %cst_61 = arith.constant dense<0.000000e+00> : vector<8x32xf32>
    %180 = tpu.matmul %178, %179, %cst_61 {dimension_numbers = #tpu.dot_dimension_numbers<[1], [0], [0], [1], [0, 0, 1, 1], [], []>} : vector<8x128xf32>, vector<128x32xf32>, vector<8x32xf32> -> vector<8x32xf32>
    %c0_62 = arith.constant 0 : index
    %c0_63 = arith.constant 0 : index
    %181 = vector.load %arg22[%c0_62, %c0_63] : memref<1x32xf32, #tpu.memory_space<vmem>>, vector<1x32xf32>
    %182 = vector.broadcast %181 : vector<1x32xf32> to vector<8x32xf32>
    %183 = arith.addf %180, %182 : vector<8x32xf32>
    %184 = arith.addf %171, %183 : vector<8x32xf32>
    %c0_64 = arith.constant 0 : index
    %c0_65 = arith.constant 0 : index
    %185 = vector.load %arg17[%c0_64, %c0_65] : memref<1x32xf32, #tpu.memory_space<vmem>>, vector<1x32xf32>
    %c0_66 = arith.constant 0 : index
    %c0_67 = arith.constant 0 : index
    %186 = vector.load %arg18[%c0_66, %c0_67] : memref<1x32xf32, #tpu.memory_space<vmem>>, vector<1x32xf32>
    %cst_68 = arith.constant dense<0.000000e+00> : vector<8xf32>
    %187 = vector.multi_reduction <add>, %184, %cst_68 [1] : vector<8x32xf32> to vector<8xf32>
    %188 = vector.shape_cast %187 : vector<8xf32> to vector<8x1xf32>
    %cst_69 = arith.constant 3.200000e+01 : f32
    %189 = vector.broadcast %cst_69 : f32 to vector<8x1xf32>
    %190 = arith.divf %188, %189 : vector<8x1xf32>
    %191 = vector.broadcast %190 : vector<8x1xf32> to vector<8x32xf32>
    %192 = arith.subf %184, %191 : vector<8x32xf32>
    %193 = arith.mulf %192, %192 : vector<8x32xf32>
    %cst_70 = arith.constant dense<0.000000e+00> : vector<8xf32>
    %194 = vector.multi_reduction <add>, %193, %cst_70 [1] : vector<8x32xf32> to vector<8xf32>
    %195 = vector.shape_cast %194 : vector<8xf32> to vector<8x1xf32>
    %cst_71 = arith.constant 3.200000e+01 : f32
    %196 = vector.broadcast %cst_71 : f32 to vector<8x1xf32>
    %197 = arith.divf %195, %196 : vector<8x1xf32>
    %cst_72 = arith.constant 9.99999974E-6 : f32
    %198 = vector.broadcast %cst_72 : f32 to vector<8x1xf32>
    %199 = arith.addf %197, %198 : vector<8x1xf32>
    %200 = math.rsqrt %199 : vector<8x1xf32>
    %201 = vector.broadcast %200 : vector<8x1xf32> to vector<8x32xf32>
    %202 = arith.mulf %192, %201 : vector<8x32xf32>
    %203 = vector.broadcast %185 : vector<1x32xf32> to vector<8x32xf32>
    %204 = arith.mulf %202, %203 : vector<8x32xf32>
    %205 = vector.broadcast %186 : vector<1x32xf32> to vector<8x32xf32>
    %206 = arith.addf %204, %205 : vector<8x32xf32>
    %c0_73 = arith.constant 0 : index
    %c0_74 = arith.constant 0 : index
    %207 = vector.load %arg23[%c0_73, %c0_74] : memref<8x32xf32, #tpu.memory_space<vmem>>, vector<8x32xf32>
    tpu.vector_store %arg23[%c0_73, %c0_74], %206 {strides = array<i32>} : memref<8x32xf32, #tpu.memory_space<vmem>>, vector<8x32xf32>,
    return
  }
  func.func @transform_0(%arg0: i32) -> (i32, i32) {
    %c0_i32 = arith.constant 0 : i32
    %c0_i32_0 = arith.constant 0 : i32
    return %arg0, %c0_i32 : i32, i32
  }
  func.func @transform_1(%arg0: i32) -> (i32, i32) {
    %c0_i32 = arith.constant 0 : i32
    %c0_i32_0 = arith.constant 0 : i32
    return %arg0, %c0_i32 : i32, i32
  }
  func.func @transform_2(%arg0: i32) -> (i32, i32) {
    %c0_i32 = arith.constant 0 : i32
    %c0_i32_0 = arith.constant 0 : i32
    %c0_i32_1 = arith.constant 0 : i32
    return %c0_i32, %c0_i32_0 : i32, i32
  }
  func.func @transform_3(%arg0: i32) -> (i32, i32) {
    %c0_i32 = arith.constant 0 : i32
    %c0_i32_0 = arith.constant 0 : i32
    %c0_i32_1 = arith.constant 0 : i32
    return %c0_i32, %c0_i32_0 : i32, i32
  }
  func.func @transform_4(%arg0: i32) -> (i32, i32) {
    %c0_i32 = arith.constant 0 : i32
    %c0_i32_0 = arith.constant 0 : i32
    %c0_i32_1 = arith.constant 0 : i32
    return %c0_i32, %c0_i32_0 : i32, i32
  }
  func.func @transform_5(%arg0: i32) -> (i32, i32) {
    %c0_i32 = arith.constant 0 : i32
    %c0_i32_0 = arith.constant 0 : i32
    %c0_i32_1 = arith.constant 0 : i32
    return %c0_i32, %c0_i32_0 : i32, i32
  }
  func.func @transform_6(%arg0: i32) -> (i32, i32) {
    %c0_i32 = arith.constant 0 : i32
    %c0_i32_0 = arith.constant 0 : i32
    %c0_i32_1 = arith.constant 0 : i32
    return %c0_i32, %c0_i32_0 : i32, i32
  }
  func.func @transform_7(%arg0: i32) -> (i32, i32) {
    %c0_i32 = arith.constant 0 : i32
    %c0_i32_0 = arith.constant 0 : i32
    %c0_i32_1 = arith.constant 0 : i32
    return %c0_i32, %c0_i32_0 : i32, i32
  }
  func.func @transform_8(%arg0: i32) -> (i32, i32) {
    %c0_i32 = arith.constant 0 : i32
    %c0_i32_0 = arith.constant 0 : i32
    %c0_i32_1 = arith.constant 0 : i32
    return %c0_i32, %c0_i32_0 : i32, i32
  }
  func.func @transform_9(%arg0: i32) -> (i32, i32) {
    %c0_i32 = arith.constant 0 : i32
    %c0_i32_0 = arith.constant 0 : i32
    %c0_i32_1 = arith.constant 0 : i32
    return %c0_i32, %c0_i32_0 : i32, i32
  }
  func.func @transform_10(%arg0: i32) -> (i32, i32) {
    %c0_i32 = arith.constant 0 : i32
    %c0_i32_0 = arith.constant 0 : i32
    %c0_i32_1 = arith.constant 0 : i32
    return %c0_i32, %c0_i32_0 : i32, i32
  }
  func.func @transform_11(%arg0: i32) -> (i32, i32) {
    %c0_i32 = arith.constant 0 : i32
    %c0_i32_0 = arith.constant 0 : i32
    %c0_i32_1 = arith.constant 0 : i32
    return %c0_i32, %c0_i32_0 : i32, i32
  }
  func.func @transform_12(%arg0: i32) -> (i32, i32) {
    %c0_i32 = arith.constant 0 : i32
    %c0_i32_0 = arith.constant 0 : i32
    %c0_i32_1 = arith.constant 0 : i32
    return %c0_i32, %c0_i32_0 : i32, i32
  }
  func.func @transform_13(%arg0: i32) -> (i32, i32) {
    %c0_i32 = arith.constant 0 : i32
    %c0_i32_0 = arith.constant 0 : i32
    %c0_i32_1 = arith.constant 0 : i32
    return %c0_i32, %c0_i32_0 : i32, i32
  }
  func.func @transform_14(%arg0: i32) -> (i32, i32) {
    %c0_i32 = arith.constant 0 : i32
    %c0_i32_0 = arith.constant 0 : i32
    %c0_i32_1 = arith.constant 0 : i32
    return %c0_i32, %c0_i32_0 : i32, i32
  }
  func.func @transform_15(%arg0: i32) -> (i32, i32) {
    %c0_i32 = arith.constant 0 : i32
    %c0_i32_0 = arith.constant 0 : i32
    %c0_i32_1 = arith.constant 0 : i32
    return %c0_i32, %c0_i32_0 : i32, i32
  }
  func.func @transform_16(%arg0: i32) -> (i32, i32) {
    %c0_i32 = arith.constant 0 : i32
    %c0_i32_0 = arith.constant 0 : i32
    %c0_i32_1 = arith.constant 0 : i32
    return %c0_i32, %c0_i32_0 : i32, i32
  }
  func.func @transform_17(%arg0: i32) -> (i32, i32) {
    %c0_i32 = arith.constant 0 : i32
    %c0_i32_0 = arith.constant 0 : i32
    %c0_i32_1 = arith.constant 0 : i32
    return %c0_i32, %c0_i32_0 : i32, i32
  }
  func.func @transform_18(%arg0: i32) -> (i32, i32) {
    %c0_i32 = arith.constant 0 : i32
    %c0_i32_0 = arith.constant 0 : i32
    %c0_i32_1 = arith.constant 0 : i32
    return %c0_i32, %c0_i32_0 : i32, i32
  }
  func.func @transform_19(%arg0: i32) -> (i32, i32) {
    %c0_i32 = arith.constant 0 : i32
    %c0_i32_0 = arith.constant 0 : i32
    %c0_i32_1 = arith.constant 0 : i32
    return %c0_i32, %c0_i32_0 : i32, i32
  }
  func.func @transform_20(%arg0: i32) -> (i32, i32) {
    %c0_i32 = arith.constant 0 : i32
    %c0_i32_0 = arith.constant 0 : i32
    %c0_i32_1 = arith.constant 0 : i32
    return %c0_i32, %c0_i32_0 : i32, i32
  }
  func.func @transform_21(%arg0: i32) -> (i32, i32) {
    %c0_i32 = arith.constant 0 : i32
    %c0_i32_0 = arith.constant 0 : i32
    %c0_i32_1 = arith.constant 0 : i32
    return %c0_i32, %c0_i32_0 : i32, i32
  }
  func.func @transform_22(%arg0: i32) -> (i32, i32) {
    %c0_i32 = arith.constant 0 : i32
    %c0_i32_0 = arith.constant 0 : i32
    return %arg0, %c0_i32 : i32, i32
  }
}

</mosaic_0001>

<llo_original>
// kernel: tpu_custom_call.1
$region0: #{tpu_custom_call.1}
  #allocation0 [shape = 'u32[]', space=smem, size = 0x4, offset = 0x4, fixed_abs, tag = 'smem constant byte address 0x4 - core index']
  #allocation1 [shape = 'u32[144,128]{1,0:T(1,128)}', space=vmem, size = 0x12000, scoped, tag = 'internal scratch']
  %s0 = inlined_call_operand.hbm [shape: f32[16,32], index: 0, kind: input, shape index: {}]
  %s1 = inlined_call_operand.hbm [shape: f32[16,32], index: 1, kind: input, shape index: {}]
  %s2 = inlined_call_operand.vmem [shape: f32[32,96], index: 2, kind: input, shape index: {}]
  %s3 = inlined_call_operand.vmem [shape: f32[1,96], index: 3, kind: input, shape index: {}]
  %s4 = inlined_call_operand.vmem [shape: f32[32,32], index: 4, kind: input, shape index: {}]
  %s5 = inlined_call_operand.vmem [shape: f32[1,32], index: 5, kind: input, shape index: {}]
  %s6 = inlined_call_operand.vmem [shape: f32[32,32], index: 6, kind: input, shape index: {}]
  %s7 = inlined_call_operand.vmem [shape: f32[1,32], index: 7, kind: input, shape index: {}]
  %s8 = inlined_call_operand.vmem [shape: f32[32,64], index: 8, kind: input, shape index: {}]
  %s9 = inlined_call_operand.vmem [shape: f32[1,64], index: 9, kind: input, shape index: {}]
  %s10 = inlined_call_operand.vmem [shape: f32[32,32], index: 10, kind: input, shape index: {}]
  %s11 = inlined_call_operand.hbm [shape: f32[1,32], index: 11, kind: input, shape index: {}]
  %s12 = inlined_call_operand.hbm [shape: f32[1,32], index: 12, kind: input, shape index: {}]
  %s13 = inlined_call_operand.hbm [shape: f32[1,32], index: 13, kind: input, shape index: {}]
  %s14 = inlined_call_operand.hbm [shape: f32[1,32], index: 14, kind: input, shape index: {}]
  %s15 = inlined_call_operand.hbm [shape: f32[1,32], index: 15, kind: input, shape index: {}]
  %s16 = inlined_call_operand.hbm [shape: f32[1,32], index: 16, kind: input, shape index: {}]
  %s17 = inlined_call_operand.hbm [shape: f32[1,32], index: 17, kind: input, shape index: {}]
  %s18 = inlined_call_operand.hbm [shape: f32[32,128], index: 18, kind: input, shape index: {}]
  %s19 = inlined_call_operand.hbm [shape: f32[1,128], index: 19, kind: input, shape index: {}]
  %s20 = inlined_call_operand.vmem [shape: f32[128,32], index: 20, kind: input, shape index: {}]
  %s21 = inlined_call_operand.hbm [shape: f32[1,32], index: 21, kind: input, shape index: {}]
  %s22 = inlined_call_operand.hbm [shape: f32[16,32], index: 22, kind: output, shape index: {}]
  %s23 = sld [smem:[#allocation0]]
  $region169: #{tpu_custom_call.1} parent=0
    _
  %s25 = ssub.s32 1, %s23
  %s26 = scalar_select 0, %s25, %s23
  $region1: #{tpu_custom_call.1} parent=0
    #allocation2 [shape = 'u8[8192]{0}', space=vmem, size = 0x2000, scoped, tag = 'input window, operand 0']
    #allocation3 [shape = 's32[2]{0}', space=sflag, size = 0x8, scoped, tag = 'scoped memory for tpu_custom_call.1']
    #allocation4 [shape = 's32[2]{0}', space=sflag, size = 0x8, scoped, tag = 'scoped memory for tpu_custom_call.1']
    #allocation5 [shape = 'u8[8192]{0}', space=vmem, size = 0x2000, scoped, tag = 'input window, operand 1']
    #allocation6 [shape = 's32[2]{0}', space=sflag, size = 0x8, scoped, tag = 'scoped memory for tpu_custom_call.1']
    #allocation7 [shape = 'u8[512]{0}', space=vmem, size = 0x400, scoped, tag = 'input window, operand 11, single buffered']
    #allocation8 [shape = 'u8[512]{0}', space=vmem, size = 0x400, scoped, tag = 'input window, operand 12, single buffered']
    #allocation9 [shape = 's32[1]{0}', space=sflag, size = 0x4, scoped, tag = 'scoped memory for tpu_custom_call.1']
    #allocation10 [shape = 'u8[512]{0}', space=vmem, size = 0x400, scoped, tag = 'input window, operand 13, single buffered']
    #allocation11 [shape = 'u8[512]{0}', space=vmem, size = 0x400, scoped, tag = 'input window, operand 14, single buffered']
    #allocation12 [shape = 's32[1]{0}', space=sflag, size = 0x4, scoped, tag = 'scoped memory for tpu_custom_call.1']
    #allocation13 [shape = 'u8[512]{0}', space=vmem, size = 0x400, scoped, tag = 'input window, operand 15, single buffered']
    #allocation14 [shape = 'u8[512]{0}', space=vmem, size = 0x400, scoped, tag = 'input window, operand 16, single buffered']
    #allocation15 [shape = 's32[1]{0}', space=sflag, size = 0x4, scoped, tag = 'scoped memory for tpu_custom_call.1']
    #allocation16 [shape = 'u8[512]{0}', space=vmem, size = 0x400, scoped, tag = 'input window, operand 17, single buffered']
    #allocation17 [shape = 'u8[16384]{0}', space=vmem, size = 0x4000, scoped, tag = 'input window, operand 18, single buffered']
    #allocation18 [shape = 's32[1]{0}', space=sflag, size = 0x4, scoped, tag = 'scoped memory for tpu_custom_call.1']
    #allocation19 [shape = 'u8[512]{0}', space=vmem, size = 0x400, scoped, tag = 'input window, operand 19, single buffered']
    #allocation20 [shape = 'u8[512]{0}', space=vmem, size = 0x400, scoped, tag = 'input window, operand 21, single buffered']
    #allocation21 [shape = 's32[1]{0}', space=sflag, size = 0x4, scoped, tag = 'scoped memory for tpu_custom_call.1']
    #allocation22 [shape = 'u8[8192]{0}', space=vmem, size = 0x2000, scoped, tag = 'output window, operand 0']
    %27 = vsyncpa [#allocation3], 0
    %s28 = scalar_lea.sflag [#allocation3], 1
    %29 = vsyncpa %s28, 0
    %30 = vsyncpa [#allocation6], 0
    %s31 = scalar_lea.sflag [#allocation6], 1
    %32 = vsyncpa %s31, 0
    %33 = vsyncpa [#allocation9], 0
    %34 = vsyncpa [#allocation12], 0
    %35 = vsyncpa [#allocation15], 0
    %36 = vsyncpa [#allocation18], 0
    %37 = vsyncpa [#allocation21], 0
    %38 = vsyncpa [#allocation4], 0
    %s39 = scalar_lea.sflag [#allocation4], 1
    %40 = vsyncpa %s39, 0
    loop: start=0, step=1, limit=4
    $region2: #{tpu_custom_call.1} parent=1 // loop_pre_header
      _
    $region3: #{tpu_custom_call.1} parent=1 // loop_header
      %s42 = sphi 0, %s46
      %p43 = scmp.ge.s32.totalorder %s42, 4
      %s52 = sphi 0, %s54
      %s55 = sphi 0, %s52
      %s56 = sphi 0, %s55
      %s72 = sphi 0, %s56
      %s78 = sphi 0, %s80
      %s81 = sphi 0, %s78
      %s82 = sphi 0, %s81
      %s98 = sphi 0, %s82
      %s102 = sphi 0, %s102
      %s104 = sphi 0, %s102
      %s105 = sphi 0, %s104
      %s119 = sphi 0, %s105
      %s123 = sphi 0, %s123
      %s125 = sphi 0, %s123
      %s126 = sphi 0, %s125
      %s140 = sphi 0, %s126
      %s144 = sphi 0, %s144
      %s146 = sphi 0, %s144
      %s147 = sphi 0, %s146
      %s161 = sphi 0, %s147
      %s165 = sphi 0, %s165
      %s167 = sphi 0, %s165
      %s168 = sphi 0, %s167
      %s182 = sphi 0, %s168
      %s186 = sphi 0, %s186
      %s188 = sphi 0, %s186
      %s189 = sphi 0, %s188
      %s203 = sphi 0, %s189
      %s207 = sphi 0, %s207
      %s209 = sphi 0, %s207
      %s210 = sphi 0, %s209
      %s224 = sphi 0, %s210
      %s228 = sphi 0, %s228
      %s230 = sphi 0, %s228
      %s231 = sphi 0, %s230
      %s245 = sphi 0, %s231
      %s249 = sphi 0, %s249
      %s251 = sphi 0, %s249
      %s252 = sphi 0, %s251
      %s266 = sphi 0, %s252
      %s270 = sphi 0, %s270
      %s272 = sphi 0, %s270
      %s273 = sphi 0, %s272
      %s287 = sphi 0, %s273
      %s291 = sphi 0, %s291
      %s293 = sphi 0, %s291
      %s294 = sphi 0, %s293
      %s308 = sphi 0, %s294
      %s312 = sphi 0, %s312
      %s314 = sphi 0, %s312
      %s315 = sphi 0, %s314
      %s329 = sphi 0, %s315
      %s333 = sphi 0, %s333
      %s335 = sphi 0, %s333
      %s336 = sphi 0, %s335
      %s350 = sphi 0, %s336
      %s354 = sphi 0, %s354
      %s356 = sphi 0, %s354
      %s357 = sphi 0, %s356
      %s371 = sphi 0, %s357
      %s375 = sphi 0, %s375
      %s377 = sphi 0, %s375
      %s378 = sphi 0, %s377
      %s392 = sphi 0, %s378
      %s396 = sphi 0, %s396
      %s398 = sphi 0, %s396
      %s399 = sphi 0, %s398
      %s413 = sphi 0, %s399
      %s417 = sphi 0, %s417
      %s419 = sphi 0, %s417
      %s420 = sphi 0, %s419
      %s434 = sphi 0, %s420
      %s438 = sphi 0, %s438
      %s440 = sphi 0, %s438
      %s441 = sphi 0, %s440
      %s455 = sphi 0, %s441
      %s459 = sphi 0, %s459
      %s461 = sphi 0, %s459
      %s462 = sphi 0, %s461
      %s476 = sphi 0, %s462
      %s480 = sphi 0, %s480
      %s482 = sphi 0, %s480
      %s483 = sphi 0, %s482
      %s497 = sphi 0, %s483
      %s501 = sphi 0, %s501
      %s503 = sphi 0, %s501
      %s504 = sphi 0, %s503
      %s518 = sphi 0, %s504
      %s524 = sphi 0, %s526
      %s527 = sphi 0, %s524
      %s528 = sphi 0, %s527
      %s544 = sphi 0, %s528
    $region4: #{tpu_custom_call.1} parent=1 // loop_header_branch
      %45 = sbr.rel (%p43) target = $region8
    $region5: #{tpu_custom_call.1} parent=1 // loop_body
      %s47 = ssub.s32 %s42, 1
      %s48 = ssub.s32 %s42, 2
      %s49 = sadd.s32 %s42, 1
      %s50 = ssub.s32 %s42, %s49
      %p51 = scmp.eq.s32.totalorder %s50, 0
      %s53 = sadd.s32 %s52, 1
      %s54 = scalar_select %p51, %s52, %s53
      %p57 = pneg %p51
      %p58 = scmp.eq.s32.totalorder %s42, 1
      %p59 = por %p57, %p58
      %p60 = scmp.ne.s32.totalorder %s52, %s55
      %p61 = scmp.eq.s32.totalorder %s42, 0
      %p62 = por %p60, %p61
      %p63 = scmp.ne.s32.totalorder %s52, %s55
      %p64 = scmp.eq.s32.totalorder %s47, 1
      %p65 = por %p63, %p64
      %p66 = scmp.ne.s32.totalorder %s55, %s56
      %p67 = scmp.eq.s32.totalorder %s47, 0
      %p68 = por %p66, %p67
      %p69 = scmp.ne.s32.totalorder %s55, %s56
      %p70 = scmp.eq.s32.totalorder %s48, 1
      %p71 = por %p69, %p70
      %p73 = scmp.ne.s32.totalorder %s56, %s72
      %p74 = scmp.eq.s32.totalorder %s48, 0
      %p75 = por %p73, %p74
      %s76 = ssub.s32 %s42, %s49
      %p77 = scmp.eq.s32.totalorder %s76, 0
      %s79 = sadd.s32 %s78, 1
      %s80 = scalar_select %p77, %s78, %s79
      %p83 = pneg %p77
      %p84 = scmp.eq.s32.totalorder %s42, 1
      %p85 = por %p83, %p84
      %p86 = scmp.ne.s32.totalorder %s78, %s81
      %p87 = scmp.eq.s32.totalorder %s42, 0
      %p88 = por %p86, %p87
      %p89 = scmp.ne.s32.totalorder %s78, %s81
      %p90 = scmp.eq.s32.totalorder %s47, 1
      %p91 = por %p89, %p90
      %p92 = scmp.ne.s32.totalorder %s81, %s82
      %p93 = scmp.eq.s32.totalorder %s47, 0
      %p94 = por %p92, %p93
      %p95 = scmp.ne.s32.totalorder %s81, %s82
      %p96 = scmp.eq.s32.totalorder %s48, 1
      %p97 = por %p95, %p96
      %p99 = scmp.ne.s32.totalorder %s82, %s98
      %p100 = scmp.eq.s32.totalorder %s48, 0
      %p101 = por %p99, %p100
      %s103 = sadd.s32 %s102, 1
      %p106 = scmp.eq.s32.totalorder %s42, 1
      %p107 = scmp.ne.s32.totalorder %s102, %s104
      %p108 = scmp.eq.s32.totalorder %s42, 0
      %p109 = por %p107, %p108
      %p110 = scmp.ne.s32.totalorder %s102, %s104
      %p111 = scmp.eq.s32.totalorder %s47, 1
      %p112 = por %p110, %p111
      %p113 = scmp.ne.s32.totalorder %s104, %s105
      %p114 = scmp.eq.s32.totalorder %s47, 0
      %p115 = por %p113, %p114
      %p116 = scmp.ne.s32.totalorder %s104, %s105
      %p117 = scmp.eq.s32.totalorder %s48, 1
      %p118 = por %p116, %p117
      %p120 = scmp.ne.s32.totalorder %s105, %s119
      %p121 = scmp.eq.s32.totalorder %s48, 0
      %p122 = por %p120, %p121
      %s124 = sadd.s32 %s123, 1
      %p127 = scmp.eq.s32.totalorder %s42, 1
      %p128 = scmp.ne.s32.totalorder %s123, %s125
      %p129 = scmp.eq.s32.totalorder %s42, 0
      %p130 = por %p128, %p129
      %p131 = scmp.ne.s32.totalorder %s123, %s125
      %p132 = scmp.eq.s32.totalorder %s47, 1
      %p133 = por %p131, %p132
      %p134 = scmp.ne.s32.totalorder %s125, %s126
      %p135 = scmp.eq.s32.totalorder %s47, 0
      %p136 = por %p134, %p135
      %p137 = scmp.ne.s32.totalorder %s125, %s126
      %p138 = scmp.eq.s32.totalorder %s48, 1
      %p139 = por %p137, %p138
      %p141 = scmp.ne.s32.totalorder %s126, %s140
      %p142 = scmp.eq.s32.totalorder %s48, 0
      %p143 = por %p141, %p142
      %s145 = sadd.s32 %s144, 1
      %p148 = scmp.eq.s32.totalorder %s42, 1
      %p149 = scmp.ne.s32.totalorder %s144, %s146
      %p150 = scmp.eq.s32.totalorder %s42, 0
      %p151 = por %p149, %p150
      %p152 = scmp.ne.s32.totalorder %s144, %s146
      %p153 = scmp.eq.s32.totalorder %s47, 1
      %p154 = por %p152, %p153
      %p155 = scmp.ne.s32.totalorder %s146, %s147
      %p156 = scmp.eq.s32.totalorder %s47, 0
      %p157 = por %p155, %p156
      %p158 = scmp.ne.s32.totalorder %s146, %s147
      %p159 = scmp.eq.s32.totalorder %s48, 1
      %p160 = por %p158, %p159
      %p162 = scmp.ne.s32.totalorder %s147, %s161
      %p163 = scmp.eq.s32.totalorder %s48, 0
      %p164 = por %p162, %p163
      %s166 = sadd.s32 %s165, 1
      %p169 = scmp.eq.s32.totalorder %s42, 1
      %p170 = scmp.ne.s32.totalorder %s165, %s167
      %p171 = scmp.eq.s32.totalorder %s42, 0
      %p172 = por %p170, %p171
      %p173 = scmp.ne.s32.totalorder %s165, %s167
      %p174 = scmp.eq.s32.totalorder %s47, 1
      %p175 = por %p173, %p174
      %p176 = scmp.ne.s32.totalorder %s167, %s168
      %p177 = scmp.eq.s32.totalorder %s47, 0
      %p178 = por %p176, %p177
      %p179 = scmp.ne.s32.totalorder %s167, %s168
      %p180 = scmp.eq.s32.totalorder %s48, 1
      %p181 = por %p179, %p180
      %p183 = scmp.ne.s32.totalorder %s168, %s182
      %p184 = scmp.eq.s32.totalorder %s48, 0
      %p185 = por %p183, %p184
      %s187 = sadd.s32 %s186, 1
      %p190 = scmp.eq.s32.totalorder %s42, 1
      %p191 = scmp.ne.s32.totalorder %s186, %s188
      %p192 = scmp.eq.s32.totalorder %s42, 0
      %p193 = por %p191, %p192
      %p194 = scmp.ne.s32.totalorder %s186, %s188
      %p195 = scmp.eq.s32.totalorder %s47, 1
      %p196 = por %p194, %p195
      %p197 = scmp.ne.s32.totalorder %s188, %s189
      %p198 = scmp.eq.s32.totalorder %s47, 0
      %p199 = por %p197, %p198
      %p200 = scmp.ne.s32.totalorder %s188, %s189
      %p201 = scmp.eq.s32.totalorder %s48, 1
      %p202 = por %p200, %p201
      %p204 = scmp.ne.s32.totalorder %s189, %s203
      %p205 = scmp.eq.s32.totalorder %s48, 0
      %p206 = por %p204, %p205
      %s208 = sadd.s32 %s207, 1
      %p211 = scmp.eq.s32.totalorder %s42, 1
      %p212 = scmp.ne.s32.totalorder %s207, %s209
      %p213 = scmp.eq.s32.totalorder %s42, 0
      %p214 = por %p212, %p213
      %p215 = scmp.ne.s32.totalorder %s207, %s209
      %p216 = scmp.eq.s32.totalorder %s47, 1
      %p217 = por %p215, %p216
      %p218 = scmp.ne.s32.totalorder %s209, %s210
      %p219 = scmp.eq.s32.totalorder %s47, 0
      %p220 = por %p218, %p219
      %p221 = scmp.ne.s32.totalorder %s209, %s210
      %p222 = scmp.eq.s32.totalorder %s48, 1
      %p223 = por %p221, %p222
      %p225 = scmp.ne.s32.totalorder %s210, %s224
      %p226 = scmp.eq.s32.totalorder %s48, 0
      %p227 = por %p225, %p226
      %s229 = sadd.s32 %s228, 1
      %p232 = scmp.eq.s32.totalorder %s42, 1
      %p233 = scmp.ne.s32.totalorder %s228, %s230
      %p234 = scmp.eq.s32.totalorder %s42, 0
      %p235 = por %p233, %p234
      %p236 = scmp.ne.s32.totalorder %s228, %s230
      %p237 = scmp.eq.s32.totalorder %s47, 1
      %p238 = por %p236, %p237
      %p239 = scmp.ne.s32.totalorder %s230, %s231
      %p240 = scmp.eq.s32.totalorder %s47, 0
      %p241 = por %p239, %p240
      %p242 = scmp.ne.s32.totalorder %s230, %s231
      %p243 = scmp.eq.s32.totalorder %s48, 1
      %p244 = por %p242, %p243
      %p246 = scmp.ne.s32.totalorder %s231, %s245
      %p247 = scmp.eq.s32.totalorder %s48, 0
      %p248 = por %p246, %p247
      %s250 = sadd.s32 %s249, 1
      %p253 = scmp.eq.s32.totalorder %s42, 1
      %p254 = scmp.ne.s32.totalorder %s249, %s251
      %p255 = scmp.eq.s32.totalorder %s42, 0
      %p256 = por %p254, %p255
      %p257 = scmp.ne.s32.totalorder %s249, %s251
      %p258 = scmp.eq.s32.totalorder %s47, 1
      %p259 = por %p257, %p258
      %p260 = scmp.ne.s32.totalorder %s251, %s252
      %p261 = scmp.eq.s32.totalorder %s47, 0
      %p262 = por %p260, %p261
      %p263 = scmp.ne.s32.totalorder %s251, %s252
      %p264 = scmp.eq.s32.totalorder %s48, 1
      %p265 = por %p263, %p264
      %p267 = scmp.ne.s32.totalorder %s252, %s266
      %p268 = scmp.eq.s32.totalorder %s48, 0
      %p269 = por %p267, %p268
      %s271 = sadd.s32 %s270, 1
      %p274 = scmp.eq.s32.totalorder %s42, 1
      %p275 = scmp.ne.s32.totalorder %s270, %s272
      %p276 = scmp.eq.s32.totalorder %s42, 0
      %p277 = por %p275, %p276
      %p278 = scmp.ne.s32.totalorder %s270, %s272
      %p279 = scmp.eq.s32.totalorder %s47, 1
      %p280 = por %p278, %p279
      %p281 = scmp.ne.s32.totalorder %s272, %s273
      %p282 = scmp.eq.s32.totalorder %s47, 0
      %p283 = por %p281, %p282
      %p284 = scmp.ne.s32.totalorder %s272, %s273
      %p285 = scmp.eq.s32.totalorder %s48, 1
      %p286 = por %p284, %p285
      %p288 = scmp.ne.s32.totalorder %s273, %s287
      %p289 = scmp.eq.s32.totalorder %s48, 0
      %p290 = por %p288, %p289
      %s292 = sadd.s32 %s291, 1
      %p295 = scmp.eq.s32.totalorder %s42, 1
      %p296 = scmp.ne.s32.totalorder %s291, %s293
      %p297 = scmp.eq.s32.totalorder %s42, 0
      %p298 = por %p296, %p297
      %p299 = scmp.ne.s32.totalorder %s291, %s293
      %p300 = scmp.eq.s32.totalorder %s47, 1
      %p301 = por %p299, %p300
      %p302 = scmp.ne.s32.totalorder %s293, %s294
      %p303 = scmp.eq.s32.totalorder %s47, 0
      %p304 = por %p302, %p303
      %p305 = scmp.ne.s32.totalorder %s293, %s294
      %p306 = scmp.eq.s32.totalorder %s48, 1
      %p307 = por %p305, %p306
      %p309 = scmp.ne.s32.totalorder %s294, %s308
      %p310 = scmp.eq.s32.totalorder %s48, 0
      %p311 = por %p309, %p310
      %s313 = sadd.s32 %s312, 1
      %p316 = scmp.eq.s32.totalorder %s42, 1
      %p317 = scmp.ne.s32.totalorder %s312, %s314
      %p318 = scmp.eq.s32.totalorder %s42, 0
      %p319 = por %p317, %p318
      %p320 = scmp.ne.s32.totalorder %s312, %s314
      %p321 = scmp.eq.s32.totalorder %s47, 1
      %p322 = por %p320, %p321
      %p323 = scmp.ne.s32.totalorder %s314, %s315
      %p324 = scmp.eq.s32.totalorder %s47, 0
      %p325 = por %p323, %p324
      %p326 = scmp.ne.s32.totalorder %s314, %s315
      %p327 = scmp.eq.s32.totalorder %s48, 1
      %p328 = por %p326, %p327
      %p330 = scmp.ne.s32.totalorder %s315, %s329
      %p331 = scmp.eq.s32.totalorder %s48, 0
      %p332 = por %p330, %p331
      %s334 = sadd.s32 %s333, 1
      %p337 = scmp.eq.s32.totalorder %s42, 1
      %p338 = scmp.ne.s32.totalorder %s333, %s335
      %p339 = scmp.eq.s32.totalorder %s42, 0
      %p340 = por %p338, %p339
      %p341 = scmp.ne.s32.totalorder %s333, %s335
      %p342 = scmp.eq.s32.totalorder %s47, 1
      %p343 = por %p341, %p342
      %p344 = scmp.ne.s32.totalorder %s335, %s336
      %p345 = scmp.eq.s32.totalorder %s47, 0
      %p346 = por %p344, %p345
      %p347 = scmp.ne.s32.totalorder %s335, %s336
      %p348 = scmp.eq.s32.totalorder %s48, 1
      %p349 = por %p347, %p348
      %p351 = scmp.ne.s32.totalorder %s336, %s350
      %p352 = scmp.eq.s32.totalorder %s48, 0
      %p353 = por %p351, %p352
      %s355 = sadd.s32 %s354, 1
      %p358 = scmp.eq.s32.totalorder %s42, 1
      %p359 = scmp.ne.s32.totalorder %s354, %s356
      %p360 = scmp.eq.s32.totalorder %s42, 0
      %p361 = por %p359, %p360
      %p362 = scmp.ne.s32.totalorder %s354, %s356
      %p363 = scmp.eq.s32.totalorder %s47, 1
      %p364 = por %p362, %p363
      %p365 = scmp.ne.s32.totalorder %s356, %s357
      %p366 = scmp.eq.s32.totalorder %s47, 0
      %p367 = por %p365, %p366
      %p368 = scmp.ne.s32.totalorder %s356, %s357
      %p369 = scmp.eq.s32.totalorder %s48, 1
      %p370 = por %p368, %p369
      %p372 = scmp.ne.s32.totalorder %s357, %s371
      %p373 = scmp.eq.s32.totalorder %s48, 0
      %p374 = por %p372, %p373
      %s376 = sadd.s32 %s375, 1
      %p379 = scmp.eq.s32.totalorder %s42, 1
      %p380 = scmp.ne.s32.totalorder %s375, %s377
      %p381 = scmp.eq.s32.totalorder %s42, 0
      %p382 = por %p380, %p381
      %p383 = scmp.ne.s32.totalorder %s375, %s377
      %p384 = scmp.eq.s32.totalorder %s47, 1
      %p385 = por %p383, %p384
      %p386 = scmp.ne.s32.totalorder %s377, %s378
      %p387 = scmp.eq.s32.totalorder %s47, 0
      %p388 = por %p386, %p387
      %p389 = scmp.ne.s32.totalorder %s377, %s378
      %p390 = scmp.eq.s32.totalorder %s48, 1
      %p391 = por %p389, %p390
      %p393 = scmp.ne.s32.totalorder %s378, %s392
      %p394 = scmp.eq.s32.totalorder %s48, 0
      %p395 = por %p393, %p394
      %s397 = sadd.s32 %s396, 1
      %p400 = scmp.eq.s32.totalorder %s42, 1
      %p401 = scmp.ne.s32.totalorder %s396, %s398
      %p402 = scmp.eq.s32.totalorder %s42, 0
      %p403 = por %p401, %p402
      %p404 = scmp.ne.s32.totalorder %s396, %s398
      %p405 = scmp.eq.s32.totalorder %s47, 1
      %p406 = por %p404, %p405
      %p407 = scmp.ne.s32.totalorder %s398, %s399
      %p408 = scmp.eq.s32.totalorder %s47, 0
      %p409 = por %p407, %p408
      %p410 = scmp.ne.s32.totalorder %s398, %s399
      %p411 = scmp.eq.s32.totalorder %s48, 1
      %p412 = por %p410, %p411
      %p414 = scmp.ne.s32.totalorder %s399, %s413
      %p415 = scmp.eq.s32.totalorder %s48, 0
      %p416 = por %p414, %p415
      %s418 = sadd.s32 %s417, 1
      %p421 = scmp.eq.s32.totalorder %s42, 1
      %p422 = scmp.ne.s32.totalorder %s417, %s419
      %p423 = scmp.eq.s32.totalorder %s42, 0
      %p424 = por %p422, %p423
      %p425 = scmp.ne.s32.totalorder %s417, %s419
      %p426 = scmp.eq.s32.totalorder %s47, 1
      %p427 = por %p425, %p426
      %p428 = scmp.ne.s32.totalorder %s419, %s420
      %p429 = scmp.eq.s32.totalorder %s47, 0
      %p430 = por %p428, %p429
      %p431 = scmp.ne.s32.totalorder %s419, %s420
      %p432 = scmp.eq.s32.totalorder %s48, 1
      %p433 = por %p431, %p432
      %p435 = scmp.ne.s32.totalorder %s420, %s434
      %p436 = scmp.eq.s32.totalorder %s48, 0
      %p437 = por %p435, %p436
      %s439 = sadd.s32 %s438, 1
      %p442 = scmp.eq.s32.totalorder %s42, 1
      %p443 = scmp.ne.s32.totalorder %s438, %s440
      %p444 = scmp.eq.s32.totalorder %s42, 0
      %p445 = por %p443, %p444
      %p446 = scmp.ne.s32.totalorder %s438, %s440
      %p447 = scmp.eq.s32.totalorder %s47, 1
      %p448 = por %p446, %p447
      %p449 = scmp.ne.s32.totalorder %s440, %s441
      %p450 = scmp.eq.s32.totalorder %s47, 0
      %p451 = por %p449, %p450
      %p452 = scmp.ne.s32.totalorder %s440, %s441
      %p453 = scmp.eq.s32.totalorder %s48, 1
      %p454 = por %p452, %p453
      %p456 = scmp.ne.s32.totalorder %s441, %s455
      %p457 = scmp.eq.s32.totalorder %s48, 0
      %p458 = por %p456, %p457
      %s460 = sadd.s32 %s459, 1
      %p463 = scmp.eq.s32.totalorder %s42, 1
      %p464 = scmp.ne.s32.totalorder %s459, %s461
      %p465 = scmp.eq.s32.totalorder %s42, 0
      %p466 = por %p464, %p465
      %p467 = scmp.ne.s32.totalorder %s459, %s461
      %p468 = scmp.eq.s32.totalorder %s47, 1
      %p469 = por %p467, %p468
      %p470 = scmp.ne.s32.totalorder %s461, %s462
      %p471 = scmp.eq.s32.totalorder %s47, 0
      %p472 = por %p470, %p471
      %p473 = scmp.ne.s32.totalorder %s461, %s462
      %p474 = scmp.eq.s32.totalorder %s48, 1
      %p475 = por %p473, %p474
      %p477 = scmp.ne.s32.totalorder %s462, %s476
      %p478 = scmp.eq.s32.totalorder %s48, 0
      %p479 = por %p477, %p478
      %s481 = sadd.s32 %s480, 1
      %p484 = scmp.eq.s32.totalorder %s42, 1
      %p485 = scmp.ne.s32.totalorder %s480, %s482
      %p486 = scmp.eq.s32.totalorder %s42, 0
      %p487 = por %p485, %p486
      %p488 = scmp.ne.s32.totalorder %s480, %s482
      %p489 = scmp.eq.s32.totalorder %s47, 1
      %p490 = por %p488, %p489
      %p491 = scmp.ne.s32.totalorder %s482, %s483
      %p492 = scmp.eq.s32.totalorder %s47, 0
      %p493 = por %p491, %p492
      %p494 = scmp.ne.s32.totalorder %s482, %s483
      %p495 = scmp.eq.s32.totalorder %s48, 1
      %p496 = por %p494, %p495
      %p498 = scmp.ne.s32.totalorder %s483, %s497
      %p499 = scmp.eq.s32.totalorder %s48, 0
      %p500 = por %p498, %p499
      %s502 = sadd.s32 %s501, 1
      %p505 = scmp.eq.s32.totalorder %s42, 1
      %p506 = scmp.ne.s32.totalorder %s501, %s503
      %p507 = scmp.eq.s32.totalorder %s42, 0
      %p508 = por %p506, %p507
      %p509 = scmp.ne.s32.totalorder %s501, %s503
      %p510 = scmp.eq.s32.totalorder %s47, 1
      %p511 = por %p509, %p510
      %p512 = scmp.ne.s32.totalorder %s503, %s504
      %p513 = scmp.eq.s32.totalorder %s47, 0
      %p514 = por %p512, %p513
      %p515 = scmp.ne.s32.totalorder %s503, %s504
      %p516 = scmp.eq.s32.totalorder %s48, 1
      %p517 = por %p515, %p516
      %p519 = scmp.ne.s32.totalorder %s504, %s518
      %p520 = scmp.eq.s32.totalorder %s48, 0
      %p521 = por %p519, %p520
      %s522 = ssub.s32 %s42, %s49
      %p523 = scmp.eq.s32.totalorder %s522, 0
      %s525 = sadd.s32 %s524, 1
      %s526 = scalar_select %p523, %s524, %s525
      %p529 = pneg %p523
      %p530 = scmp.eq.s32.totalorder %s42, 1
      %p531 = por %p529, %p530
      %p532 = scmp.ne.s32.totalorder %s524, %s527
      %p533 = scmp.eq.s32.totalorder %s42, 0
      %p534 = por %p532, %p533
      %p535 = scmp.ne.s32.totalorder %s524, %s527
      %p536 = scmp.eq.s32.totalorder %s47, 1
      %p537 = por %p535, %p536
      %p538 = scmp.ne.s32.totalorder %s527, %s528
      %p539 = scmp.eq.s32.totalorder %s47, 0
      %p540 = por %p538, %p539
      %p541 = scmp.ne.s32.totalorder %s527, %s528
      %p542 = scmp.eq.s32.totalorder %s48, 1
      %p543 = por %p541, %p542
      %p545 = scmp.ne.s32.totalorder %s528, %s544
      %p546 = scmp.eq.s32.totalorder %s48, 0
      %p547 = por %p545, %p546
      %p548 = scmp.le.s32.totalorder 1, %s42
      %p549 = scmp.lt.s32.totalorder %s42, 3
      %p550 = pnand %p548, %p549
      %p551 = pneg %p550
      // Predicated region
      $region9: #{tpu_custom_call.1} parent=5 // pred_check
        _
      $region10: #{tpu_custom_call.1} parent=5 // pred_check_branch
        %553 = sbr.rel (%p550) target = $region12
      $region11: #{tpu_custom_call.1} parent=5 // pred_region
        %s554 = ssub.s32 %s42, 1
        // Predicated region
        $region13: #{tpu_custom_call.1} parent=11 // pred_check
          %p555 = pneg %p115
        $region14: #{tpu_custom_call.1} parent=11 // pred_check_branch
          %557 = sbr.rel (%p555) target = $region16
        $region15: #{tpu_custom_call.1} parent=11 // pred_region
          _
        $region16: #{tpu_custom_call.1} parent=11 // pred_fallthru
          _
        // Predicated region
        $region17: #{tpu_custom_call.1} parent=11 // pred_check
          %p558 = pneg %p136
        $region18: #{tpu_custom_call.1} parent=11 // pred_check_branch
          %560 = sbr.rel (%p558) target = $region20
        $region19: #{tpu_custom_call.1} parent=11 // pred_region
          _
        $region20: #{tpu_custom_call.1} parent=11 // pred_fallthru
          _
        // Predicated region
        $region21: #{tpu_custom_call.1} parent=11 // pred_check
          %p561 = pneg %p157
        $region22: #{tpu_custom_call.1} parent=11 // pred_check_branch
          %563 = sbr.rel (%p561) target = $region24
        $region23: #{tpu_custom_call.1} parent=11 // pred_region
          _
        $region24: #{tpu_custom_call.1} parent=11 // pred_fallthru
          _
        // Predicated region
        $region25: #{tpu_custom_call.1} parent=11 // pred_check
          %p564 = pneg %p178
        $region26: #{tpu_custom_call.1} parent=11 // pred_check_branch
          %566 = sbr.rel (%p564) target = $region28
        $region27: #{tpu_custom_call.1} parent=11 // pred_region
          _
        $region28: #{tpu_custom_call.1} parent=11 // pred_fallthru
          _
        // Predicated region
        $region29: #{tpu_custom_call.1} parent=11 // pred_check
          %p567 = pneg %p199
        $region30: #{tpu_custom_call.1} parent=11 // pred_check_branch
          %569 = sbr.rel (%p567) target = $region32
        $region31: #{tpu_custom_call.1} parent=11 // pred_region
          _
        $region32: #{tpu_custom_call.1} parent=11 // pred_fallthru
          _
        // Predicated region
        $region33: #{tpu_custom_call.1} parent=11 // pred_check
          %p570 = pneg %p220
        $region34: #{tpu_custom_call.1} parent=11 // pred_check_branch
          %572 = sbr.rel (%p570) target = $region36
        $region35: #{tpu_custom_call.1} parent=11 // pred_region
          _
        $region36: #{tpu_custom_call.1} parent=11 // pred_fallthru
          _
        // Predicated region
        $region37: #{tpu_custom_call.1} parent=11 // pred_check
          %p573 = pneg %p241
        $region38: #{tpu_custom_call.1} parent=11 // pred_check_branch
          %575 = sbr.rel (%p573) target = $region40
        $region39: #{tpu_custom_call.1} parent=11 // pred_region
          _
        $region40: #{tpu_custom_call.1} parent=11 // pred_fallthru
          _
        // Predicated region
        $region41: #{tpu_custom_call.1} parent=11 // pred_check
          %p576 = pneg %p262
        $region42: #{tpu_custom_call.1} parent=11 // pred_check_branch
          %578 = sbr.rel (%p576) target = $region44
        $region43: #{tpu_custom_call.1} parent=11 // pred_region
          _
        $region44: #{tpu_custom_call.1} parent=11 // pred_fallthru
          _
        // Predicated region
        $region45: #{tpu_custom_call.1} parent=11 // pred_check
          %p579 = pneg %p283
        $region46: #{tpu_custom_call.1} parent=11 // pred_check_branch
          %581 = sbr.rel (%p579) target = $region48
        $region47: #{tpu_custom_call.1} parent=11 // pred_region
          _
        $region48: #{tpu_custom_call.1} parent=11 // pred_fallthru
          _
        // Predicated region
        $region49: #{tpu_custom_call.1} parent=11 // pred_check
          %p582 = pneg %p304
        $region50: #{tpu_custom_call.1} parent=11 // pred_check_branch
          %584 = sbr.rel (%p582) target = $region52
        $region51: #{tpu_custom_call.1} parent=11 // pred_region
          %s586 = ssub.s32 16, 16
          %587 = vsyncadd [#allocation6], %s586
          %s589 = sshll.u32 [#allocation7], 4
          %s590 = int_to_ptr.vmem [resolvable:$true] %s589
          %592 = dma.hbm_to_vmem [thread:$0]  %s11, 16, %s590, [#allocation6]
        $region52: #{tpu_custom_call.1} parent=11 // pred_fallthru
          _
        // Predicated region
        $region53: #{tpu_custom_call.1} parent=11 // pred_check
          %p593 = pneg %p325
        $region54: #{tpu_custom_call.1} parent=11 // pred_check_branch
          %595 = sbr.rel (%p593) target = $region56
        $region55: #{tpu_custom_call.1} parent=11 // pred_region
          %s597 = ssub.s32 16, 16
          %598 = vsyncadd [#allocation9], %s597
          %s600 = sshll.u32 [#allocation8], 4
          %s601 = int_to_ptr.vmem [resolvable:$true] %s600
          %603 = dma.hbm_to_vmem [thread:$0]  %s12, 16, %s601, [#allocation9]
        $region56: #{tpu_custom_call.1} parent=11 // pred_fallthru
          _
        // Predicated region
        $region57: #{tpu_custom_call.1} parent=11 // pred_check
          %p604 = pneg %p346
        $region58: #{tpu_custom_call.1} parent=11 // pred_check_branch
          %606 = sbr.rel (%p604) target = $region60
        $region59: #{tpu_custom_call.1} parent=11 // pred_region
          %s608 = ssub.s32 16, 16
          %609 = vsyncadd [#allocation9], %s608
          %s611 = sshll.u32 [#allocation10], 4
          %s612 = int_to_ptr.vmem [resolvable:$true] %s611
          %614 = dma.hbm_to_vmem [thread:$0]  %s13, 16, %s612, [#allocation9]
        $region60: #{tpu_custom_call.1} parent=11 // pred_fallthru
          _
        // Predicated region
        $region61: #{tpu_custom_call.1} parent=11 // pred_check
          %p615 = pneg %p367
        $region62: #{tpu_custom_call.1} parent=11 // pred_check_branch
          %617 = sbr.rel (%p615) target = $region64
        $region63: #{tpu_custom_call.1} parent=11 // pred_region
          %s619 = ssub.s32 16, 16
          %620 = vsyncadd [#allocation12], %s619
          %s622 = sshll.u32 [#allocation11], 4
          %s623 = int_to_ptr.vmem [resolvable:$true] %s622
          %625 = dma.hbm_to_vmem [thread:$0]  %s14, 16, %s623, [#allocation12]
        $region64: #{tpu_custom_call.1} parent=11 // pred_fallthru
          _
        // Predicated region
        $region65: #{tpu_custom_call.1} parent=11 // pred_check
          %p626 = pneg %p388
        $region66: #{tpu_custom_call.1} parent=11 // pred_check_branch
          %628 = sbr.rel (%p626) target = $region68
        $region67: #{tpu_custom_call.1} parent=11 // pred_region
          %s630 = ssub.s32 16, 16
          %631 = vsyncadd [#allocation12], %s630
          %s633 = sshll.u32 [#allocation13], 4
          %s634 = int_to_ptr.vmem [resolvable:$true] %s633
          %636 = dma.hbm_to_vmem [thread:$0]  %s15, 16, %s634, [#allocation12]
        $region68: #{tpu_custom_call.1} parent=11 // pred_fallthru
          _
        // Predicated region
        $region69: #{tpu_custom_call.1} parent=11 // pred_check
          %p637 = pneg %p409
        $region70: #{tpu_custom_call.1} parent=11 // pred_check_branch
          %639 = sbr.rel (%p637) target = $region72
        $region71: #{tpu_custom_call.1} parent=11 // pred_region
          %s641 = ssub.s32 16, 16
          %642 = vsyncadd [#allocation15], %s641
          %s644 = sshll.u32 [#allocation14], 4
          %s645 = int_to_ptr.vmem [resolvable:$true] %s644
          %647 = dma.hbm_to_vmem [thread:$0]  %s16, 16, %s645, [#allocation15]
        $region72: #{tpu_custom_call.1} parent=11 // pred_fallthru
          _
        // Predicated region
        $region73: #{tpu_custom_call.1} parent=11 // pred_check
          %p648 = pneg %p430
        $region74: #{tpu_custom_call.1} parent=11 // pred_check_branch
          %650 = sbr.rel (%p648) target = $region76
        $region75: #{tpu_custom_call.1} parent=11 // pred_region
          %s652 = ssub.s32 16, 16
          %653 = vsyncadd [#allocation15], %s652
          %s655 = sshll.u32 [#allocation16], 4
          %s656 = int_to_ptr.vmem [resolvable:$true] %s655
          %658 = dma.hbm_to_vmem [thread:$0]  %s17, 16, %s656, [#allocation15]
        $region76: #{tpu_custom_call.1} parent=11 // pred_fallthru
          _
        // Predicated region
        $region77: #{tpu_custom_call.1} parent=11 // pred_check
          %p659 = pneg %p451
        $region78: #{tpu_custom_call.1} parent=11 // pred_check_branch
          %661 = sbr.rel (%p659) target = $region80
        $region79: #{tpu_custom_call.1} parent=11 // pred_region
          %s663 = ssub.s32 512, 512
          %664 = vsyncadd [#allocation18], %s663
          %s665 = sshll.u32 [#allocation17], 4
          %s666 = int_to_ptr.vmem [resolvable:$true] %s665
          %671 = dma.hbm_to_vmem [thread:$0]  %s18, 512, %s666, [#allocation18], 128, 128, 8
        $region80: #{tpu_custom_call.1} parent=11 // pred_fallthru
          _
        // Predicated region
        $region81: #{tpu_custom_call.1} parent=11 // pred_check
          %p672 = pneg %p472
        $region82: #{tpu_custom_call.1} parent=11 // pred_check_branch
          %674 = sbr.rel (%p672) target = $region84
        $region83: #{tpu_custom_call.1} parent=11 // pred_region
          %s676 = ssub.s32 16, 16
          %677 = vsyncadd [#allocation18], %s676
          %s679 = sshll.u32 [#allocation19], 4
          %s680 = int_to_ptr.vmem [resolvable:$true] %s679
          %682 = dma.hbm_to_vmem [thread:$0]  %s19, 16, %s680, [#allocation18]
        $region84: #{tpu_custom_call.1} parent=11 // pred_fallthru
          _
        // Predicated region
        $region85: #{tpu_custom_call.1} parent=11 // pred_check
          %p683 = pneg %p493
        $region86: #{tpu_custom_call.1} parent=11 // pred_check_branch
          %685 = sbr.rel (%p683) target = $region88
        $region87: #{tpu_custom_call.1} parent=11 // pred_region
          _
        $region88: #{tpu_custom_call.1} parent=11 // pred_fallthru
          _
        // Predicated region
        $region89: #{tpu_custom_call.1} parent=11 // pred_check
          %p686 = pneg %p514
        $region90: #{tpu_custom_call.1} parent=11 // pred_check_branch
          %688 = sbr.rel (%p686) target = $region92
        $region91: #{tpu_custom_call.1} parent=11 // pred_region
          %s690 = ssub.s32 16, 16
          %691 = vsyncadd [#allocation21], %s690
          %s693 = sshll.u32 [#allocation20], 4
          %s694 = int_to_ptr.vmem [resolvable:$true] %s693
          %696 = dma.hbm_to_vmem [thread:$0]  %s21, 16, %s694, [#allocation21]
        $region92: #{tpu_custom_call.1} parent=11 // pred_fallthru
          _
      $region12: #{tpu_custom_call.1} parent=5 // pred_fallthru
        _
      %p697 = scmp.lt.s32.totalorder %s42, 2
      // Predicated region
      $region93: #{tpu_custom_call.1} parent=5 // pred_check
        %p698 = pneg %p697
      $region94: #{tpu_custom_call.1} parent=5 // pred_check_branch
        %700 = sbr.rel (%p698) target = $region96
      $region95: #{tpu_custom_call.1} parent=5 // pred_region
        // Predicated region
        $region97: #{tpu_custom_call.1} parent=95 // pred_check
          %p701 = pneg %p62
        $region98: #{tpu_custom_call.1} parent=95 // pred_check_branch
          %703 = sbr.rel (%p701) target = $region100
        $region99: #{tpu_custom_call.1} parent=95 // pred_region
          %s704 = sand.u32 %s52, 1
          %s705 = scalar_lea.sflag [#allocation3], %s704
          %s706 = sand.u32 %s52, 1
          %s707 = smul.addr %s706, 8
          %s708 = scalar_lea.vmem [#allocation2], %s707
          %s710 = ssub.s32 128, 128
          %711 = vsyncadd %s705, %s710
          %s712 = smul.addr %s42, 128
          %s713 = scalar_lea.hbm %s0, %s712
          %s715 = sshll.u32 %s708, 4
          %s716 = int_to_ptr.vmem [resolvable:$true] %s715
          %718 = dma.hbm_to_vmem [thread:$0]  %s713, 128, %s716, %s705
        $region100: #{tpu_custom_call.1} parent=95 // pred_fallthru
          _
        // Predicated region
        $region101: #{tpu_custom_call.1} parent=95 // pred_check
          %p719 = pneg %p88
        $region102: #{tpu_custom_call.1} parent=95 // pred_check_branch
          %721 = sbr.rel (%p719) target = $region104
        $region103: #{tpu_custom_call.1} parent=95 // pred_region
          %s722 = sand.u32 %s42, 1
          %s723 = scalar_lea.sflag [#allocation6], %s722
          %s724 = sand.u32 %s78, 1
          %s725 = smul.addr %s724, 8
          %s726 = scalar_lea.vmem [#allocation5], %s725
          %s728 = ssub.s32 128, 128
          %729 = vsyncadd %s723, %s728
          %s730 = smul.addr %s42, 128
          %s731 = scalar_lea.hbm %s1, %s730
          %s733 = sshll.u32 %s726, 4
          %s734 = int_to_ptr.vmem [resolvable:$true] %s733
          %736 = dma.hbm_to_vmem [thread:$0]  %s731, 128, %s734, %s723
        $region104: #{tpu_custom_call.1} parent=95 // pred_fallthru
          _
      $region96: #{tpu_custom_call.1} parent=5 // pred_fallthru
        _
      %p737 = scmp.le.s32.totalorder 1, %s42
      %p738 = scmp.lt.s32.totalorder %s42, 3
      %p739 = pnand %p737, %p738
      %p740 = pneg %p739
      // Predicated region
      $region105: #{tpu_custom_call.1} parent=5 // pred_check
        _
      $region106: #{tpu_custom_call.1} parent=5 // pred_check_branch
        %742 = sbr.rel (%p739) target = $region108
      $region107: #{tpu_custom_call.1} parent=5 // pred_region
        %s743 = ssub.s32 %s42, 1
        %s744 = sand.u32 %s55, 1
        %s745 = scalar_lea.sflag [#allocation3], %s744
        %s746 = sand.u32 %s55, 1
        %s747 = smul.addr %s746, 8
        %s748 = scalar_lea.vmem [#allocation2], %s747
        // Predicated region
        $region109: #{tpu_custom_call.1} parent=107 // pred_check
          %p749 = pneg %p68
        $region110: #{tpu_custom_call.1} parent=107 // pred_check_branch
          %751 = sbr.rel (%p749) target = $region112
        $region111: #{tpu_custom_call.1} parent=107 // pred_region
          %752 = dma.done %s745, 128
        $region112: #{tpu_custom_call.1} parent=107 // pred_fallthru
          _
        %s753 = sand.u32 %s47, 1
        %s754 = scalar_lea.sflag [#allocation6], %s753
        %s755 = sand.u32 %s81, 1
        %s756 = smul.addr %s755, 8
        %s757 = scalar_lea.vmem [#allocation5], %s756
        // Predicated region
        $region113: #{tpu_custom_call.1} parent=107 // pred_check
          %p758 = pneg %p94
        $region114: #{tpu_custom_call.1} parent=107 // pred_check_branch
          %760 = sbr.rel (%p758) target = $region116
        $region115: #{tpu_custom_call.1} parent=107 // pred_region
          %761 = dma.done %s754, 128
        $region116: #{tpu_custom_call.1} parent=107 // pred_fallthru
          _
        // Predicated region
        $region117: #{tpu_custom_call.1} parent=107 // pred_check
          %p762 = pneg %p304
        $region118: #{tpu_custom_call.1} parent=107 // pred_check_branch
          %764 = sbr.rel (%p762) target = $region120
        $region119: #{tpu_custom_call.1} parent=107 // pred_region
          %765 = dma.done [#allocation6], 16
        $region120: #{tpu_custom_call.1} parent=107 // pred_fallthru
          _
        // Predicated region
        $region121: #{tpu_custom_call.1} parent=107 // pred_check
          %p766 = pneg %p325
        $region122: #{tpu_custom_call.1} parent=107 // pred_check_branch
          %768 = sbr.rel (%p766) target = $region124
        $region123: #{tpu_custom_call.1} parent=107 // pred_region
          %769 = dma.done [#allocation9], 16
        $region124: #{tpu_custom_call.1} parent=107 // pred_fallthru
          _
        // Predicated region
        $region125: #{tpu_custom_call.1} parent=107 // pred_check
          %p770 = pneg %p346
        $region126: #{tpu_custom_call.1} parent=107 // pred_check_branch
          %772 = sbr.rel (%p770) target = $region128
        $region127: #{tpu_custom_call.1} parent=107 // pred_region
          %773 = dma.done [#allocation9], 16
        $region128: #{tpu_custom_call.1} parent=107 // pred_fallthru
          _
        // Predicated region
        $region129: #{tpu_custom_call.1} parent=107 // pred_check
          %p774 = pneg %p367
        $region130: #{tpu_custom_call.1} parent=107 // pred_check_branch
          %776 = sbr.rel (%p774) target = $region132
        $region131: #{tpu_custom_call.1} parent=107 // pred_region
          %777 = dma.done [#allocation12], 16
        $region132: #{tpu_custom_call.1} parent=107 // pred_fallthru
          _
        // Predicated region
        $region133: #{tpu_custom_call.1} parent=107 // pred_check
          %p778 = pneg %p388
        $region134: #{tpu_custom_call.1} parent=107 // pred_check_branch
          %780 = sbr.rel (%p778) target = $region136
        $region135: #{tpu_custom_call.1} parent=107 // pred_region
          %781 = dma.done [#allocation12], 16
        $region136: #{tpu_custom_call.1} parent=107 // pred_fallthru
          _
        // Predicated region
        $region137: #{tpu_custom_call.1} parent=107 // pred_check
          %p782 = pneg %p409
        $region138: #{tpu_custom_call.1} parent=107 // pred_check_branch
          %784 = sbr.rel (%p782) target = $region140
        $region139: #{tpu_custom_call.1} parent=107 // pred_region
          %785 = dma.done [#allocation15], 16
        $region140: #{tpu_custom_call.1} parent=107 // pred_fallthru
          _
        // Predicated region
        $region141: #{tpu_custom_call.1} parent=107 // pred_check
          %p786 = pneg %p430
        $region142: #{tpu_custom_call.1} parent=107 // pred_check_branch
          %788 = sbr.rel (%p786) target = $region144
        $region143: #{tpu_custom_call.1} parent=107 // pred_region
          %789 = dma.done [#allocation15], 16
        $region144: #{tpu_custom_call.1} parent=107 // pred_fallthru
          _
        // Predicated region
        $region145: #{tpu_custom_call.1} parent=107 // pred_check
          %p790 = pneg %p451
        $region146: #{tpu_custom_call.1} parent=107 // pred_check_branch
          %792 = sbr.rel (%p790) target = $region148
        $region147: #{tpu_custom_call.1} parent=107 // pred_region
          %793 = dma.done [#allocation18], 512
        $region148: #{tpu_custom_call.1} parent=107 // pred_fallthru
          _
        // Predicated region
        $region149: #{tpu_custom_call.1} parent=107 // pred_check
          %p794 = pneg %p472
        $region150: #{tpu_custom_call.1} parent=107 // pred_check_branch
          %796 = sbr.rel (%p794) target = $region152
        $region151: #{tpu_custom_call.1} parent=107 // pred_region
          %797 = dma.done [#allocation18], 16
        $region152: #{tpu_custom_call.1} parent=107 // pred_fallthru
          _
        // Predicated region
        $region153: #{tpu_custom_call.1} parent=107 // pred_check
          %p798 = pneg %p514
        $region154: #{tpu_custom_call.1} parent=107 // pred_check_branch
          %800 = sbr.rel (%p798) target = $region156
        $region155: #{tpu_custom_call.1} parent=107 // pred_region
          %801 = dma.done [#allocation21], 16
        $region156: #{tpu_custom_call.1} parent=107 // pred_fallthru
          _
        %s802 = sand.u32 %s55, 1
        %s803 = scalar_lea.sflag [#allocation3], %s802
        %s804 = sand.u32 %s55, 1
        %s805 = smul.addr %s804, 8
        %s806 = scalar_lea.vmem [#allocation2], %s805
        %p807 = pneg %p68
        %p808 = pneg %p65
        %s809 = sand.u32 %s47, 1
        %s810 = scalar_lea.sflag [#allocation6], %s809
        %s811 = sand.u32 %s81, 1
        %s812 = smul.addr %s811, 8
        %s813 = scalar_lea.vmem [#allocation5], %s812
        %p814 = pneg %p94
        %p815 = pneg %p91
        %p816 = pneg %p115
        %p817 = pneg %p112
        %p818 = pneg %p136
        %p819 = pneg %p133
        %p820 = pneg %p157
        %p821 = pneg %p154
        %p822 = pneg %p178
        %p823 = pneg %p175
        %p824 = pneg %p199
        %p825 = pneg %p196
        %p826 = pneg %p220
        %p827 = pneg %p217
        %p828 = pneg %p241
        %p829 = pneg %p238
        %p830 = pneg %p262
        %p831 = pneg %p259
        %p832 = pneg %p283
        %p833 = pneg %p280
        %p834 = pneg %p304
        %p835 = pneg %p301
        %p836 = pneg %p325
        %p837 = pneg %p322
        %p838 = pneg %p346
        %p839 = pneg %p343
        %p840 = pneg %p367
        %p841 = pneg %p364
        %p842 = pneg %p388
        %p843 = pneg %p385
        %p844 = pneg %p409
        %p845 = pneg %p406
        %p846 = pneg %p430
        %p847 = pneg %p427
        %p848 = pneg %p451
        %p849 = pneg %p448
        %p850 = pneg %p472
        %p851 = pneg %p469
        %p852 = pneg %p493
        %p853 = pneg %p490
        %p854 = pneg %p514
        %p855 = pneg %p511
        %p856 = pneg %p540
        %p857 = pneg %p537
        %s858 = sand.u32 %s527, 1
        %s859 = scalar_lea.sflag [#allocation4], %s858
        %s860 = sand.u32 %s527, 1
        %s861 = smul.addr %s860, 8
        %s862 = scalar_lea.vmem [#allocation22], %s861
        %v863 = vld [vmem:[%s748] sm:$0xff]
        %v864 = vld [vmem:[%s757] sm:$0xff]
        %v865 = vld [vmem:[%s2] sm:$0xff]
        %v866 = vld [vmem:[%s2 + $0x8] sm:$0xff]
        %v867 = vld [vmem:[%s2 + $0x10] sm:$0xff]
        %v868 = vld [vmem:[%s2 + $0x18] sm:$0xff]
        %v869 = vld [vmem:[%s3] sm:$0x1]
        %v871 = vlaneseq
        %v872 = vshrl.u32 %v871, 7
        %v873 = vsub.s32 0, %v872
        %v874 = vrot.slane %v869, %v873
        %vm876 = vcmask 261120
        %v878 = vsel %vm876, %v863, 0
        %880 = vmatprep.subr.mxu0 0.0
        %881 = vmatpush1.msra.mxu0 0.0
        %882 = vmatprep.subr.mxu0 0.0
        %883 = vmatpush1.msra.mxu0 0.0
        %884 = vmatprep.subr.mxu0 0.0
        %885 = vmatpush1.msra.mxu0 0.0
        %886 = vmatprep.subr.mxu0 0.0
        %887 = vmatpush1.msra.mxu0 0.0
        %888 = vmatprep.subr.mxu0 0.0
        %889 = vmatpush1.msra.mxu0 0.0
        %890 = vmatprep.subr.mxu0 0.0
        %891 = vmatpush1.msra.mxu0 0.0
        %892 = vmatprep.subr.mxu0 0.0
        %893 = vmatpush1.msra.mxu0 0.0
        %894 = vmatprep.subr.mxu0 0.0
        %895 = vmatpush1.msra.mxu0 0.0
        %896 = vmatprep.subr.mxu0 0.0
        %897 = vmatpush1.msra.mxu0 0.0
        %898 = vmatprep.subr.mxu0 0.0
        %899 = vmatpush1.msra.mxu0 0.0
        %900 = vmatprep.subr.mxu0 0.0
        %901 = vmatpush1.msra.mxu0 0.0
        %902 = vmatprep.subr.mxu0 0.0
        %903 = vmatpush1.msra.mxu0 0.0
        %904 = vmatprep.subr.mxu0 0.0
        %905 = vmatpush1.msra.mxu0 %v868
        %906 = vmatprep.subr.mxu0 0.0
        %907 = vmatpush1.msra.mxu0 %v867
        %908 = vmatprep.subr.mxu0 0.0
        %909 = vmatpush1.msra.mxu0 %v866
        %910 = vmatprep.subr.mxu0 0.0
        %911 = vmatpush1.msra.mxu0 %v865
        %912 = vmatprep.subr.mxu0 0.0
        %913 = vmatpush2.msra.mxu0 0.0
        %914 = vmatprep.subr.mxu0 0.0
        %915 = vmatpush2.msra.mxu0 0.0
        %916 = vmatprep.subr.mxu0 0.0
        %917 = vmatpush2.msra.mxu0 0.0
        %918 = vmatprep.subr.mxu0 0.0
        %919 = vmatpush2.msra.mxu0 0.0
        %920 = vmatprep.subr.mxu0 0.0
        %921 = vmatpush2.msra.mxu0 0.0
        %922 = vmatprep.subr.mxu0 0.0
        %923 = vmatpush2.msra.mxu0 0.0
        %924 = vmatprep.subr.mxu0 0.0
        %925 = vmatpush2.msra.mxu0 0.0
        %926 = vmatprep.subr.mxu0 0.0
        %927 = vmatpush2.msra.mxu0 0.0
        %928 = vmatprep.subr.mxu0 0.0
        %929 = vmatpush2.msra.mxu0 0.0
        %930 = vmatprep.subr.mxu0 0.0
        %931 = vmatpush2.msra.mxu0 0.0
        %932 = vmatprep.subr.mxu0 0.0
        %933 = vmatpush2.msra.mxu0 0.0
        %934 = vmatprep.subr.mxu0 0.0
        %935 = vmatpush2.msra.mxu0 0.0
        %936 = vmatprep.subr.mxu0 0.0
        %937 = vmatpush2.msra.mxu0 0.0
        %938 = vmatprep.subr.mxu0 0.0
        %939 = vmatpush2.msra.mxu0 0.0
        %940 = vmatprep.subr.mxu0 0.0
        %941 = vmatpush2.msra.mxu0 0.0
        %942 = vmatprep.subr.mxu0 0.0
        %943 = vmatpush2.msra.mxu0 0.0
        %944 = vmatprep.mubr.f32.mxu0 0.0
        %945 = vmatmul.mubr.f32.gmra.mxu0 %v878
        %v946 = vpop.f32.mrf.mxu0
        %v947 = vadd.f32 %v874, %v946
        %v948 = vpop.f32.mrf.mxu0
        %949 = vdwg.mxu0
        %951 = vrot.lane.b32.xlu0 %v947, 120
        %v952 = vpop.permute.xlu0 %951
        %953 = vrot.lane.b32.xlu0 %v947, 112
        %v954 = vpop.permute.xlu0 %953
        %955 = vrot.lane.b32.xlu0 %v947, 104
        %v956 = vpop.permute.xlu0 %955
        %957 = vrot.lane.b32.xlu0 %v947, 96
        %v958 = vpop.permute.xlu0 %957
        %vm959 = vcmask 64512
        %v960 = vsel %vm959, %v947, 0
        %v962 = vsel %vm959, %v958, 0
        %964 = vmatprep.subr.mxu0 0.0
        %965 = vmatpush1.xpose.msra.mxu0 0.0
        %966 = vmatprep.subr.mxu0 0.0
        %967 = vmatpush1.xpose.msra.mxu0 0.0
        %968 = vmatprep.subr.mxu0 0.0
        %969 = vmatpush1.xpose.msra.mxu0 0.0
        %970 = vmatprep.subr.mxu0 0.0
        %971 = vmatpush1.xpose.msra.mxu0 0.0
        %972 = vmatprep.subr.mxu0 0.0
        %973 = vmatpush1.xpose.msra.mxu0 0.0
        %974 = vmatprep.subr.mxu0 0.0
        %975 = vmatpush1.xpose.msra.mxu0 0.0
        %976 = vmatprep.subr.mxu0 0.0
        %977 = vmatpush1.xpose.msra.mxu0 0.0
        %978 = vmatprep.subr.mxu0 0.0
        %979 = vmatpush1.xpose.msra.mxu0 0.0
        %980 = vmatprep.subr.mxu0 0.0
        %981 = vmatpush1.xpose.msra.mxu0 0.0
        %982 = vmatprep.subr.mxu0 0.0
        %983 = vmatpush1.xpose.msra.mxu0 0.0
        %984 = vmatprep.subr.mxu0 0.0
        %985 = vmatpush1.xpose.msra.mxu0 0.0
        %986 = vmatprep.subr.mxu0 0.0
        %987 = vmatpush1.xpose.msra.mxu0 0.0
        %988 = vmatprep.subr.mxu0 0.0
        %989 = vmatpush1.xpose.msra.mxu0 0.0
        %990 = vmatprep.subr.mxu0 0.0
        %991 = vmatpush1.xpose.msra.mxu0 0.0
        %992 = vmatprep.subr.mxu0 0.0
        %993 = vmatpush1.xpose.msra.mxu0 0.0
        %994 = vmatprep.subr.mxu0 0.0
        %995 = vmatpush1.xpose.msra.mxu0 %v962
        %996 = vmatprep.subr.mxu0 0.0
        %997 = vmatpush2.xpose.msra.mxu0 0.0
        %998 = vmatprep.subr.mxu0 0.0
        %999 = vmatpush2.xpose.msra.mxu0 0.0
        %1000 = vmatprep.subr.mxu0 0.0
        %1001 = vmatpush2.xpose.msra.mxu0 0.0
        %1002 = vmatprep.subr.mxu0 0.0
        %1003 = vmatpush2.xpose.msra.mxu0 0.0
        %1004 = vmatprep.subr.mxu0 0.0
        %1005 = vmatpush2.xpose.msra.mxu0 0.0
        %1006 = vmatprep.subr.mxu0 0.0
        %1007 = vmatpush2.xpose.msra.mxu0 0.0
        %1008 = vmatprep.subr.mxu0 0.0
        %1009 = vmatpush2.xpose.msra.mxu0 0.0
        %1010 = vmatprep.subr.mxu0 0.0
        %1011 = vmatpush2.xpose.msra.mxu0 0.0
        %1012 = vmatprep.subr.mxu0 0.0
        %1013 = vmatpush2.xpose.msra.mxu0 0.0
        %1014 = vmatprep.subr.mxu0 0.0
        %1015 = vmatpush2.xpose.msra.mxu0 0.0
        %1016 = vmatprep.subr.mxu0 0.0
        %1017 = vmatpush2.xpose.msra.mxu0 0.0
        %1018 = vmatprep.subr.mxu0 0.0
        %1019 = vmatpush2.xpose.msra.mxu0 0.0
        %1020 = vmatprep.subr.mxu0 0.0
        %1021 = vmatpush2.xpose.msra.mxu0 0.0
        %1022 = vmatprep.subr.mxu0 0.0
        %1023 = vmatpush2.xpose.msra.mxu0 0.0
        %1024 = vmatprep.subr.mxu0 0.0
        %1025 = vmatpush2.xpose.msra.mxu0 0.0
        %1026 = vmatprep.subr.mxu0 0.0
        %1027 = vmatpush2.xpose.msra.mxu0 0.0
        %1028 = vmatprep.mubr.f32.mxu0 0.0
        %1029 = vmatmul.mubr.f32.gmra.mxu0 %v960
        %v1030 = vpop.f32.mrf.mxu0
        %v1031 = vadd.f32 0.0, %v1030
        %v1032 = vpop.f32.mrf.mxu0
        %1033 = vdwg.mxu0
        %1034 = vrot.lane.b32.xlu0 %v952, 96
        %v1035 = vpop.permute.xlu0 %1034
        %v1036 = vsel %vm959, %v952, 0
        %v1038 = vsel %vm959, %v1035, 0
        %1040 = vmatprep.subr.mxu0 0.0
        %1041 = vmatpush1.xpose.msra.mxu0 0.0
        %1042 = vmatprep.subr.mxu0 0.0
        %1043 = vmatpush1.xpose.msra.mxu0 0.0
        %1044 = vmatprep.subr.mxu0 0.0
        %1045 = vmatpush1.xpose.msra.mxu0 0.0
        %1046 = vmatprep.subr.mxu0 0.0
        %1047 = vmatpush1.xpose.msra.mxu0 0.0
        %1048 = vmatprep.subr.mxu0 0.0
        %1049 = vmatpush1.xpose.msra.mxu0 0.0
        %1050 = vmatprep.subr.mxu0 0.0
        %1051 = vmatpush1.xpose.msra.mxu0 0.0
        %1052 = vmatprep.subr.mxu0 0.0
        %1053 = vmatpush1.xpose.msra.mxu0 0.0
        %1054 = vmatprep.subr.mxu0 0.0
        %1055 = vmatpush1.xpose.msra.mxu0 0.0
        %1056 = vmatprep.subr.mxu0 0.0
        %1057 = vmatpush1.xpose.msra.mxu0 0.0
        %1058 = vmatprep.subr.mxu0 0.0
        %1059 = vmatpush1.xpose.msra.mxu0 0.0
        %1060 = vmatprep.subr.mxu0 0.0
        %1061 = vmatpush1.xpose.msra.mxu0 0.0
        %1062 = vmatprep.subr.mxu0 0.0
        %1063 = vmatpush1.xpose.msra.mxu0 0.0
        %1064 = vmatprep.subr.mxu0 0.0
        %1065 = vmatpush1.xpose.msra.mxu0 0.0
        %1066 = vmatprep.subr.mxu0 0.0
        %1067 = vmatpush1.xpose.msra.mxu0 0.0
        %1068 = vmatprep.subr.mxu0 0.0
        %1069 = vmatpush1.xpose.msra.mxu0 0.0
        %1070 = vmatprep.subr.mxu0 0.0
        %1071 = vmatpush1.xpose.msra.mxu0 %v1038
        %1072 = vmatprep.subr.mxu0 0.0
        %1073 = vmatpush2.xpose.msra.mxu0 0.0
        %1074 = vmatprep.subr.mxu0 0.0
        %1075 = vmatpush2.xpose.msra.mxu0 0.0
        %1076 = vmatprep.subr.mxu0 0.0
        %1077 = vmatpush2.xpose.msra.mxu0 0.0
        %1078 = vmatprep.subr.mxu0 0.0
        %1079 = vmatpush2.xpose.msra.mxu0 0.0
        %1080 = vmatprep.subr.mxu0 0.0
        %1081 = vmatpush2.xpose.msra.mxu0 0.0
        %1082 = vmatprep.subr.mxu0 0.0
        %1083 = vmatpush2.xpose.msra.mxu0 0.0
        %1084 = vmatprep.subr.mxu0 0.0
        %1085 = vmatpush2.xpose.msra.mxu0 0.0
        %1086 = vmatprep.subr.mxu0 0.0
        %1087 = vmatpush2.xpose.msra.mxu0 0.0
        %1088 = vmatprep.subr.mxu0 0.0
        %1089 = vmatpush2.xpose.msra.mxu0 0.0
        %1090 = vmatprep.subr.mxu0 0.0
        %1091 = vmatpush2.xpose.msra.mxu0 0.0
        %1092 = vmatprep.subr.mxu0 0.0
        %1093 = vmatpush2.xpose.msra.mxu0 0.0
        %1094 = vmatprep.subr.mxu0 0.0
        %1095 = vmatpush2.xpose.msra.mxu0 0.0
        %1096 = vmatprep.subr.mxu0 0.0
        %1097 = vmatpush2.xpose.msra.mxu0 0.0
        %1098 = vmatprep.subr.mxu0 0.0
        %1099 = vmatpush2.xpose.msra.mxu0 0.0
        %1100 = vmatprep.subr.mxu0 0.0
        %1101 = vmatpush2.xpose.msra.mxu0 0.0
        %1102 = vmatprep.subr.mxu0 0.0
        %1103 = vmatpush2.xpose.msra.mxu0 0.0
        %1104 = vmatprep.mubr.f32.mxu0 0.0
        %1105 = vmatmul.mubr.f32.gmra.mxu0 %v1036
        %v1106 = vpop.f32.mrf.mxu0
        %v1107 = vadd.f32 0.0, %v1106
        %v1108 = vpop.f32.mrf.mxu0
        %1109 = vdwg.mxu0
        %1110 = vrot.lane.b32.xlu0 %v954, 96
        %v1111 = vpop.permute.xlu0 %1110
        %v1112 = vsel %vm959, %v954, 0
        %v1114 = vsel %vm959, %v1111, 0
        %1116 = vmatprep.subr.mxu0 0.0
        %1117 = vmatpush1.xpose.msra.mxu0 0.0
        %1118 = vmatprep.subr.mxu0 0.0
        %1119 = vmatpush1.xpose.msra.mxu0 0.0
        %1120 = vmatprep.subr.mxu0 0.0
        %1121 = vmatpush1.xpose.msra.mxu0 0.0
        %1122 = vmatprep.subr.mxu0 0.0
        %1123 = vmatpush1.xpose.msra.mxu0 0.0
        %1124 = vmatprep.subr.mxu0 0.0
        %1125 = vmatpush1.xpose.msra.mxu0 0.0
        %1126 = vmatprep.subr.mxu0 0.0
        %1127 = vmatpush1.xpose.msra.mxu0 0.0
        %1128 = vmatprep.subr.mxu0 0.0
        %1129 = vmatpush1.xpose.msra.mxu0 0.0
        %1130 = vmatprep.subr.mxu0 0.0
        %1131 = vmatpush1.xpose.msra.mxu0 0.0
        %1132 = vmatprep.subr.mxu0 0.0
        %1133 = vmatpush1.xpose.msra.mxu0 0.0
        %1134 = vmatprep.subr.mxu0 0.0
        %1135 = vmatpush1.xpose.msra.mxu0 0.0
        %1136 = vmatprep.subr.mxu0 0.0
        %1137 = vmatpush1.xpose.msra.mxu0 0.0
        %1138 = vmatprep.subr.mxu0 0.0
        %1139 = vmatpush1.xpose.msra.mxu0 0.0
        %1140 = vmatprep.subr.mxu0 0.0
        %1141 = vmatpush1.xpose.msra.mxu0 0.0
        %1142 = vmatprep.subr.mxu0 0.0
        %1143 = vmatpush1.xpose.msra.mxu0 0.0
        %1144 = vmatprep.subr.mxu0 0.0
        %1145 = vmatpush1.xpose.msra.mxu0 0.0
        %1146 = vmatprep.subr.mxu0 0.0
        %1147 = vmatpush1.xpose.msra.mxu0 %v1114
        %1148 = vmatprep.subr.mxu0 0.0
        %1149 = vmatpush2.xpose.msra.mxu0 0.0
        %1150 = vmatprep.subr.mxu0 0.0
        %1151 = vmatpush2.xpose.msra.mxu0 0.0
        %1152 = vmatprep.subr.mxu0 0.0
        %1153 = vmatpush2.xpose.msra.mxu0 0.0
        %1154 = vmatprep.subr.mxu0 0.0
        %1155 = vmatpush2.xpose.msra.mxu0 0.0
        %1156 = vmatprep.subr.mxu0 0.0
        %1157 = vmatpush2.xpose.msra.mxu0 0.0
        %1158 = vmatprep.subr.mxu0 0.0
        %1159 = vmatpush2.xpose.msra.mxu0 0.0
        %1160 = vmatprep.subr.mxu0 0.0
        %1161 = vmatpush2.xpose.msra.mxu0 0.0
        %1162 = vmatprep.subr.mxu0 0.0
        %1163 = vmatpush2.xpose.msra.mxu0 0.0
        %1164 = vmatprep.subr.mxu0 0.0
        %1165 = vmatpush2.xpose.msra.mxu0 0.0
        %1166 = vmatprep.subr.mxu0 0.0
        %1167 = vmatpush2.xpose.msra.mxu0 0.0
        %1168 = vmatprep.subr.mxu0 0.0
        %1169 = vmatpush2.xpose.msra.mxu0 0.0
        %1170 = vmatprep.subr.mxu0 0.0
        %1171 = vmatpush2.xpose.msra.mxu0 0.0
        %1172 = vmatprep.subr.mxu0 0.0
        %1173 = vmatpush2.xpose.msra.mxu0 0.0
        %1174 = vmatprep.subr.mxu0 0.0
        %1175 = vmatpush2.xpose.msra.mxu0 0.0
        %1176 = vmatprep.subr.mxu0 0.0
        %1177 = vmatpush2.xpose.msra.mxu0 0.0
        %1178 = vmatprep.subr.mxu0 0.0
        %1179 = vmatpush2.xpose.msra.mxu0 0.0
        %1180 = vmatprep.mubr.f32.mxu0 0.0
        %1181 = vmatmul.mubr.f32.gmra.mxu0 %v1112
        %v1182 = vpop.f32.mrf.mxu0
        %v1183 = vadd.f32 0.0, %v1182
        %v1184 = vpop.f32.mrf.mxu0
        %1185 = vdwg.mxu0
        %1186 = vrot.lane.b32.xlu0 %v956, 96
        %v1187 = vpop.permute.xlu0 %1186
        %v1188 = vsel %vm959, %v956, 0
        %v1190 = vsel %vm959, %v1187, 0
        %1192 = vmatprep.subr.mxu0 0.0
        %1193 = vmatpush1.xpose.msra.mxu0 0.0
        %1194 = vmatprep.subr.mxu0 0.0
        %1195 = vmatpush1.xpose.msra.mxu0 0.0
        %1196 = vmatprep.subr.mxu0 0.0
        %1197 = vmatpush1.xpose.msra.mxu0 0.0
        %1198 = vmatprep.subr.mxu0 0.0
        %1199 = vmatpush1.xpose.msra.mxu0 0.0
        %1200 = vmatprep.subr.mxu0 0.0
        %1201 = vmatpush1.xpose.msra.mxu0 0.0
        %1202 = vmatprep.subr.mxu0 0.0
        %1203 = vmatpush1.xpose.msra.mxu0 0.0
        %1204 = vmatprep.subr.mxu0 0.0
        %1205 = vmatpush1.xpose.msra.mxu0 0.0
        %1206 = vmatprep.subr.mxu0 0.0
        %1207 = vmatpush1.xpose.msra.mxu0 0.0
        %1208 = vmatprep.subr.mxu0 0.0
        %1209 = vmatpush1.xpose.msra.mxu0 0.0
        %1210 = vmatprep.subr.mxu0 0.0
        %1211 = vmatpush1.xpose.msra.mxu0 0.0
        %1212 = vmatprep.subr.mxu0 0.0
        %1213 = vmatpush1.xpose.msra.mxu0 0.0
        %1214 = vmatprep.subr.mxu0 0.0
        %1215 = vmatpush1.xpose.msra.mxu0 0.0
        %1216 = vmatprep.subr.mxu0 0.0
        %1217 = vmatpush1.xpose.msra.mxu0 0.0
        %1218 = vmatprep.subr.mxu0 0.0
        %1219 = vmatpush1.xpose.msra.mxu0 0.0
        %1220 = vmatprep.subr.mxu0 0.0
        %1221 = vmatpush1.xpose.msra.mxu0 0.0
        %1222 = vmatprep.subr.mxu0 0.0
        %1223 = vmatpush1.xpose.msra.mxu0 %v1190
        %1224 = vmatprep.subr.mxu0 0.0
        %1225 = vmatpush2.xpose.msra.mxu0 0.0
        %1226 = vmatprep.subr.mxu0 0.0
        %1227 = vmatpush2.xpose.msra.mxu0 0.0
        %1228 = vmatprep.subr.mxu0 0.0
        %1229 = vmatpush2.xpose.msra.mxu0 0.0
        %1230 = vmatprep.subr.mxu0 0.0
        %1231 = vmatpush2.xpose.msra.mxu0 0.0
        %1232 = vmatprep.subr.mxu0 0.0
        %1233 = vmatpush2.xpose.msra.mxu0 0.0
        %1234 = vmatprep.subr.mxu0 0.0
        %1235 = vmatpush2.xpose.msra.mxu0 0.0
        %1236 = vmatprep.subr.mxu0 0.0
        %1237 = vmatpush2.xpose.msra.mxu0 0.0
        %1238 = vmatprep.subr.mxu0 0.0
        %1239 = vmatpush2.xpose.msra.mxu0 0.0
        %1240 = vmatprep.subr.mxu0 0.0
        %1241 = vmatpush2.xpose.msra.mxu0 0.0
        %1242 = vmatprep.subr.mxu0 0.0
        %1243 = vmatpush2.xpose.msra.mxu0 0.0
        %1244 = vmatprep.subr.mxu0 0.0
        %1245 = vmatpush2.xpose.msra.mxu0 0.0
        %1246 = vmatprep.subr.mxu0 0.0
        %1247 = vmatpush2.xpose.msra.mxu0 0.0
        %1248 = vmatprep.subr.mxu0 0.0
        %1249 = vmatpush2.xpose.msra.mxu0 0.0
        %1250 = vmatprep.subr.mxu0 0.0
        %1251 = vmatpush2.xpose.msra.mxu0 0.0
        %1252 = vmatprep.subr.mxu0 0.0
        %1253 = vmatpush2.xpose.msra.mxu0 0.0
        %1254 = vmatprep.subr.mxu0 0.0
        %1255 = vmatpush2.xpose.msra.mxu0 0.0
        %1256 = vmatprep.mubr.f32.mxu0 0.0
        %1257 = vmatmul.mubr.f32.gmra.mxu0 %v1188
        %v1258 = vpop.f32.mrf.mxu0
        %v1259 = vadd.f32 0.0, %v1258
        %v1260 = vpop.f32.mrf.mxu0
        %1261 = vdwg.mxu0
        %v1262 = vsel %vm959, %v1031, -inf
        %1263 = vmax.xlane.f32.xlu0 %v1262
        %v1264 = vpop.xlane.xlu0 %1263
        %v1265 = vsel %vm959, %v1107, -inf
        %1266 = vmax.xlane.f32.xlu0 %v1265
        %v1267 = vpop.xlane.xlu0 %1266
        %v1268 = vsel %vm959, %v1183, -inf
        %1269 = vmax.xlane.f32.xlu0 %v1268
        %v1270 = vpop.xlane.xlu0 %1269
        %v1271 = vsel %vm959, %v1259, -inf
        %1272 = vmax.xlane.f32.xlu0 %v1271
        %v1273 = vpop.xlane.xlu0 %1272
        %v1274 = vsub.f32 %v1031, %v1264
        %v1275 = vsub.f32 %v1107, %v1267
        %v1276 = vsub.f32 %v1183, %v1270
        %v1277 = vsub.f32 %v1259, %v1273
        %v1278 = vmul.f32 %v1274, 1.442695
        %v1279 = vpow.pop %v1278
        %v1280 = vmul.f32 %v1275, 1.442695
        %v1281 = vpow.pop %v1280
        %v1282 = vmul.f32 %v1276, 1.442695
        %v1283 = vpow.pop %v1282
        %v1284 = vmul.f32 %v1277, 1.442695
        %v1285 = vpow.pop %v1284
        %v1286 = vsel %vm959, %v1279, 0.0
        %1287 = vadd.xlane.f32.xlu0 %v1286
        %v1288 = vpop.xlane.xlu0 %1287
        %v1289 = vsel %vm959, %v1281, 0.0
        %1290 = vadd.xlane.f32.xlu0 %v1289
        %v1291 = vpop.xlane.xlu0 %1290
        %v1292 = vsel %vm959, %v1283, 0.0
        %1293 = vadd.xlane.f32.xlu0 %v1292
        %v1294 = vpop.xlane.xlu0 %1293
        %v1295 = vsel %vm959, %v1285, 0.0
        %1296 = vadd.xlane.f32.xlu0 %v1295
        %v1297 = vpop.xlane.xlu0 %1296
        %v1298 = vrcp.pop %v1288
        %v1299 = vmul.f32 %v1279, %v1298
        %v1300 = vrcp.pop %v1291
        %v1301 = vmul.f32 %v1281, %v1300
        %v1302 = vrcp.pop %v1294
        %v1303 = vmul.f32 %v1283, %v1302
        %v1304 = vrcp.pop %v1297
        %v1305 = vmul.f32 %v1285, %v1304
        %1306 = vrot.lane.b32.xlu0 %v947, 64
        %v1307 = vpop.permute.xlu0 %1306
        %v1310 = vsel %vm959, %v1299, 0
        %1312 = vmatprep.subr.mxu0 0.0
        %1313 = vmatpush1.msra.mxu0 0.0
        %1314 = vmatprep.subr.mxu0 0.0
        %1315 = vmatpush1.msra.mxu0 0.0
        %1316 = vmatprep.subr.mxu0 0.0
        %1317 = vmatpush1.msra.mxu0 0.0
        %1318 = vmatprep.subr.mxu0 0.0
        %1319 = vmatpush1.msra.mxu0 0.0
        %1320 = vmatprep.subr.mxu0 0.0
        %1321 = vmatpush1.msra.mxu0 0.0
        %1322 = vmatprep.subr.mxu0 0.0
        %1323 = vmatpush1.msra.mxu0 0.0
        %1324 = vmatprep.subr.mxu0 0.0
        %1325 = vmatpush1.msra.mxu0 0.0
        %1326 = vmatprep.subr.mxu0 0.0
        %1327 = vmatpush1.msra.mxu0 0.0
        %1328 = vmatprep.subr.mxu0 0.0
        %1329 = vmatpush1.msra.mxu0 0.0
        %1330 = vmatprep.subr.mxu0 0.0
        %1331 = vmatpush1.msra.mxu0 0.0
        %1332 = vmatprep.subr.mxu0 0.0
        %1333 = vmatpush1.msra.mxu0 0.0
        %1334 = vmatprep.subr.mxu0 0.0
        %1335 = vmatpush1.msra.mxu0 0.0
        %1336 = vmatprep.subr.mxu0 0.0
        %1337 = vmatpush1.msra.mxu0 0.0
        %1338 = vmatprep.subr.mxu0 0.0
        %1339 = vmatpush1.msra.mxu0 0.0
        %1340 = vmatprep.subr.mxu0 0.0
        %1341 = vmatpush1.msra.mxu0 0.0
        %1342 = vmatprep.subr.mxu0 0.0
        %1343 = vmatpush1.msra.mxu0 %v1307
        %1344 = vmatprep.subr.mxu0 0.0
        %1345 = vmatpush2.msra.mxu0 0.0
        %1346 = vmatprep.subr.mxu0 0.0
        %1347 = vmatpush2.msra.mxu0 0.0
        %1348 = vmatprep.subr.mxu0 0.0
        %1349 = vmatpush2.msra.mxu0 0.0
        %1350 = vmatprep.subr.mxu0 0.0
        %1351 = vmatpush2.msra.mxu0 0.0
        %1352 = vmatprep.subr.mxu0 0.0
        %1353 = vmatpush2.msra.mxu0 0.0
        %1354 = vmatprep.subr.mxu0 0.0
        %1355 = vmatpush2.msra.mxu0 0.0
        %1356 = vmatprep.subr.mxu0 0.0
        %1357 = vmatpush2.msra.mxu0 0.0
        %1358 = vmatprep.subr.mxu0 0.0
        %1359 = vmatpush2.msra.mxu0 0.0
        %1360 = vmatprep.subr.mxu0 0.0
        %1361 = vmatpush2.msra.mxu0 0.0
        %1362 = vmatprep.subr.mxu0 0.0
        %1363 = vmatpush2.msra.mxu0 0.0
        %1364 = vmatprep.subr.mxu0 0.0
        %1365 = vmatpush2.msra.mxu0 0.0
        %1366 = vmatprep.subr.mxu0 0.0
        %1367 = vmatpush2.msra.mxu0 0.0
        %1368 = vmatprep.subr.mxu0 0.0
        %1369 = vmatpush2.msra.mxu0 0.0
        %1370 = vmatprep.subr.mxu0 0.0
        %1371 = vmatpush2.msra.mxu0 0.0
        %1372 = vmatprep.subr.mxu0 0.0
        %1373 = vmatpush2.msra.mxu0 0.0
        %1374 = vmatprep.subr.mxu0 0.0
        %1375 = vmatpush2.msra.mxu0 0.0
        %1376 = vmatprep.mubr.f32.mxu0 0.0
        %1377 = vmatmul.mubr.f32.gmra.mxu0 %v1310
        %v1378 = vpop.f32.mrf.mxu0
        %v1379 = vadd.f32 0.0, %v1378
        %v1380 = vpop.f32.mrf.mxu0
        %1381 = vdwg.mxu0
        %1382 = vrot.lane.b32.xlu0 %v952, 64
        %v1383 = vpop.permute.xlu0 %1382
        %v1386 = vsel %vm959, %v1301, 0
        %1388 = vmatprep.subr.mxu0 0.0
        %1389 = vmatpush1.msra.mxu0 0.0
        %1390 = vmatprep.subr.mxu0 0.0
        %1391 = vmatpush1.msra.mxu0 0.0
        %1392 = vmatprep.subr.mxu0 0.0
        %1393 = vmatpush1.msra.mxu0 0.0
        %1394 = vmatprep.subr.mxu0 0.0
        %1395 = vmatpush1.msra.mxu0 0.0
        %1396 = vmatprep.subr.mxu0 0.0
        %1397 = vmatpush1.msra.mxu0 0.0
        %1398 = vmatprep.subr.mxu0 0.0
        %1399 = vmatpush1.msra.mxu0 0.0
        %1400 = vmatprep.subr.mxu0 0.0
        %1401 = vmatpush1.msra.mxu0 0.0
        %1402 = vmatprep.subr.mxu0 0.0
        %1403 = vmatpush1.msra.mxu0 0.0
        %1404 = vmatprep.subr.mxu0 0.0
        %1405 = vmatpush1.msra.mxu0 0.0
        %1406 = vmatprep.subr.mxu0 0.0
        %1407 = vmatpush1.msra.mxu0 0.0
        %1408 = vmatprep.subr.mxu0 0.0
        %1409 = vmatpush1.msra.mxu0 0.0
        %1410 = vmatprep.subr.mxu0 0.0
        %1411 = vmatpush1.msra.mxu0 0.0
        %1412 = vmatprep.subr.mxu0 0.0
        %1413 = vmatpush1.msra.mxu0 0.0
        %1414 = vmatprep.subr.mxu0 0.0
        %1415 = vmatpush1.msra.mxu0 0.0
        %1416 = vmatprep.subr.mxu0 0.0
        %1417 = vmatpush1.msra.mxu0 0.0
        %1418 = vmatprep.subr.mxu0 0.0
        %1419 = vmatpush1.msra.mxu0 %v1383
        %1420 = vmatprep.subr.mxu0 0.0
        %1421 = vmatpush2.msra.mxu0 0.0
        %1422 = vmatprep.subr.mxu0 0.0
        %1423 = vmatpush2.msra.mxu0 0.0
        %1424 = vmatprep.subr.mxu0 0.0
        %1425 = vmatpush2.msra.mxu0 0.0
        %1426 = vmatprep.subr.mxu0 0.0
        %1427 = vmatpush2.msra.mxu0 0.0
        %1428 = vmatprep.subr.mxu0 0.0
        %1429 = vmatpush2.msra.mxu0 0.0
        %1430 = vmatprep.subr.mxu0 0.0
        %1431 = vmatpush2.msra.mxu0 0.0
        %1432 = vmatprep.subr.mxu0 0.0
        %1433 = vmatpush2.msra.mxu0 0.0
        %1434 = vmatprep.subr.mxu0 0.0
        %1435 = vmatpush2.msra.mxu0 0.0
        %1436 = vmatprep.subr.mxu0 0.0
        %1437 = vmatpush2.msra.mxu0 0.0
        %1438 = vmatprep.subr.mxu0 0.0
        %1439 = vmatpush2.msra.mxu0 0.0
        %1440 = vmatprep.subr.mxu0 0.0
        %1441 = vmatpush2.msra.mxu0 0.0
        %1442 = vmatprep.subr.mxu0 0.0
        %1443 = vmatpush2.msra.mxu0 0.0
        %1444 = vmatprep.subr.mxu0 0.0
        %1445 = vmatpush2.msra.mxu0 0.0
        %1446 = vmatprep.subr.mxu0 0.0
        %1447 = vmatpush2.msra.mxu0 0.0
        %1448 = vmatprep.subr.mxu0 0.0
        %1449 = vmatpush2.msra.mxu0 0.0
        %1450 = vmatprep.subr.mxu0 0.0
        %1451 = vmatpush2.msra.mxu0 0.0
        %1452 = vmatprep.mubr.f32.mxu0 0.0
        %1453 = vmatmul.mubr.f32.gmra.mxu0 %v1386
        %v1454 = vpop.f32.mrf.mxu0
        %v1455 = vadd.f32 0.0, %v1454
        %v1456 = vpop.f32.mrf.mxu0
        %1457 = vdwg.mxu0
        %1458 = vrot.lane.b32.xlu0 %v954, 64
        %v1459 = vpop.permute.xlu0 %1458
        %v1462 = vsel %vm959, %v1303, 0
        %1464 = vmatprep.subr.mxu0 0.0
        %1465 = vmatpush1.msra.mxu0 0.0
        %1466 = vmatprep.subr.mxu0 0.0
        %1467 = vmatpush1.msra.mxu0 0.0
        %1468 = vmatprep.subr.mxu0 0.0
        %1469 = vmatpush1.msra.mxu0 0.0
        %1470 = vmatprep.subr.mxu0 0.0
        %1471 = vmatpush1.msra.mxu0 0.0
        %1472 = vmatprep.subr.mxu0 0.0
        %1473 = vmatpush1.msra.mxu0 0.0
        %1474 = vmatprep.subr.mxu0 0.0
        %1475 = vmatpush1.msra.mxu0 0.0
        %1476 = vmatprep.subr.mxu0 0.0
        %1477 = vmatpush1.msra.mxu0 0.0
        %1478 = vmatprep.subr.mxu0 0.0
        %1479 = vmatpush1.msra.mxu0 0.0
        %1480 = vmatprep.subr.mxu0 0.0
        %1481 = vmatpush1.msra.mxu0 0.0
        %1482 = vmatprep.subr.mxu0 0.0
        %1483 = vmatpush1.msra.mxu0 0.0
        %1484 = vmatprep.subr.mxu0 0.0
        %1485 = vmatpush1.msra.mxu0 0.0
        %1486 = vmatprep.subr.mxu0 0.0
        %1487 = vmatpush1.msra.mxu0 0.0
        %1488 = vmatprep.subr.mxu0 0.0
        %1489 = vmatpush1.msra.mxu0 0.0
        %1490 = vmatprep.subr.mxu0 0.0
        %1491 = vmatpush1.msra.mxu0 0.0
        %1492 = vmatprep.subr.mxu0 0.0
        %1493 = vmatpush1.msra.mxu0 0.0
        %1494 = vmatprep.subr.mxu0 0.0
        %1495 = vmatpush1.msra.mxu0 %v1459
        %1496 = vmatprep.subr.mxu0 0.0
        %1497 = vmatpush2.msra.mxu0 0.0
        %1498 = vmatprep.subr.mxu0 0.0
        %1499 = vmatpush2.msra.mxu0 0.0
        %1500 = vmatprep.subr.mxu0 0.0
        %1501 = vmatpush2.msra.mxu0 0.0
        %1502 = vmatprep.subr.mxu0 0.0
        %1503 = vmatpush2.msra.mxu0 0.0
        %1504 = vmatprep.subr.mxu0 0.0
        %1505 = vmatpush2.msra.mxu0 0.0
        %1506 = vmatprep.subr.mxu0 0.0
        %1507 = vmatpush2.msra.mxu0 0.0
        %1508 = vmatprep.subr.mxu0 0.0
        %1509 = vmatpush2.msra.mxu0 0.0
        %1510 = vmatprep.subr.mxu0 0.0
        %1511 = vmatpush2.msra.mxu0 0.0
        %1512 = vmatprep.subr.mxu0 0.0
        %1513 = vmatpush2.msra.mxu0 0.0
        %1514 = vmatprep.subr.mxu0 0.0
        %1515 = vmatpush2.msra.mxu0 0.0
        %1516 = vmatprep.subr.mxu0 0.0
        %1517 = vmatpush2.msra.mxu0 0.0
        %1518 = vmatprep.subr.mxu0 0.0
        %1519 = vmatpush2.msra.mxu0 0.0
        %1520 = vmatprep.subr.mxu0 0.0
        %1521 = vmatpush2.msra.mxu0 0.0
        %1522 = vmatprep.subr.mxu0 0.0
        %1523 = vmatpush2.msra.mxu0 0.0
        %1524 = vmatprep.subr.mxu0 0.0
        %1525 = vmatpush2.msra.mxu0 0.0
        %1526 = vmatprep.subr.mxu0 0.0
        %1527 = vmatpush2.msra.mxu0 0.0
        %1528 = vmatprep.mubr.f32.mxu0 0.0
        %1529 = vmatmul.mubr.f32.gmra.mxu0 %v1462
        %v1530 = vpop.f32.mrf.mxu0
        %v1531 = vadd.f32 0.0, %v1530
        %v1532 = vpop.f32.mrf.mxu0
        %1533 = vdwg.mxu0
        %1534 = vrot.lane.b32.xlu0 %v956, 64
        %v1535 = vpop.permute.xlu0 %1534
        %v1538 = vsel %vm959, %v1305, 0
        %1540 = vmatprep.subr.mxu0 0.0
        %1541 = vmatpush1.msra.mxu0 0.0
        %1542 = vmatprep.subr.mxu0 0.0
        %1543 = vmatpush1.msra.mxu0 0.0
        %1544 = vmatprep.subr.mxu0 0.0
        %1545 = vmatpush1.msra.mxu0 0.0
        %1546 = vmatprep.subr.mxu0 0.0
        %1547 = vmatpush1.msra.mxu0 0.0
        %1548 = vmatprep.subr.mxu0 0.0
        %1549 = vmatpush1.msra.mxu0 0.0
        %1550 = vmatprep.subr.mxu0 0.0
        %1551 = vmatpush1.msra.mxu0 0.0
        %1552 = vmatprep.subr.mxu0 0.0
        %1553 = vmatpush1.msra.mxu0 0.0
        %1554 = vmatprep.subr.mxu0 0.0
        %1555 = vmatpush1.msra.mxu0 0.0
        %1556 = vmatprep.subr.mxu0 0.0
        %1557 = vmatpush1.msra.mxu0 0.0
        %1558 = vmatprep.subr.mxu0 0.0
        %1559 = vmatpush1.msra.mxu0 0.0
        %1560 = vmatprep.subr.mxu0 0.0
        %1561 = vmatpush1.msra.mxu0 0.0
        %1562 = vmatprep.subr.mxu0 0.0
        %1563 = vmatpush1.msra.mxu0 0.0
        %1564 = vmatprep.subr.mxu0 0.0
        %1565 = vmatpush1.msra.mxu0 0.0
        %1566 = vmatprep.subr.mxu0 0.0
        %1567 = vmatpush1.msra.mxu0 0.0
        %1568 = vmatprep.subr.mxu0 0.0
        %1569 = vmatpush1.msra.mxu0 0.0
        %1570 = vmatprep.subr.mxu0 0.0
        %1571 = vmatpush1.msra.mxu0 %v1535
        %1572 = vmatprep.subr.mxu0 0.0
        %1573 = vmatpush2.msra.mxu0 0.0
        %1574 = vmatprep.subr.mxu0 0.0
        %1575 = vmatpush2.msra.mxu0 0.0
        %1576 = vmatprep.subr.mxu0 0.0
        %1577 = vmatpush2.msra.mxu0 0.0
        %1578 = vmatprep.subr.mxu0 0.0
        %1579 = vmatpush2.msra.mxu0 0.0
        %1580 = vmatprep.subr.mxu0 0.0
        %1581 = vmatpush2.msra.mxu0 0.0
        %1582 = vmatprep.subr.mxu0 0.0
        %1583 = vmatpush2.msra.mxu0 0.0
        %1584 = vmatprep.subr.mxu0 0.0
        %1585 = vmatpush2.msra.mxu0 0.0
        %1586 = vmatprep.subr.mxu0 0.0
        %1587 = vmatpush2.msra.mxu0 0.0
        %1588 = vmatprep.subr.mxu0 0.0
        %1589 = vmatpush2.msra.mxu0 0.0
        %1590 = vmatprep.subr.mxu0 0.0
        %1591 = vmatpush2.msra.mxu0 0.0
        %1592 = vmatprep.subr.mxu0 0.0
        %1593 = vmatpush2.msra.mxu0 0.0
        %1594 = vmatprep.subr.mxu0 0.0
        %1595 = vmatpush2.msra.mxu0 0.0
        %1596 = vmatprep.subr.mxu0 0.0
        %1597 = vmatpush2.msra.mxu0 0.0
        %1598 = vmatprep.subr.mxu0 0.0
        %1599 = vmatpush2.msra.mxu0 0.0
        %1600 = vmatprep.subr.mxu0 0.0
        %1601 = vmatpush2.msra.mxu0 0.0
        %1602 = vmatprep.subr.mxu0 0.0
        %1603 = vmatpush2.msra.mxu0 0.0
        %1604 = vmatprep.mubr.f32.mxu0 0.0
        %1605 = vmatmul.mubr.f32.gmra.mxu0 %v1538
        %v1606 = vpop.f32.mrf.mxu0
        %v1607 = vadd.f32 0.0, %v1606
        %v1608 = vpop.f32.mrf.mxu0
        %1609 = vdwg.mxu0
        %1611 = vrot.lane.b32.xlu0 %v1455, 8
        %v1612 = vpop.permute.xlu0 %1611
        %1615 = vrot.lane.b32.xlu0 %v1531, 16
        %v1616 = vpop.permute.xlu0 %1615
        %1619 = vrot.lane.b32.xlu0 %v1607, 24
        %v1620 = vpop.permute.xlu0 %1619
        %v1622 = vsel %vm959, %v1379, %v1612
        %vm1623 = vcmask 130048
        %v1624 = vsel %vm1623, %v1622, %v1616
        %vm1625 = vcmask 195584
        %v1626 = vsel %vm1625, %v1624, %v1620
        %v1627 = vld [vmem:[%s4] sm:$0xff]
        %v1628 = vld [vmem:[%s4 + $0x8] sm:$0xff]
        %v1629 = vld [vmem:[%s4 + $0x10] sm:$0xff]
        %v1630 = vld [vmem:[%s4 + $0x18] sm:$0xff]
        %v1631 = vld [vmem:[%s5] sm:$0x1]
        %v1633 = vlaneseq
        %v1634 = vshrl.u32 %v1633, 7
        %v1635 = vsub.s32 0, %v1634
        %v1636 = vrot.slane %v1631, %v1635
        %v1639 = vsel %vm876, %v1626, 0
        %1641 = vmatprep.subr.mxu0 0.0
        %1642 = vmatpush1.msra.mxu0 0.0
        %1643 = vmatprep.subr.mxu0 0.0
        %1644 = vmatpush1.msra.mxu0 0.0
        %1645 = vmatprep.subr.mxu0 0.0
        %1646 = vmatpush1.msra.mxu0 0.0
        %1647 = vmatprep.subr.mxu0 0.0
        %1648 = vmatpush1.msra.mxu0 0.0
        %1649 = vmatprep.subr.mxu0 0.0
        %1650 = vmatpush1.msra.mxu0 0.0
        %1651 = vmatprep.subr.mxu0 0.0
        %1652 = vmatpush1.msra.mxu0 0.0
        %1653 = vmatprep.subr.mxu0 0.0
        %1654 = vmatpush1.msra.mxu0 0.0
        %1655 = vmatprep.subr.mxu0 0.0
        %1656 = vmatpush1.msra.mxu0 0.0
        %1657 = vmatprep.subr.mxu0 0.0
        %1658 = vmatpush1.msra.mxu0 0.0
        %1659 = vmatprep.subr.mxu0 0.0
        %1660 = vmatpush1.msra.mxu0 0.0
        %1661 = vmatprep.subr.mxu0 0.0
        %1662 = vmatpush1.msra.mxu0 0.0
        %1663 = vmatprep.subr.mxu0 0.0
        %1664 = vmatpush1.msra.mxu0 0.0
        %1665 = vmatprep.subr.mxu0 0.0
        %1666 = vmatpush1.msra.mxu0 %v1630
        %1667 = vmatprep.subr.mxu0 0.0
        %1668 = vmatpush1.msra.mxu0 %v1629
        %1669 = vmatprep.subr.mxu0 0.0
        %1670 = vmatpush1.msra.mxu0 %v1628
        %1671 = vmatprep.subr.mxu0 0.0
        %1672 = vmatpush1.msra.mxu0 %v1627
        %1673 = vmatprep.subr.mxu0 0.0
        %1674 = vmatpush2.msra.mxu0 0.0
        %1675 = vmatprep.subr.mxu0 0.0
        %1676 = vmatpush2.msra.mxu0 0.0
        %1677 = vmatprep.subr.mxu0 0.0
        %1678 = vmatpush2.msra.mxu0 0.0
        %1679 = vmatprep.subr.mxu0 0.0
        %1680 = vmatpush2.msra.mxu0 0.0
        %1681 = vmatprep.subr.mxu0 0.0
        %1682 = vmatpush2.msra.mxu0 0.0
        %1683 = vmatprep.subr.mxu0 0.0
        %1684 = vmatpush2.msra.mxu0 0.0
        %1685 = vmatprep.subr.mxu0 0.0
        %1686 = vmatpush2.msra.mxu0 0.0
        %1687 = vmatprep.subr.mxu0 0.0
        %1688 = vmatpush2.msra.mxu0 0.0
        %1689 = vmatprep.subr.mxu0 0.0
        %1690 = vmatpush2.msra.mxu0 0.0
        %1691 = vmatprep.subr.mxu0 0.0
        %1692 = vmatpush2.msra.mxu0 0.0
        %1693 = vmatprep.subr.mxu0 0.0
        %1694 = vmatpush2.msra.mxu0 0.0
        %1695 = vmatprep.subr.mxu0 0.0
        %1696 = vmatpush2.msra.mxu0 0.0
        %1697 = vmatprep.subr.mxu0 0.0
        %1698 = vmatpush2.msra.mxu0 0.0
        %1699 = vmatprep.subr.mxu0 0.0
        %1700 = vmatpush2.msra.mxu0 0.0
        %1701 = vmatprep.subr.mxu0 0.0
        %1702 = vmatpush2.msra.mxu0 0.0
        %1703 = vmatprep.subr.mxu0 0.0
        %1704 = vmatpush2.msra.mxu0 0.0
        %1705 = vmatprep.mubr.f32.mxu0 0.0
        %1706 = vmatmul.mubr.f32.gmra.mxu0 %v1639
        %v1707 = vpop.f32.mrf.mxu0
        %v1708 = vadd.f32 %v1636, %v1707
        %v1709 = vpop.f32.mrf.mxu0
        %1710 = vdwg.mxu0
        %v1711 = vadd.f32 %v863, %v1708
        %v1712 = vld [vmem:[#allocation8] sm:$0x1]
        %v1713 = vld [vmem:[#allocation10] sm:$0x1]
        %v1714 = vsel %vm876, %v1711, 0.0
        %1715 = vadd.xlane.f32.xlu0 %v1714
        %v1716 = vpop.xlane.xlu0 %1715
        %v1717 = vrcp.pop 32.0
        %v1718 = vmul.f32 %v1716, %v1717
        %v1719 = vsub.f32 %v1711, %v1718
        %v1720 = vmul.f32 %v1719, %v1719
        %v1721 = vsel %vm876, %v1720, 0.0
        %1722 = vadd.xlane.f32.xlu0 %v1721
        %v1723 = vpop.xlane.xlu0 %1722
        %v1724 = vmul.f32 %v1723, %v1717
        %v1725 = vadd.f32 %v1724, 1e-05
        %v1726 = vrsqrt.pop %v1725
        %v1727 = vmul.f32 %v1719, %v1726
        %v1729 = vlaneseq
        %v1730 = vshrl.u32 %v1729, 7
        %v1731 = vsub.s32 0, %v1730
        %v1732 = vrot.slane %v1712, %v1731
        %v1734 = vmul.f32 %v1727, %v1732
        %v1736 = vlaneseq
        %v1737 = vshrl.u32 %v1736, 7
        %v1738 = vsub.s32 0, %v1737
        %v1739 = vrot.slane %v1713, %v1738
        %v1741 = vadd.f32 %v1734, %v1739
        %v1742 = vld [vmem:[%s6] sm:$0xff]
        %v1743 = vld [vmem:[%s6 + $0x8] sm:$0xff]
        %v1744 = vld [vmem:[%s6 + $0x10] sm:$0xff]
        %v1745 = vld [vmem:[%s6 + $0x18] sm:$0xff]
        %v1746 = vld [vmem:[%s7] sm:$0x1]
        %v1748 = vlaneseq
        %v1749 = vshrl.u32 %v1748, 7
        %v1750 = vsub.s32 0, %v1749
        %v1751 = vrot.slane %v1746, %v1750
        %v1754 = vsel %vm876, %v1741, 0
        %1756 = vmatprep.subr.mxu0 0.0
        %1757 = vmatpush1.msra.mxu0 0.0
        %1758 = vmatprep.subr.mxu0 0.0
        %1759 = vmatpush1.msra.mxu0 0.0
        %1760 = vmatprep.subr.mxu0 0.0
        %1761 = vmatpush1.msra.mxu0 0.0
        %1762 = vmatprep.subr.mxu0 0.0
        %1763 = vmatpush1.msra.mxu0 0.0
        %1764 = vmatprep.subr.mxu0 0.0
        %1765 = vmatpush1.msra.mxu0 0.0
        %1766 = vmatprep.subr.mxu0 0.0
        %1767 = vmatpush1.msra.mxu0 0.0
        %1768 = vmatprep.subr.mxu0 0.0
        %1769 = vmatpush1.msra.mxu0 0.0
        %1770 = vmatprep.subr.mxu0 0.0
        %1771 = vmatpush1.msra.mxu0 0.0
        %1772 = vmatprep.subr.mxu0 0.0
        %1773 = vmatpush1.msra.mxu0 0.0
        %1774 = vmatprep.subr.mxu0 0.0
        %1775 = vmatpush1.msra.mxu0 0.0
        %1776 = vmatprep.subr.mxu0 0.0
        %1777 = vmatpush1.msra.mxu0 0.0
        %1778 = vmatprep.subr.mxu0 0.0
        %1779 = vmatpush1.msra.mxu0 0.0
        %1780 = vmatprep.subr.mxu0 0.0
        %1781 = vmatpush1.msra.mxu0 %v1745
        %1782 = vmatprep.subr.mxu0 0.0
        %1783 = vmatpush1.msra.mxu0 %v1744
        %1784 = vmatprep.subr.mxu0 0.0
        %1785 = vmatpush1.msra.mxu0 %v1743
        %1786 = vmatprep.subr.mxu0 0.0
        %1787 = vmatpush1.msra.mxu0 %v1742
        %1788 = vmatprep.subr.mxu0 0.0
        %1789 = vmatpush2.msra.mxu0 0.0
        %1790 = vmatprep.subr.mxu0 0.0
        %1791 = vmatpush2.msra.mxu0 0.0
        %1792 = vmatprep.subr.mxu0 0.0
        %1793 = vmatpush2.msra.mxu0 0.0
        %1794 = vmatprep.subr.mxu0 0.0
        %1795 = vmatpush2.msra.mxu0 0.0
        %1796 = vmatprep.subr.mxu0 0.0
        %1797 = vmatpush2.msra.mxu0 0.0
        %1798 = vmatprep.subr.mxu0 0.0
        %1799 = vmatpush2.msra.mxu0 0.0
        %1800 = vmatprep.subr.mxu0 0.0
        %1801 = vmatpush2.msra.mxu0 0.0
        %1802 = vmatprep.subr.mxu0 0.0
        %1803 = vmatpush2.msra.mxu0 0.0
        %1804 = vmatprep.subr.mxu0 0.0
        %1805 = vmatpush2.msra.mxu0 0.0
        %1806 = vmatprep.subr.mxu0 0.0
        %1807 = vmatpush2.msra.mxu0 0.0
        %1808 = vmatprep.subr.mxu0 0.0
        %1809 = vmatpush2.msra.mxu0 0.0
        %1810 = vmatprep.subr.mxu0 0.0
        %1811 = vmatpush2.msra.mxu0 0.0
        %1812 = vmatprep.subr.mxu0 0.0
        %1813 = vmatpush2.msra.mxu0 0.0
        %1814 = vmatprep.subr.mxu0 0.0
        %1815 = vmatpush2.msra.mxu0 0.0
        %1816 = vmatprep.subr.mxu0 0.0
        %1817 = vmatpush2.msra.mxu0 0.0
        %1818 = vmatprep.subr.mxu0 0.0
        %1819 = vmatpush2.msra.mxu0 0.0
        %1820 = vmatprep.mubr.f32.mxu0 0.0
        %1821 = vmatmul.mubr.f32.gmra.mxu0 %v1754
        %v1822 = vpop.f32.mrf.mxu0
        %v1823 = vadd.f32 %v1751, %v1822
        %v1824 = vpop.f32.mrf.mxu0
        %1825 = vdwg.mxu0
        %v1826 = vld [vmem:[%s8] sm:$0xff]
        %v1827 = vld [vmem:[%s8 + $0x8] sm:$0xff]
        %v1828 = vld [vmem:[%s8 + $0x10] sm:$0xff]
        %v1829 = vld [vmem:[%s8 + $0x18] sm:$0xff]
        %v1830 = vld [vmem:[%s9] sm:$0x1]
        %v1832 = vlaneseq
        %v1833 = vshrl.u32 %v1832, 7
        %v1834 = vsub.s32 0, %v1833
        %v1835 = vrot.slane %v1830, %v1834
        %v1838 = vsel %vm876, %v864, 0
        %1840 = vmatprep.subr.mxu0 0.0
        %1841 = vmatpush1.msra.mxu0 0.0
        %1842 = vmatprep.subr.mxu0 0.0
        %1843 = vmatpush1.msra.mxu0 0.0
        %1844 = vmatprep.subr.mxu0 0.0
        %1845 = vmatpush1.msra.mxu0 0.0
        %1846 = vmatprep.subr.mxu0 0.0
        %1847 = vmatpush1.msra.mxu0 0.0
        %1848 = vmatprep.subr.mxu0 0.0
        %1849 = vmatpush1.msra.mxu0 0.0
        %1850 = vmatprep.subr.mxu0 0.0
        %1851 = vmatpush1.msra.mxu0 0.0
        %1852 = vmatprep.subr.mxu0 0.0
        %1853 = vmatpush1.msra.mxu0 0.0
        %1854 = vmatprep.subr.mxu0 0.0
        %1855 = vmatpush1.msra.mxu0 0.0
        %1856 = vmatprep.subr.mxu0 0.0
        %1857 = vmatpush1.msra.mxu0 0.0
        %1858 = vmatprep.subr.mxu0 0.0
        %1859 = vmatpush1.msra.mxu0 0.0
        %1860 = vmatprep.subr.mxu0 0.0
        %1861 = vmatpush1.msra.mxu0 0.0
        %1862 = vmatprep.subr.mxu0 0.0
        %1863 = vmatpush1.msra.mxu0 0.0
        %1864 = vmatprep.subr.mxu0 0.0
        %1865 = vmatpush1.msra.mxu0 %v1829
        %1866 = vmatprep.subr.mxu0 0.0
        %1867 = vmatpush1.msra.mxu0 %v1828
        %1868 = vmatprep.subr.mxu0 0.0
        %1869 = vmatpush1.msra.mxu0 %v1827
        %1870 = vmatprep.subr.mxu0 0.0
        %1871 = vmatpush1.msra.mxu0 %v1826
        %1872 = vmatprep.subr.mxu0 0.0
        %1873 = vmatpush2.msra.mxu0 0.0
        %1874 = vmatprep.subr.mxu0 0.0
        %1875 = vmatpush2.msra.mxu0 0.0
        %1876 = vmatprep.subr.mxu0 0.0
        %1877 = vmatpush2.msra.mxu0 0.0
        %1878 = vmatprep.subr.mxu0 0.0
        %1879 = vmatpush2.msra.mxu0 0.0
        %1880 = vmatprep.subr.mxu0 0.0
        %1881 = vmatpush2.msra.mxu0 0.0
        %1882 = vmatprep.subr.mxu0 0.0
        %1883 = vmatpush2.msra.mxu0 0.0
        %1884 = vmatprep.subr.mxu0 0.0
        %1885 = vmatpush2.msra.mxu0 0.0
        %1886 = vmatprep.subr.mxu0 0.0
        %1887 = vmatpush2.msra.mxu0 0.0
        %1888 = vmatprep.subr.mxu0 0.0
        %1889 = vmatpush2.msra.mxu0 0.0
        %1890 = vmatprep.subr.mxu0 0.0
        %1891 = vmatpush2.msra.mxu0 0.0
        %1892 = vmatprep.subr.mxu0 0.0
        %1893 = vmatpush2.msra.mxu0 0.0
        %1894 = vmatprep.subr.mxu0 0.0
        %1895 = vmatpush2.msra.mxu0 0.0
        %1896 = vmatprep.subr.mxu0 0.0
        %1897 = vmatpush2.msra.mxu0 0.0
        %1898 = vmatprep.subr.mxu0 0.0
        %1899 = vmatpush2.msra.mxu0 0.0
        %1900 = vmatprep.subr.mxu0 0.0
        %1901 = vmatpush2.msra.mxu0 0.0
        %1902 = vmatprep.subr.mxu0 0.0
        %1903 = vmatpush2.msra.mxu0 0.0
        %1904 = vmatprep.mubr.f32.mxu0 0.0
        %1905 = vmatmul.mubr.f32.gmra.mxu0 %v1838
        %v1906 = vpop.f32.mrf.mxu0
        %v1907 = vadd.f32 %v1835, %v1906
        %v1908 = vpop.f32.mrf.mxu0
        %1909 = vdwg.mxu0
        %1911 = vrot.lane.b32.xlu0 %v1823, 120
        %v1912 = vpop.permute.xlu0 %1911
        %1913 = vrot.lane.b32.xlu0 %v1823, 112
        %v1914 = vpop.permute.xlu0 %1913
        %1915 = vrot.lane.b32.xlu0 %v1823, 104
        %v1916 = vpop.permute.xlu0 %1915
        %1918 = vrot.lane.b32.xlu0 %v1907, 120
        %v1919 = vpop.permute.xlu0 %1918
        %1920 = vrot.lane.b32.xlu0 %v1907, 112
        %v1921 = vpop.permute.xlu0 %1920
        %1922 = vrot.lane.b32.xlu0 %v1907, 104
        %v1923 = vpop.permute.xlu0 %1922
        %v1924 = vsel %vm959, %v1823, 0
        %v1926 = vsel %vm959, %v1907, 0
        %1928 = vmatprep.subr.mxu0 0.0
        %1929 = vmatpush1.xpose.msra.mxu0 0.0
        %1930 = vmatprep.subr.mxu0 0.0
        %1931 = vmatpush1.xpose.msra.mxu0 0.0
        %1932 = vmatprep.subr.mxu0 0.0
        %1933 = vmatpush1.xpose.msra.mxu0 0.0
        %1934 = vmatprep.subr.mxu0 0.0
        %1935 = vmatpush1.xpose.msra.mxu0 0.0
        %1936 = vmatprep.subr.mxu0 0.0
        %1937 = vmatpush1.xpose.msra.mxu0 0.0
        %1938 = vmatprep.subr.mxu0 0.0
        %1939 = vmatpush1.xpose.msra.mxu0 0.0
        %1940 = vmatprep.subr.mxu0 0.0
        %1941 = vmatpush1.xpose.msra.mxu0 0.0
        %1942 = vmatprep.subr.mxu0 0.0
        %1943 = vmatpush1.xpose.msra.mxu0 0.0
        %1944 = vmatprep.subr.mxu0 0.0
        %1945 = vmatpush1.xpose.msra.mxu0 0.0
        %1946 = vmatprep.subr.mxu0 0.0
        %1947 = vmatpush1.xpose.msra.mxu0 0.0
        %1948 = vmatprep.subr.mxu0 0.0
        %1949 = vmatpush1.xpose.msra.mxu0 0.0
        %1950 = vmatprep.subr.mxu0 0.0
        %1951 = vmatpush1.xpose.msra.mxu0 0.0
        %1952 = vmatprep.subr.mxu0 0.0
        %1953 = vmatpush1.xpose.msra.mxu0 0.0
        %1954 = vmatprep.subr.mxu0 0.0
        %1955 = vmatpush1.xpose.msra.mxu0 0.0
        %1956 = vmatprep.subr.mxu0 0.0
        %1957 = vmatpush1.xpose.msra.mxu0 0.0
        %1958 = vmatprep.subr.mxu0 0.0
        %1959 = vmatpush1.xpose.msra.mxu0 %v1926
        %1960 = vmatprep.subr.mxu0 0.0
        %1961 = vmatpush2.xpose.msra.mxu0 0.0
        %1962 = vmatprep.subr.mxu0 0.0
        %1963 = vmatpush2.xpose.msra.mxu0 0.0
        %1964 = vmatprep.subr.mxu0 0.0
        %1965 = vmatpush2.xpose.msra.mxu0 0.0
        %1966 = vmatprep.subr.mxu0 0.0
        %1967 = vmatpush2.xpose.msra.mxu0 0.0
        %1968 = vmatprep.subr.mxu0 0.0
        %1969 = vmatpush2.xpose.msra.mxu0 0.0
        %1970 = vmatprep.subr.mxu0 0.0
        %1971 = vmatpush2.xpose.msra.mxu0 0.0
        %1972 = vmatprep.subr.mxu0 0.0
        %1973 = vmatpush2.xpose.msra.mxu0 0.0
        %1974 = vmatprep.subr.mxu0 0.0
        %1975 = vmatpush2.xpose.msra.mxu0 0.0
        %1976 = vmatprep.subr.mxu0 0.0
        %1977 = vmatpush2.xpose.msra.mxu0 0.0
        %1978 = vmatprep.subr.mxu0 0.0
        %1979 = vmatpush2.xpose.msra.mxu0 0.0
        %1980 = vmatprep.subr.mxu0 0.0
        %1981 = vmatpush2.xpose.msra.mxu0 0.0
        %1982 = vmatprep.subr.mxu0 0.0
        %1983 = vmatpush2.xpose.msra.mxu0 0.0
        %1984 = vmatprep.subr.mxu0 0.0
        %1985 = vmatpush2.xpose.msra.mxu0 0.0
        %1986 = vmatprep.subr.mxu0 0.0
        %1987 = vmatpush2.xpose.msra.mxu0 0.0
        %1988 = vmatprep.subr.mxu0 0.0
        %1989 = vmatpush2.xpose.msra.mxu0 0.0
        %1990 = vmatprep.subr.mxu0 0.0
        %1991 = vmatpush2.xpose.msra.mxu0 0.0
        %1992 = vmatprep.mubr.f32.mxu0 0.0
        %1993 = vmatmul.mubr.f32.gmra.mxu0 %v1924
        %v1994 = vpop.f32.mrf.mxu0
        %v1995 = vadd.f32 0.0, %v1994
        %v1996 = vpop.f32.mrf.mxu0
        %1997 = vdwg.mxu0
        %v1998 = vsel %vm959, %v1912, 0
        %v2000 = vsel %vm959, %v1919, 0
        %2002 = vmatprep.subr.mxu0 0.0
        %2003 = vmatpush1.xpose.msra.mxu0 0.0
        %2004 = vmatprep.subr.mxu0 0.0
        %2005 = vmatpush1.xpose.msra.mxu0 0.0
        %2006 = vmatprep.subr.mxu0 0.0
        %2007 = vmatpush1.xpose.msra.mxu0 0.0
        %2008 = vmatprep.subr.mxu0 0.0
        %2009 = vmatpush1.xpose.msra.mxu0 0.0
        %2010 = vmatprep.subr.mxu0 0.0
        %2011 = vmatpush1.xpose.msra.mxu0 0.0
        %2012 = vmatprep.subr.mxu0 0.0
        %2013 = vmatpush1.xpose.msra.mxu0 0.0
        %2014 = vmatprep.subr.mxu0 0.0
        %2015 = vmatpush1.xpose.msra.mxu0 0.0
        %2016 = vmatprep.subr.mxu0 0.0
        %2017 = vmatpush1.xpose.msra.mxu0 0.0
        %2018 = vmatprep.subr.mxu0 0.0
        %2019 = vmatpush1.xpose.msra.mxu0 0.0
        %2020 = vmatprep.subr.mxu0 0.0
        %2021 = vmatpush1.xpose.msra.mxu0 0.0
        %2022 = vmatprep.subr.mxu0 0.0
        %2023 = vmatpush1.xpose.msra.mxu0 0.0
        %2024 = vmatprep.subr.mxu0 0.0
        %2025 = vmatpush1.xpose.msra.mxu0 0.0
        %2026 = vmatprep.subr.mxu0 0.0
        %2027 = vmatpush1.xpose.msra.mxu0 0.0
        %2028 = vmatprep.subr.mxu0 0.0
        %2029 = vmatpush1.xpose.msra.mxu0 0.0
        %2030 = vmatprep.subr.mxu0 0.0
        %2031 = vmatpush1.xpose.msra.mxu0 0.0
        %2032 = vmatprep.subr.mxu0 0.0
        %2033 = vmatpush1.xpose.msra.mxu0 %v2000
        %2034 = vmatprep.subr.mxu0 0.0
        %2035 = vmatpush2.xpose.msra.mxu0 0.0
        %2036 = vmatprep.subr.mxu0 0.0
        %2037 = vmatpush2.xpose.msra.mxu0 0.0
        %2038 = vmatprep.subr.mxu0 0.0
        %2039 = vmatpush2.xpose.msra.mxu0 0.0
        %2040 = vmatprep.subr.mxu0 0.0
        %2041 = vmatpush2.xpose.msra.mxu0 0.0
        %2042 = vmatprep.subr.mxu0 0.0
        %2043 = vmatpush2.xpose.msra.mxu0 0.0
        %2044 = vmatprep.subr.mxu0 0.0
        %2045 = vmatpush2.xpose.msra.mxu0 0.0
        %2046 = vmatprep.subr.mxu0 0.0
        %2047 = vmatpush2.xpose.msra.mxu0 0.0
        %2048 = vmatprep.subr.mxu0 0.0
        %2049 = vmatpush2.xpose.msra.mxu0 0.0
        %2050 = vmatprep.subr.mxu0 0.0
        %2051 = vmatpush2.xpose.msra.mxu0 0.0
        %2052 = vmatprep.subr.mxu0 0.0
        %2053 = vmatpush2.xpose.msra.mxu0 0.0
        %2054 = vmatprep.subr.mxu0 0.0
        %2055 = vmatpush2.xpose.msra.mxu0 0.0
        %2056 = vmatprep.subr.mxu0 0.0
        %2057 = vmatpush2.xpose.msra.mxu0 0.0
        %2058 = vmatprep.subr.mxu0 0.0
        %2059 = vmatpush2.xpose.msra.mxu0 0.0
        %2060 = vmatprep.subr.mxu0 0.0
        %2061 = vmatpush2.xpose.msra.mxu0 0.0
        %2062 = vmatprep.subr.mxu0 0.0
        %2063 = vmatpush2.xpose.msra.mxu0 0.0
        %2064 = vmatprep.subr.mxu0 0.0
        %2065 = vmatpush2.xpose.msra.mxu0 0.0
        %2066 = vmatprep.mubr.f32.mxu0 0.0
        %2067 = vmatmul.mubr.f32.gmra.mxu0 %v1998
        %v2068 = vpop.f32.mrf.mxu0
        %v2069 = vadd.f32 0.0, %v2068
        %v2070 = vpop.f32.mrf.mxu0
        %2071 = vdwg.mxu0
        %v2072 = vsel %vm959, %v1914, 0
        %v2074 = vsel %vm959, %v1921, 0
        %2076 = vmatprep.subr.mxu0 0.0
        %2077 = vmatpush1.xpose.msra.mxu0 0.0
        %2078 = vmatprep.subr.mxu0 0.0
        %2079 = vmatpush1.xpose.msra.mxu0 0.0
        %2080 = vmatprep.subr.mxu0 0.0
        %2081 = vmatpush1.xpose.msra.mxu0 0.0
        %2082 = vmatprep.subr.mxu0 0.0
        %2083 = vmatpush1.xpose.msra.mxu0 0.0
        %2084 = vmatprep.subr.mxu0 0.0
        %2085 = vmatpush1.xpose.msra.mxu0 0.0
        %2086 = vmatprep.subr.mxu0 0.0
        %2087 = vmatpush1.xpose.msra.mxu0 0.0
        %2088 = vmatprep.subr.mxu0 0.0
        %2089 = vmatpush1.xpose.msra.mxu0 0.0
        %2090 = vmatprep.subr.mxu0 0.0
        %2091 = vmatpush1.xpose.msra.mxu0 0.0
        %2092 = vmatprep.subr.mxu0 0.0
        %2093 = vmatpush1.xpose.msra.mxu0 0.0
        %2094 = vmatprep.subr.mxu0 0.0
        %2095 = vmatpush1.xpose.msra.mxu0 0.0
        %2096 = vmatprep.subr.mxu0 0.0
        %2097 = vmatpush1.xpose.msra.mxu0 0.0
        %2098 = vmatprep.subr.mxu0 0.0
        %2099 = vmatpush1.xpose.msra.mxu0 0.0
        %2100 = vmatprep.subr.mxu0 0.0
        %2101 = vmatpush1.xpose.msra.mxu0 0.0
        %2102 = vmatprep.subr.mxu0 0.0
        %2103 = vmatpush1.xpose.msra.mxu0 0.0
        %2104 = vmatprep.subr.mxu0 0.0
        %2105 = vmatpush1.xpose.msra.mxu0 0.0
        %2106 = vmatprep.subr.mxu0 0.0
        %2107 = vmatpush1.xpose.msra.mxu0 %v2074
        %2108 = vmatprep.subr.mxu0 0.0
        %2109 = vmatpush2.xpose.msra.mxu0 0.0
        %2110 = vmatprep.subr.mxu0 0.0
        %2111 = vmatpush2.xpose.msra.mxu0 0.0
        %2112 = vmatprep.subr.mxu0 0.0
        %2113 = vmatpush2.xpose.msra.mxu0 0.0
        %2114 = vmatprep.subr.mxu0 0.0
        %2115 = vmatpush2.xpose.msra.mxu0 0.0
        %2116 = vmatprep.subr.mxu0 0.0
        %2117 = vmatpush2.xpose.msra.mxu0 0.0
        %2118 = vmatprep.subr.mxu0 0.0
        %2119 = vmatpush2.xpose.msra.mxu0 0.0
        %2120 = vmatprep.subr.mxu0 0.0
        %2121 = vmatpush2.xpose.msra.mxu0 0.0
        %2122 = vmatprep.subr.mxu0 0.0
        %2123 = vmatpush2.xpose.msra.mxu0 0.0
        %2124 = vmatprep.subr.mxu0 0.0
        %2125 = vmatpush2.xpose.msra.mxu0 0.0
        %2126 = vmatprep.subr.mxu0 0.0
        %2127 = vmatpush2.xpose.msra.mxu0 0.0
        %2128 = vmatprep.subr.mxu0 0.0
        %2129 = vmatpush2.xpose.msra.mxu0 0.0
        %2130 = vmatprep.subr.mxu0 0.0
        %2131 = vmatpush2.xpose.msra.mxu0 0.0
        %2132 = vmatprep.subr.mxu0 0.0
        %2133 = vmatpush2.xpose.msra.mxu0 0.0
        %2134 = vmatprep.subr.mxu0 0.0
        %2135 = vmatpush2.xpose.msra.mxu0 0.0
        %2136 = vmatprep.subr.mxu0 0.0
        %2137 = vmatpush2.xpose.msra.mxu0 0.0
        %2138 = vmatprep.subr.mxu0 0.0
        %2139 = vmatpush2.xpose.msra.mxu0 0.0
        %2140 = vmatprep.mubr.f32.mxu0 0.0
        %2141 = vmatmul.mubr.f32.gmra.mxu0 %v2072
        %v2142 = vpop.f32.mrf.mxu0
        %v2143 = vadd.f32 0.0, %v2142
        %v2144 = vpop.f32.mrf.mxu0
        %2145 = vdwg.mxu0
        %v2146 = vsel %vm959, %v1916, 0
        %v2148 = vsel %vm959, %v1923, 0
        %2150 = vmatprep.subr.mxu0 0.0
        %2151 = vmatpush1.xpose.msra.mxu0 0.0
        %2152 = vmatprep.subr.mxu0 0.0
        %2153 = vmatpush1.xpose.msra.mxu0 0.0
        %2154 = vmatprep.subr.mxu0 0.0
        %2155 = vmatpush1.xpose.msra.mxu0 0.0
        %2156 = vmatprep.subr.mxu0 0.0
        %2157 = vmatpush1.xpose.msra.mxu0 0.0
        %2158 = vmatprep.subr.mxu0 0.0
        %2159 = vmatpush1.xpose.msra.mxu0 0.0
        %2160 = vmatprep.subr.mxu0 0.0
        %2161 = vmatpush1.xpose.msra.mxu0 0.0
        %2162 = vmatprep.subr.mxu0 0.0
        %2163 = vmatpush1.xpose.msra.mxu0 0.0
        %2164 = vmatprep.subr.mxu0 0.0
        %2165 = vmatpush1.xpose.msra.mxu0 0.0
        %2166 = vmatprep.subr.mxu0 0.0
        %2167 = vmatpush1.xpose.msra.mxu0 0.0
        %2168 = vmatprep.subr.mxu0 0.0
        %2169 = vmatpush1.xpose.msra.mxu0 0.0
        %2170 = vmatprep.subr.mxu0 0.0
        %2171 = vmatpush1.xpose.msra.mxu0 0.0
        %2172 = vmatprep.subr.mxu0 0.0
        %2173 = vmatpush1.xpose.msra.mxu0 0.0
        %2174 = vmatprep.subr.mxu0 0.0
        %2175 = vmatpush1.xpose.msra.mxu0 0.0
        %2176 = vmatprep.subr.mxu0 0.0
        %2177 = vmatpush1.xpose.msra.mxu0 0.0
        %2178 = vmatprep.subr.mxu0 0.0
        %2179 = vmatpush1.xpose.msra.mxu0 0.0
        %2180 = vmatprep.subr.mxu0 0.0
        %2181 = vmatpush1.xpose.msra.mxu0 %v2148
        %2182 = vmatprep.subr.mxu0 0.0
        %2183 = vmatpush2.xpose.msra.mxu0 0.0
        %2184 = vmatprep.subr.mxu0 0.0
        %2185 = vmatpush2.xpose.msra.mxu0 0.0
        %2186 = vmatprep.subr.mxu0 0.0
        %2187 = vmatpush2.xpose.msra.mxu0 0.0
        %2188 = vmatprep.subr.mxu0 0.0
        %2189 = vmatpush2.xpose.msra.mxu0 0.0
        %2190 = vmatprep.subr.mxu0 0.0
        %2191 = vmatpush2.xpose.msra.mxu0 0.0
        %2192 = vmatprep.subr.mxu0 0.0
        %2193 = vmatpush2.xpose.msra.mxu0 0.0
        %2194 = vmatprep.subr.mxu0 0.0
        %2195 = vmatpush2.xpose.msra.mxu0 0.0
        %2196 = vmatprep.subr.mxu0 0.0
        %2197 = vmatpush2.xpose.msra.mxu0 0.0
        %2198 = vmatprep.subr.mxu0 0.0
        %2199 = vmatpush2.xpose.msra.mxu0 0.0
        %2200 = vmatprep.subr.mxu0 0.0
        %2201 = vmatpush2.xpose.msra.mxu0 0.0
        %2202 = vmatprep.subr.mxu0 0.0
        %2203 = vmatpush2.xpose.msra.mxu0 0.0
        %2204 = vmatprep.subr.mxu0 0.0
        %2205 = vmatpush2.xpose.msra.mxu0 0.0
        %2206 = vmatprep.subr.mxu0 0.0
        %2207 = vmatpush2.xpose.msra.mxu0 0.0
        %2208 = vmatprep.subr.mxu0 0.0
        %2209 = vmatpush2.xpose.msra.mxu0 0.0
        %2210 = vmatprep.subr.mxu0 0.0
        %2211 = vmatpush2.xpose.msra.mxu0 0.0
        %2212 = vmatprep.subr.mxu0 0.0
        %2213 = vmatpush2.xpose.msra.mxu0 0.0
        %2214 = vmatprep.mubr.f32.mxu0 0.0
        %2215 = vmatmul.mubr.f32.gmra.mxu0 %v2146
        %v2216 = vpop.f32.mrf.mxu0
        %v2217 = vadd.f32 0.0, %v2216
        %v2218 = vpop.f32.mrf.mxu0
        %2219 = vdwg.mxu0
        %v2220 = vsel %vm959, %v1995, -inf
        %2221 = vmax.xlane.f32.xlu0 %v2220
        %v2222 = vpop.xlane.xlu0 %2221
        %v2223 = vsel %vm959, %v2069, -inf
        %2224 = vmax.xlane.f32.xlu0 %v2223
        %v2225 = vpop.xlane.xlu0 %2224
        %v2226 = vsel %vm959, %v2143, -inf
        %2227 = vmax.xlane.f32.xlu0 %v2226
        %v2228 = vpop.xlane.xlu0 %2227
        %v2229 = vsel %vm959, %v2217, -inf
        %2230 = vmax.xlane.f32.xlu0 %v2229
        %v2231 = vpop.xlane.xlu0 %2230
        %v2232 = vsub.f32 %v1995, %v2222
        %v2233 = vsub.f32 %v2069, %v2225
        %v2234 = vsub.f32 %v2143, %v2228
        %v2235 = vsub.f32 %v2217, %v2231
        %v2236 = vmul.f32 %v2232, 1.442695
        %v2237 = vpow.pop %v2236
        %v2238 = vmul.f32 %v2233, 1.442695
        %v2239 = vpow.pop %v2238
        %v2240 = vmul.f32 %v2234, 1.442695
        %v2241 = vpow.pop %v2240
        %v2242 = vmul.f32 %v2235, 1.442695
        %v2243 = vpow.pop %v2242
        %v2244 = vsel %vm959, %v2237, 0.0
        %2245 = vadd.xlane.f32.xlu0 %v2244
        %v2246 = vpop.xlane.xlu0 %2245
        %v2247 = vsel %vm959, %v2239, 0.0
        %2248 = vadd.xlane.f32.xlu0 %v2247
        %v2249 = vpop.xlane.xlu0 %2248
        %v2250 = vsel %vm959, %v2241, 0.0
        %2251 = vadd.xlane.f32.xlu0 %v2250
        %v2252 = vpop.xlane.xlu0 %2251
        %v2253 = vsel %vm959, %v2243, 0.0
        %2254 = vadd.xlane.f32.xlu0 %v2253
        %v2255 = vpop.xlane.xlu0 %2254
        %v2256 = vrcp.pop %v2246
        %v2257 = vmul.f32 %v2237, %v2256
        %v2258 = vrcp.pop %v2249
        %v2259 = vmul.f32 %v2239, %v2258
        %v2260 = vrcp.pop %v2252
        %v2261 = vmul.f32 %v2241, %v2260
        %v2262 = vrcp.pop %v2255
        %v2263 = vmul.f32 %v2243, %v2262
        %2264 = vrot.lane.b32.xlu0 %v1907, 96
        %v2265 = vpop.permute.xlu0 %2264
        %v2268 = vsel %vm959, %v2257, 0
        %2270 = vmatprep.subr.mxu0 0.0
        %2271 = vmatpush1.msra.mxu0 0.0
        %2272 = vmatprep.subr.mxu0 0.0
        %2273 = vmatpush1.msra.mxu0 0.0
        %2274 = vmatprep.subr.mxu0 0.0
        %2275 = vmatpush1.msra.mxu0 0.0
        %2276 = vmatprep.subr.mxu0 0.0
        %2277 = vmatpush1.msra.mxu0 0.0
        %2278 = vmatprep.subr.mxu0 0.0
        %2279 = vmatpush1.msra.mxu0 0.0
        %2280 = vmatprep.subr.mxu0 0.0
        %2281 = vmatpush1.msra.mxu0 0.0
        %2282 = vmatprep.subr.mxu0 0.0
        %2283 = vmatpush1.msra.mxu0 0.0
        %2284 = vmatprep.subr.mxu0 0.0
        %2285 = vmatpush1.msra.mxu0 0.0
        %2286 = vmatprep.subr.mxu0 0.0
        %2287 = vmatpush1.msra.mxu0 0.0
        %2288 = vmatprep.subr.mxu0 0.0
        %2289 = vmatpush1.msra.mxu0 0.0
        %2290 = vmatprep.subr.mxu0 0.0
        %2291 = vmatpush1.msra.mxu0 0.0
        %2292 = vmatprep.subr.mxu0 0.0
        %2293 = vmatpush1.msra.mxu0 0.0
        %2294 = vmatprep.subr.mxu0 0.0
        %2295 = vmatpush1.msra.mxu0 0.0
        %2296 = vmatprep.subr.mxu0 0.0
        %2297 = vmatpush1.msra.mxu0 0.0
        %2298 = vmatprep.subr.mxu0 0.0
        %2299 = vmatpush1.msra.mxu0 0.0
        %2300 = vmatprep.subr.mxu0 0.0
        %2301 = vmatpush1.msra.mxu0 %v2265
        %2302 = vmatprep.subr.mxu0 0.0
        %2303 = vmatpush2.msra.mxu0 0.0
        %2304 = vmatprep.subr.mxu0 0.0
        %2305 = vmatpush2.msra.mxu0 0.0
        %2306 = vmatprep.subr.mxu0 0.0
        %2307 = vmatpush2.msra.mxu0 0.0
        %2308 = vmatprep.subr.mxu0 0.0
        %2309 = vmatpush2.msra.mxu0 0.0
        %2310 = vmatprep.subr.mxu0 0.0
        %2311 = vmatpush2.msra.mxu0 0.0
        %2312 = vmatprep.subr.mxu0 0.0
        %2313 = vmatpush2.msra.mxu0 0.0
        %2314 = vmatprep.subr.mxu0 0.0
        %2315 = vmatpush2.msra.mxu0 0.0
        %2316 = vmatprep.subr.mxu0 0.0
        %2317 = vmatpush2.msra.mxu0 0.0
        %2318 = vmatprep.subr.mxu0 0.0
        %2319 = vmatpush2.msra.mxu0 0.0
        %2320 = vmatprep.subr.mxu0 0.0
        %2321 = vmatpush2.msra.mxu0 0.0
        %2322 = vmatprep.subr.mxu0 0.0
        %2323 = vmatpush2.msra.mxu0 0.0
        %2324 = vmatprep.subr.mxu0 0.0
        %2325 = vmatpush2.msra.mxu0 0.0
        %2326 = vmatprep.subr.mxu0 0.0
        %2327 = vmatpush2.msra.mxu0 0.0
        %2328 = vmatprep.subr.mxu0 0.0
        %2329 = vmatpush2.msra.mxu0 0.0
        %2330 = vmatprep.subr.mxu0 0.0
        %2331 = vmatpush2.msra.mxu0 0.0
        %2332 = vmatprep.subr.mxu0 0.0
        %2333 = vmatpush2.msra.mxu0 0.0
        %2334 = vmatprep.mubr.f32.mxu0 0.0
        %2335 = vmatmul.mubr.f32.gmra.mxu0 %v2268
        %v2336 = vpop.f32.mrf.mxu0
        %v2337 = vadd.f32 0.0, %v2336
        %v2338 = vpop.f32.mrf.mxu0
        %2339 = vdwg.mxu0
        %2340 = vrot.lane.b32.xlu0 %v1919, 96
        %v2341 = vpop.permute.xlu0 %2340
        %v2344 = vsel %vm959, %v2259, 0
        %2346 = vmatprep.subr.mxu0 0.0
        %2347 = vmatpush1.msra.mxu0 0.0
        %2348 = vmatprep.subr.mxu0 0.0
        %2349 = vmatpush1.msra.mxu0 0.0
        %2350 = vmatprep.subr.mxu0 0.0
        %2351 = vmatpush1.msra.mxu0 0.0
        %2352 = vmatprep.subr.mxu0 0.0
        %2353 = vmatpush1.msra.mxu0 0.0
        %2354 = vmatprep.subr.mxu0 0.0
        %2355 = vmatpush1.msra.mxu0 0.0
        %2356 = vmatprep.subr.mxu0 0.0
        %2357 = vmatpush1.msra.mxu0 0.0
        %2358 = vmatprep.subr.mxu0 0.0
        %2359 = vmatpush1.msra.mxu0 0.0
        %2360 = vmatprep.subr.mxu0 0.0
        %2361 = vmatpush1.msra.mxu0 0.0
        %2362 = vmatprep.subr.mxu0 0.0
        %2363 = vmatpush1.msra.mxu0 0.0
        %2364 = vmatprep.subr.mxu0 0.0
        %2365 = vmatpush1.msra.mxu0 0.0
        %2366 = vmatprep.subr.mxu0 0.0
        %2367 = vmatpush1.msra.mxu0 0.0
        %2368 = vmatprep.subr.mxu0 0.0
        %2369 = vmatpush1.msra.mxu0 0.0
        %2370 = vmatprep.subr.mxu0 0.0
        %2371 = vmatpush1.msra.mxu0 0.0
        %2372 = vmatprep.subr.mxu0 0.0
        %2373 = vmatpush1.msra.mxu0 0.0
        %2374 = vmatprep.subr.mxu0 0.0
        %2375 = vmatpush1.msra.mxu0 0.0
        %2376 = vmatprep.subr.mxu0 0.0
        %2377 = vmatpush1.msra.mxu0 %v2341
        %2378 = vmatprep.subr.mxu0 0.0
        %2379 = vmatpush2.msra.mxu0 0.0
        %2380 = vmatprep.subr.mxu0 0.0
        %2381 = vmatpush2.msra.mxu0 0.0
        %2382 = vmatprep.subr.mxu0 0.0
        %2383 = vmatpush2.msra.mxu0 0.0
        %2384 = vmatprep.subr.mxu0 0.0
        %2385 = vmatpush2.msra.mxu0 0.0
        %2386 = vmatprep.subr.mxu0 0.0
        %2387 = vmatpush2.msra.mxu0 0.0
        %2388 = vmatprep.subr.mxu0 0.0
        %2389 = vmatpush2.msra.mxu0 0.0
        %2390 = vmatprep.subr.mxu0 0.0
        %2391 = vmatpush2.msra.mxu0 0.0
        %2392 = vmatprep.subr.mxu0 0.0
        %2393 = vmatpush2.msra.mxu0 0.0
        %2394 = vmatprep.subr.mxu0 0.0
        %2395 = vmatpush2.msra.mxu0 0.0
        %2396 = vmatprep.subr.mxu0 0.0
        %2397 = vmatpush2.msra.mxu0 0.0
        %2398 = vmatprep.subr.mxu0 0.0
        %2399 = vmatpush2.msra.mxu0 0.0
        %2400 = vmatprep.subr.mxu0 0.0
        %2401 = vmatpush2.msra.mxu0 0.0
        %2402 = vmatprep.subr.mxu0 0.0
        %2403 = vmatpush2.msra.mxu0 0.0
        %2404 = vmatprep.subr.mxu0 0.0
        %2405 = vmatpush2.msra.mxu0 0.0
        %2406 = vmatprep.subr.mxu0 0.0
        %2407 = vmatpush2.msra.mxu0 0.0
        %2408 = vmatprep.subr.mxu0 0.0
        %2409 = vmatpush2.msra.mxu0 0.0
        %2410 = vmatprep.mubr.f32.mxu0 0.0
        %2411 = vmatmul.mubr.f32.gmra.mxu0 %v2344
        %v2412 = vpop.f32.mrf.mxu0
        %v2413 = vadd.f32 0.0, %v2412
        %v2414 = vpop.f32.mrf.mxu0
        %2415 = vdwg.mxu0
        %2416 = vrot.lane.b32.xlu0 %v1921, 96
        %v2417 = vpop.permute.xlu0 %2416
        %v2420 = vsel %vm959, %v2261, 0
        %2422 = vmatprep.subr.mxu0 0.0
        %2423 = vmatpush1.msra.mxu0 0.0
        %2424 = vmatprep.subr.mxu0 0.0
        %2425 = vmatpush1.msra.mxu0 0.0
        %2426 = vmatprep.subr.mxu0 0.0
        %2427 = vmatpush1.msra.mxu0 0.0
        %2428 = vmatprep.subr.mxu0 0.0
        %2429 = vmatpush1.msra.mxu0 0.0
        %2430 = vmatprep.subr.mxu0 0.0
        %2431 = vmatpush1.msra.mxu0 0.0
        %2432 = vmatprep.subr.mxu0 0.0
        %2433 = vmatpush1.msra.mxu0 0.0
        %2434 = vmatprep.subr.mxu0 0.0
        %2435 = vmatpush1.msra.mxu0 0.0
        %2436 = vmatprep.subr.mxu0 0.0
        %2437 = vmatpush1.msra.mxu0 0.0
        %2438 = vmatprep.subr.mxu0 0.0
        %2439 = vmatpush1.msra.mxu0 0.0
        %2440 = vmatprep.subr.mxu0 0.0
        %2441 = vmatpush1.msra.mxu0 0.0
        %2442 = vmatprep.subr.mxu0 0.0
        %2443 = vmatpush1.msra.mxu0 0.0
        %2444 = vmatprep.subr.mxu0 0.0
        %2445 = vmatpush1.msra.mxu0 0.0
        %2446 = vmatprep.subr.mxu0 0.0
        %2447 = vmatpush1.msra.mxu0 0.0
        %2448 = vmatprep.subr.mxu0 0.0
        %2449 = vmatpush1.msra.mxu0 0.0
        %2450 = vmatprep.subr.mxu0 0.0
        %2451 = vmatpush1.msra.mxu0 0.0
        %2452 = vmatprep.subr.mxu0 0.0
        %2453 = vmatpush1.msra.mxu0 %v2417
        %2454 = vmatprep.subr.mxu0 0.0
        %2455 = vmatpush2.msra.mxu0 0.0
        %2456 = vmatprep.subr.mxu0 0.0
        %2457 = vmatpush2.msra.mxu0 0.0
        %2458 = vmatprep.subr.mxu0 0.0
        %2459 = vmatpush2.msra.mxu0 0.0
        %2460 = vmatprep.subr.mxu0 0.0
        %2461 = vmatpush2.msra.mxu0 0.0
        %2462 = vmatprep.subr.mxu0 0.0
        %2463 = vmatpush2.msra.mxu0 0.0
        %2464 = vmatprep.subr.mxu0 0.0
        %2465 = vmatpush2.msra.mxu0 0.0
        %2466 = vmatprep.subr.mxu0 0.0
        %2467 = vmatpush2.msra.mxu0 0.0
        %2468 = vmatprep.subr.mxu0 0.0
        %2469 = vmatpush2.msra.mxu0 0.0
        %2470 = vmatprep.subr.mxu0 0.0
        %2471 = vmatpush2.msra.mxu0 0.0
        %2472 = vmatprep.subr.mxu0 0.0
        %2473 = vmatpush2.msra.mxu0 0.0
        %2474 = vmatprep.subr.mxu0 0.0
        %2475 = vmatpush2.msra.mxu0 0.0
        %2476 = vmatprep.subr.mxu0 0.0
        %2477 = vmatpush2.msra.mxu0 0.0
        %2478 = vmatprep.subr.mxu0 0.0
        %2479 = vmatpush2.msra.mxu0 0.0
        %2480 = vmatprep.subr.mxu0 0.0
        %2481 = vmatpush2.msra.mxu0 0.0
        %2482 = vmatprep.subr.mxu0 0.0
        %2483 = vmatpush2.msra.mxu0 0.0
        %2484 = vmatprep.subr.mxu0 0.0
        %2485 = vmatpush2.msra.mxu0 0.0
        %2486 = vmatprep.mubr.f32.mxu0 0.0
        %2487 = vmatmul.mubr.f32.gmra.mxu0 %v2420
        %v2488 = vpop.f32.mrf.mxu0
        %v2489 = vadd.f32 0.0, %v2488
        %v2490 = vpop.f32.mrf.mxu0
        %2491 = vdwg.mxu0
        %2492 = vrot.lane.b32.xlu0 %v1923, 96
        %v2493 = vpop.permute.xlu0 %2492
        %v2496 = vsel %vm959, %v2263, 0
        %2498 = vmatprep.subr.mxu0 0.0
        %2499 = vmatpush1.msra.mxu0 0.0
        %2500 = vmatprep.subr.mxu0 0.0
        %2501 = vmatpush1.msra.mxu0 0.0
        %2502 = vmatprep.subr.mxu0 0.0
        %2503 = vmatpush1.msra.mxu0 0.0
        %2504 = vmatprep.subr.mxu0 0.0
        %2505 = vmatpush1.msra.mxu0 0.0
        %2506 = vmatprep.subr.mxu0 0.0
        %2507 = vmatpush1.msra.mxu0 0.0
        %2508 = vmatprep.subr.mxu0 0.0
        %2509 = vmatpush1.msra.mxu0 0.0
        %2510 = vmatprep.subr.mxu0 0.0
        %2511 = vmatpush1.msra.mxu0 0.0
        %2512 = vmatprep.subr.mxu0 0.0
        %2513 = vmatpush1.msra.mxu0 0.0
        %2514 = vmatprep.subr.mxu0 0.0
        %2515 = vmatpush1.msra.mxu0 0.0
        %2516 = vmatprep.subr.mxu0 0.0
        %2517 = vmatpush1.msra.mxu0 0.0
        %2518 = vmatprep.subr.mxu0 0.0
        %2519 = vmatpush1.msra.mxu0 0.0
        %2520 = vmatprep.subr.mxu0 0.0
        %2521 = vmatpush1.msra.mxu0 0.0
        %2522 = vmatprep.subr.mxu0 0.0
        %2523 = vmatpush1.msra.mxu0 0.0
        %2524 = vmatprep.subr.mxu0 0.0
        %2525 = vmatpush1.msra.mxu0 0.0
        %2526 = vmatprep.subr.mxu0 0.0
        %2527 = vmatpush1.msra.mxu0 0.0
        %2528 = vmatprep.subr.mxu0 0.0
        %2529 = vmatpush1.msra.mxu0 %v2493
        %2530 = vmatprep.subr.mxu0 0.0
        %2531 = vmatpush2.msra.mxu0 0.0
        %2532 = vmatprep.subr.mxu0 0.0
        %2533 = vmatpush2.msra.mxu0 0.0
        %2534 = vmatprep.subr.mxu0 0.0
        %2535 = vmatpush2.msra.mxu0 0.0
        %2536 = vmatprep.subr.mxu0 0.0
        %2537 = vmatpush2.msra.mxu0 0.0
        %2538 = vmatprep.subr.mxu0 0.0
        %2539 = vmatpush2.msra.mxu0 0.0
        %2540 = vmatprep.subr.mxu0 0.0
        %2541 = vmatpush2.msra.mxu0 0.0
        %2542 = vmatprep.subr.mxu0 0.0
        %2543 = vmatpush2.msra.mxu0 0.0
        %2544 = vmatprep.subr.mxu0 0.0
        %2545 = vmatpush2.msra.mxu0 0.0
        %2546 = vmatprep.subr.mxu0 0.0
        %2547 = vmatpush2.msra.mxu0 0.0
        %2548 = vmatprep.subr.mxu0 0.0
        %2549 = vmatpush2.msra.mxu0 0.0
        %2550 = vmatprep.subr.mxu0 0.0
        %2551 = vmatpush2.msra.mxu0 0.0
        %2552 = vmatprep.subr.mxu0 0.0
        %2553 = vmatpush2.msra.mxu0 0.0
        %2554 = vmatprep.subr.mxu0 0.0
        %2555 = vmatpush2.msra.mxu0 0.0
        %2556 = vmatprep.subr.mxu0 0.0
        %2557 = vmatpush2.msra.mxu0 0.0
        %2558 = vmatprep.subr.mxu0 0.0
        %2559 = vmatpush2.msra.mxu0 0.0
        %2560 = vmatprep.subr.mxu0 0.0
        %2561 = vmatpush2.msra.mxu0 0.0
        %2562 = vmatprep.mubr.f32.mxu0 0.0
        %2563 = vmatmul.mubr.f32.gmra.mxu0 %v2496
        %v2564 = vpop.f32.mrf.mxu0
        %v2565 = vadd.f32 0.0, %v2564
        %v2566 = vpop.f32.mrf.mxu0
        %2567 = vdwg.mxu0
        %2569 = vrot.lane.b32.xlu0 %v2413, 8
        %v2570 = vpop.permute.xlu0 %2569
        %2573 = vrot.lane.b32.xlu0 %v2489, 16
        %v2574 = vpop.permute.xlu0 %2573
        %2577 = vrot.lane.b32.xlu0 %v2565, 24
        %v2578 = vpop.permute.xlu0 %2577
        %v2580 = vsel %vm959, %v2337, %v2570
        %v2581 = vsel %vm1623, %v2580, %v2574
        %v2582 = vsel %vm1625, %v2581, %v2578
        %v2583 = vld [vmem:[%s10] sm:$0xff]
        %v2584 = vld [vmem:[%s10 + $0x8] sm:$0xff]
        %v2585 = vld [vmem:[%s10 + $0x10] sm:$0xff]
        %v2586 = vld [vmem:[%s10 + $0x18] sm:$0xff]
        %v2587 = vld [vmem:[#allocation7] sm:$0x1]
        %v2589 = vlaneseq
        %v2590 = vshrl.u32 %v2589, 7
        %v2591 = vsub.s32 0, %v2590
        %v2592 = vrot.slane %v2587, %v2591
        %v2595 = vsel %vm876, %v2582, 0
        %2597 = vmatprep.subr.mxu0 0.0
        %2598 = vmatpush1.msra.mxu0 0.0
        %2599 = vmatprep.subr.mxu0 0.0
        %2600 = vmatpush1.msra.mxu0 0.0
        %2601 = vmatprep.subr.mxu0 0.0
        %2602 = vmatpush1.msra.mxu0 0.0
        %2603 = vmatprep.subr.mxu0 0.0
        %2604 = vmatpush1.msra.mxu0 0.0
        %2605 = vmatprep.subr.mxu0 0.0
        %2606 = vmatpush1.msra.mxu0 0.0
        %2607 = vmatprep.subr.mxu0 0.0
        %2608 = vmatpush1.msra.mxu0 0.0
        %2609 = vmatprep.subr.mxu0 0.0
        %2610 = vmatpush1.msra.mxu0 0.0
        %2611 = vmatprep.subr.mxu0 0.0
        %2612 = vmatpush1.msra.mxu0 0.0
        %2613 = vmatprep.subr.mxu0 0.0
        %2614 = vmatpush1.msra.mxu0 0.0
        %2615 = vmatprep.subr.mxu0 0.0
        %2616 = vmatpush1.msra.mxu0 0.0
        %2617 = vmatprep.subr.mxu0 0.0
        %2618 = vmatpush1.msra.mxu0 0.0
        %2619 = vmatprep.subr.mxu0 0.0
        %2620 = vmatpush1.msra.mxu0 0.0
        %2621 = vmatprep.subr.mxu0 0.0
        %2622 = vmatpush1.msra.mxu0 %v2586
        %2623 = vmatprep.subr.mxu0 0.0
        %2624 = vmatpush1.msra.mxu0 %v2585
        %2625 = vmatprep.subr.mxu0 0.0
        %2626 = vmatpush1.msra.mxu0 %v2584
        %2627 = vmatprep.subr.mxu0 0.0
        %2628 = vmatpush1.msra.mxu0 %v2583
        %2629 = vmatprep.subr.mxu0 0.0
        %2630 = vmatpush2.msra.mxu0 0.0
        %2631 = vmatprep.subr.mxu0 0.0
        %2632 = vmatpush2.msra.mxu0 0.0
        %2633 = vmatprep.subr.mxu0 0.0
        %2634 = vmatpush2.msra.mxu0 0.0
        %2635 = vmatprep.subr.mxu0 0.0
        %2636 = vmatpush2.msra.mxu0 0.0
        %2637 = vmatprep.subr.mxu0 0.0
        %2638 = vmatpush2.msra.mxu0 0.0
        %2639 = vmatprep.subr.mxu0 0.0
        %2640 = vmatpush2.msra.mxu0 0.0
        %2641 = vmatprep.subr.mxu0 0.0
        %2642 = vmatpush2.msra.mxu0 0.0
        %2643 = vmatprep.subr.mxu0 0.0
        %2644 = vmatpush2.msra.mxu0 0.0
        %2645 = vmatprep.subr.mxu0 0.0
        %2646 = vmatpush2.msra.mxu0 0.0
        %2647 = vmatprep.subr.mxu0 0.0
        %2648 = vmatpush2.msra.mxu0 0.0
        %2649 = vmatprep.subr.mxu0 0.0
        %2650 = vmatpush2.msra.mxu0 0.0
        %2651 = vmatprep.subr.mxu0 0.0
        %2652 = vmatpush2.msra.mxu0 0.0
        %2653 = vmatprep.subr.mxu0 0.0
        %2654 = vmatpush2.msra.mxu0 0.0
        %2655 = vmatprep.subr.mxu0 0.0
        %2656 = vmatpush2.msra.mxu0 0.0
        %2657 = vmatprep.subr.mxu0 0.0
        %2658 = vmatpush2.msra.mxu0 0.0
        %2659 = vmatprep.subr.mxu0 0.0
        %2660 = vmatpush2.msra.mxu0 0.0
        %2661 = vmatprep.mubr.f32.mxu0 0.0
        %2662 = vmatmul.mubr.f32.gmra.mxu0 %v2595
        %v2663 = vpop.f32.mrf.mxu0
        %v2664 = vadd.f32 %v2592, %v2663
        %v2665 = vpop.f32.mrf.mxu0
        %2666 = vdwg.mxu0
        %v2667 = vadd.f32 %v1741, %v2664
        %v2668 = vld [vmem:[#allocation11] sm:$0x1]
        %v2669 = vld [vmem:[#allocation13] sm:$0x1]
        %v2670 = vsel %vm876, %v2667, 0.0
        %2671 = vadd.xlane.f32.xlu0 %v2670
        %v2672 = vpop.xlane.xlu0 %2671
        %v2673 = vmul.f32 %v2672, %v1717
        %v2674 = vsub.f32 %v2667, %v2673
        %v2675 = vmul.f32 %v2674, %v2674
        %v2676 = vsel %vm876, %v2675, 0.0
        %2677 = vadd.xlane.f32.xlu0 %v2676
        %v2678 = vpop.xlane.xlu0 %2677
        %v2679 = vmul.f32 %v2678, %v1717
        %v2680 = vadd.f32 %v2679, 1e-05
        %v2681 = vrsqrt.pop %v2680
        %v2682 = vmul.f32 %v2674, %v2681
        %v2684 = vlaneseq
        %v2685 = vshrl.u32 %v2684, 7
        %v2686 = vsub.s32 0, %v2685
        %v2687 = vrot.slane %v2668, %v2686
        %v2689 = vmul.f32 %v2682, %v2687
        %v2691 = vlaneseq
        %v2692 = vshrl.u32 %v2691, 7
        %v2693 = vsub.s32 0, %v2692
        %v2694 = vrot.slane %v2669, %v2693
        %v2696 = vadd.f32 %v2689, %v2694
        %v2697 = vld [vmem:[#allocation17] sm:$0xff]
        %v2698 = vld [vmem:[#allocation17 + $0x8] sm:$0xff]
        %v2699 = vld [vmem:[#allocation17 + $0x10] sm:$0xff]
        %v2700 = vld [vmem:[#allocation17 + $0x18] sm:$0xff]
        %v2701 = vld [vmem:[#allocation19] sm:$0x1]
        %v2703 = vlaneseq
        %v2704 = vshrl.u32 %v2703, 7
        %v2705 = vsub.s32 0, %v2704
        %v2706 = vrot.slane %v2701, %v2705
        %v2709 = vsel %vm876, %v2696, 0
        %2711 = vmatprep.subr.mxu0 0.0
        %2712 = vmatpush1.msra.mxu0 0.0
        %2713 = vmatprep.subr.mxu0 0.0
        %2714 = vmatpush1.msra.mxu0 0.0
        %2715 = vmatprep.subr.mxu0 0.0
        %2716 = vmatpush1.msra.mxu0 0.0
        %2717 = vmatprep.subr.mxu0 0.0
        %2718 = vmatpush1.msra.mxu0 0.0
        %2719 = vmatprep.subr.mxu0 0.0
        %2720 = vmatpush1.msra.mxu0 0.0
        %2721 = vmatprep.subr.mxu0 0.0
        %2722 = vmatpush1.msra.mxu0 0.0
        %2723 = vmatprep.subr.mxu0 0.0
        %2724 = vmatpush1.msra.mxu0 0.0
        %2725 = vmatprep.subr.mxu0 0.0
        %2726 = vmatpush1.msra.mxu0 0.0
        %2727 = vmatprep.subr.mxu0 0.0
        %2728 = vmatpush1.msra.mxu0 0.0
        %2729 = vmatprep.subr.mxu0 0.0
        %2730 = vmatpush1.msra.mxu0 0.0
        %2731 = vmatprep.subr.mxu0 0.0
        %2732 = vmatpush1.msra.mxu0 0.0
        %2733 = vmatprep.subr.mxu0 0.0
        %2734 = vmatpush1.msra.mxu0 0.0
        %2735 = vmatprep.subr.mxu0 0.0
        %2736 = vmatpush1.msra.mxu0 %v2700
        %2737 = vmatprep.subr.mxu0 0.0
        %2738 = vmatpush1.msra.mxu0 %v2699
        %2739 = vmatprep.subr.mxu0 0.0
        %2740 = vmatpush1.msra.mxu0 %v2698
        %2741 = vmatprep.subr.mxu0 0.0
        %2742 = vmatpush1.msra.mxu0 %v2697
        %2743 = vmatprep.subr.mxu0 0.0
        %2744 = vmatpush2.msra.mxu0 0.0
        %2745 = vmatprep.subr.mxu0 0.0
        %2746 = vmatpush2.msra.mxu0 0.0
        %2747 = vmatprep.subr.mxu0 0.0
        %2748 = vmatpush2.msra.mxu0 0.0
        %2749 = vmatprep.subr.mxu0 0.0
        %2750 = vmatpush2.msra.mxu0 0.0
        %2751 = vmatprep.subr.mxu0 0.0
        %2752 = vmatpush2.msra.mxu0 0.0
        %2753 = vmatprep.subr.mxu0 0.0
        %2754 = vmatpush2.msra.mxu0 0.0
        %2755 = vmatprep.subr.mxu0 0.0
        %2756 = vmatpush2.msra.mxu0 0.0
        %2757 = vmatprep.subr.mxu0 0.0
        %2758 = vmatpush2.msra.mxu0 0.0
        %2759 = vmatprep.subr.mxu0 0.0
        %2760 = vmatpush2.msra.mxu0 0.0
        %2761 = vmatprep.subr.mxu0 0.0
        %2762 = vmatpush2.msra.mxu0 0.0
        %2763 = vmatprep.subr.mxu0 0.0
        %2764 = vmatpush2.msra.mxu0 0.0
        %2765 = vmatprep.subr.mxu0 0.0
        %2766 = vmatpush2.msra.mxu0 0.0
        %2767 = vmatprep.subr.mxu0 0.0
        %2768 = vmatpush2.msra.mxu0 0.0
        %2769 = vmatprep.subr.mxu0 0.0
        %2770 = vmatpush2.msra.mxu0 0.0
        %2771 = vmatprep.subr.mxu0 0.0
        %2772 = vmatpush2.msra.mxu0 0.0
        %2773 = vmatprep.subr.mxu0 0.0
        %2774 = vmatpush2.msra.mxu0 0.0
        %2775 = vmatprep.mubr.f32.mxu0 0.0
        %2776 = vmatmul.mubr.f32.gmra.mxu0 %v2709
        %v2777 = vpop.f32.mrf.mxu0
        %v2778 = vadd.f32 %v2706, %v2777
        %v2779 = vpop.f32.mrf.mxu0
        %2780 = vdwg.mxu0
        %v2781 = vmax.f32 %v2778, 0.0
        %v2782 = vld [vmem:[%s20] sm:$0xff]
        %v2783 = vld [vmem:[%s20 + $0x8] sm:$0xff]
        %v2784 = vld [vmem:[%s20 + $0x10] sm:$0xff]
        %v2785 = vld [vmem:[%s20 + $0x18] sm:$0xff]
        %v2786 = vld [vmem:[%s20 + $0x20] sm:$0xff]
        %v2787 = vld [vmem:[%s20 + $0x28] sm:$0xff]
        %v2788 = vld [vmem:[%s20 + $0x30] sm:$0xff]
        %v2789 = vld [vmem:[%s20 + $0x38] sm:$0xff]
        %v2790 = vld [vmem:[%s20 + $0x40] sm:$0xff]
        %v2791 = vld [vmem:[%s20 + $0x48] sm:$0xff]
        %v2792 = vld [vmem:[%s20 + $0x50] sm:$0xff]
        %v2793 = vld [vmem:[%s20 + $0x58] sm:$0xff]
        %v2794 = vld [vmem:[%s20 + $0x60] sm:$0xff]
        %v2795 = vld [vmem:[%s20 + $0x68] sm:$0xff]
        %v2796 = vld [vmem:[%s20 + $0x70] sm:$0xff]
        %v2797 = vld [vmem:[%s20 + $0x78] sm:$0xff]
        %v2798 = vld [vmem:[#allocation20] sm:$0x1]
        %v2800 = vlaneseq
        %v2801 = vshrl.u32 %v2800, 7
        %v2802 = vsub.s32 0, %v2801
        %v2803 = vrot.slane %v2798, %v2802
        %2805 = vmatprep.subr.mxu0 0.0
        %2806 = vmatpush1.msra.mxu0 %v2797
        %2807 = vmatprep.subr.mxu0 0.0
        %2808 = vmatpush1.msra.mxu0 %v2796
        %2809 = vmatprep.subr.mxu0 0.0
        %2810 = vmatpush1.msra.mxu0 %v2795
        %2811 = vmatprep.subr.mxu0 0.0
        %2812 = vmatpush1.msra.mxu0 %v2794
        %2813 = vmatprep.subr.mxu0 0.0
        %2814 = vmatpush1.msra.mxu0 %v2793
        %2815 = vmatprep.subr.mxu0 0.0
        %2816 = vmatpush1.msra.mxu0 %v2792
        %2817 = vmatprep.subr.mxu0 0.0
        %2818 = vmatpush1.msra.mxu0 %v2791
        %2819 = vmatprep.subr.mxu0 0.0
        %2820 = vmatpush1.msra.mxu0 %v2790
        %2821 = vmatprep.subr.mxu0 0.0
        %2822 = vmatpush1.msra.mxu0 %v2789
        %2823 = vmatprep.subr.mxu0 0.0
        %2824 = vmatpush1.msra.mxu0 %v2788
        %2825 = vmatprep.subr.mxu0 0.0
        %2826 = vmatpush1.msra.mxu0 %v2787
        %2827 = vmatprep.subr.mxu0 0.0
        %2828 = vmatpush1.msra.mxu0 %v2786
        %2829 = vmatprep.subr.mxu0 0.0
        %2830 = vmatpush1.msra.mxu0 %v2785
        %2831 = vmatprep.subr.mxu0 0.0
        %2832 = vmatpush1.msra.mxu0 %v2784
        %2833 = vmatprep.subr.mxu0 0.0
        %2834 = vmatpush1.msra.mxu0 %v2783
        %2835 = vmatprep.subr.mxu0 0.0
        %2836 = vmatpush1.msra.mxu0 %v2782
        %2837 = vmatprep.subr.mxu0 0.0
        %2838 = vmatpush2.msra.mxu0 0.0
        %2839 = vmatprep.subr.mxu0 0.0
        %2840 = vmatpush2.msra.mxu0 0.0
        %2841 = vmatprep.subr.mxu0 0.0
        %2842 = vmatpush2.msra.mxu0 0.0
        %2843 = vmatprep.subr.mxu0 0.0
        %2844 = vmatpush2.msra.mxu0 0.0
        %2845 = vmatprep.subr.mxu0 0.0
        %2846 = vmatpush2.msra.mxu0 0.0
        %2847 = vmatprep.subr.mxu0 0.0
        %2848 = vmatpush2.msra.mxu0 0.0
        %2849 = vmatprep.subr.mxu0 0.0
        %2850 = vmatpush2.msra.mxu0 0.0
        %2851 = vmatprep.subr.mxu0 0.0
        %2852 = vmatpush2.msra.mxu0 0.0
        %2853 = vmatprep.subr.mxu0 0.0
        %2854 = vmatpush2.msra.mxu0 0.0
        %2855 = vmatprep.subr.mxu0 0.0
        %2856 = vmatpush2.msra.mxu0 0.0
        %2857 = vmatprep.subr.mxu0 0.0
        %2858 = vmatpush2.msra.mxu0 0.0
        %2859 = vmatprep.subr.mxu0 0.0
        %2860 = vmatpush2.msra.mxu0 0.0
        %2861 = vmatprep.subr.mxu0 0.0
        %2862 = vmatpush2.msra.mxu0 0.0
        %2863 = vmatprep.subr.mxu0 0.0
        %2864 = vmatpush2.msra.mxu0 0.0
        %2865 = vmatprep.subr.mxu0 0.0
        %2866 = vmatpush2.msra.mxu0 0.0
        %2867 = vmatprep.subr.mxu0 0.0
        %2868 = vmatpush2.msra.mxu0 0.0
        %2869 = vmatprep.mubr.f32.mxu0 0.0
        %2870 = vmatmul.mubr.f32.gmra.mxu0 %v2781
        %v2871 = vpop.f32.mrf.mxu0
        %v2872 = vadd.f32 %v2803, %v2871
        %v2873 = vpop.f32.mrf.mxu0
        %2874 = vdwg.mxu0
        %v2875 = vadd.f32 %v2696, %v2872
        %v2876 = vld [vmem:[#allocation14] sm:$0x1]
        %v2877 = vld [vmem:[#allocation16] sm:$0x1]
        %v2878 = vsel %vm876, %v2875, 0.0
        %2879 = vadd.xlane.f32.xlu0 %v2878
        %v2880 = vpop.xlane.xlu0 %2879
        %v2881 = vmul.f32 %v2880, %v1717
        %v2882 = vsub.f32 %v2875, %v2881
        %v2883 = vmul.f32 %v2882, %v2882
        %v2884 = vsel %vm876, %v2883, 0.0
        %2885 = vadd.xlane.f32.xlu0 %v2884
        %v2886 = vpop.xlane.xlu0 %2885
        %v2887 = vmul.f32 %v2886, %v1717
        %v2888 = vadd.f32 %v2887, 1e-05
        %v2889 = vrsqrt.pop %v2888
        %v2890 = vmul.f32 %v2882, %v2889
        %v2892 = vlaneseq
        %v2893 = vshrl.u32 %v2892, 7
        %v2894 = vsub.s32 0, %v2893
        %v2895 = vrot.slane %v2876, %v2894
        %v2897 = vmul.f32 %v2890, %v2895
        %v2899 = vlaneseq
        %v2900 = vshrl.u32 %v2899, 7
        %v2901 = vsub.s32 0, %v2900
        %v2902 = vrot.slane %v2877, %v2901
        %v2904 = vadd.f32 %v2897, %v2902
        %2905 = vst.msk [vmem:[%s862] sm:$0xff] %vm876, %v2904
        %s2906 = sand.u32 %s527, 1
        %s2907 = scalar_lea.sflag [#allocation4], %s2906
        %s2908 = sand.u32 %s527, 1
        %s2909 = smul.addr %s2908, 8
        %s2910 = scalar_lea.vmem [#allocation22], %s2909
        // Predicated region
        $region157: #{tpu_custom_call.1} parent=107 // pred_check
          %p2911 = pneg %p537
        $region158: #{tpu_custom_call.1} parent=107 // pred_check_branch
          %2913 = sbr.rel (%p2911) target = $region160
        $region159: #{tpu_custom_call.1} parent=107 // pred_region
          %s2915 = ssub.s32 128, 128
          %2916 = vsyncadd %s2907, %s2915
          %s2917 = smul.addr %s47, 128
          %s2918 = scalar_lea.hbm %s22, %s2917
          %s2920 = sshll.u32 %s2910, 4
          %s2921 = int_to_ptr.vmem [resolvable:$true] %s2920
          %2923 = dma.vmem_to_hbm [thread:$0]  %s2921, 128, %s2918, %s2907
        $region160: #{tpu_custom_call.1} parent=107 // pred_fallthru
          _
      $region108: #{tpu_custom_call.1} parent=5 // pred_fallthru
        _
      %p2924 = scmp.le.s32.totalorder 2, %s42
      // Predicated region
      $region161: #{tpu_custom_call.1} parent=5 // pred_check
        %p2925 = pneg %p2924
      $region162: #{tpu_custom_call.1} parent=5 // pred_check_branch
        %2927 = sbr.rel (%p2925) target = $region164
      $region163: #{tpu_custom_call.1} parent=5 // pred_region
        %s2928 = ssub.s32 %s42, 2
        // Predicated region
        $region165: #{tpu_custom_call.1} parent=163 // pred_check
          %p2929 = pneg %p543
        $region166: #{tpu_custom_call.1} parent=163 // pred_check_branch
          %2931 = sbr.rel (%p2929) target = $region168
        $region167: #{tpu_custom_call.1} parent=163 // pred_region
          %s2932 = sand.u32 %s528, 1
          %s2933 = scalar_lea.sflag [#allocation4], %s2932
          %s2934 = sand.u32 %s528, 1
          %s2935 = smul.addr %s2934, 8
          %s2936 = scalar_lea.vmem [#allocation22], %s2935
          %2937 = dma.done %s2933, 128
        $region168: #{tpu_custom_call.1} parent=163 // pred_fallthru
          _
      $region164: #{tpu_custom_call.1} parent=5 // pred_fallthru
        _
    $region6: #{tpu_custom_call.1} parent=1 // loop_footer
      %s46 = sadd.s32 1, %s42
    $region7: #{tpu_custom_call.1} parent=1 // loop_footer_branch
      %41 = sbr.rel target = $region3
    $region8: #{tpu_custom_call.1} parent=1 // loop_exit
      _
    %2938 = vsyncpa [#allocation3], 1
    %s2939 = scalar_lea.sflag [#allocation3], 1
    %2940 = vsyncpa %s2939, 1
    %2941 = vsyncpa [#allocation6], 1
    %s2942 = scalar_lea.sflag [#allocation6], 1
    %2943 = vsyncpa %s2942, 1
    %2944 = vsyncpa [#allocation9], 1
    %2945 = vsyncpa [#allocation12], 1
    %2946 = vsyncpa [#allocation15], 1
    %2947 = vsyncpa [#allocation18], 1
    %2948 = vsyncpa [#allocation21], 1
    %2949 = vsyncpa [#allocation4], 1
    %s2950 = scalar_lea.sflag [#allocation4], 1
    %2951 = vsyncpa %s2950, 1

</llo_original>
